<compile_context>
chip_gen: v5e
topology: v5e:2x2
jax: 0.10.0
libtpu: 0.0.40
codegen_flags: <defaults>
</compile_context>

<pallas_src>
import math
from functools import partial

import jax
import jax.numpy as jnp
from jax import lax
from jax.experimental import pallas as pl
from jax.experimental.pallas import tpu as pltpu

D_MODEL = 512
N_HEADS = 8
D_K = D_MODEL // N_HEADS


# --------------------------------------------------------------------------------------
# In-kernel attention core (shared by the fused-QKV and separate-QKV kernels)
# --------------------------------------------------------------------------------------
def _attend_all(qs, ks, vs, q_base, k_base, v_base, ctx_scr, *, bt, s):
    """Per-(batch, head) softmax attention over projected Q/K/V held in VMEM scratch.

    qs/ks/vs are (bt*s, >=512) f32 scratch refs (possibly the same ref with different
    lane bases, for the fused-QKV path).  Each head's (s, 64) context is written into
    its static 64-lane slice of ctx_scr so a single K=512 output projection can follow.
    """
    dim_nums = (((1,), (1,)), ((), ()))  # contract dim 1 of both -> q @ k^T, no XLU transpose

    def one_batch(row0):
        rsl = pl.ds(row0, s)
        for h in range(N_HEADS):
            c0 = h * D_K
            qh = qs[rsl, q_base + c0:q_base + c0 + D_K].astype(jnp.bfloat16)
            kh = ks[rsl, k_base + c0:k_base + c0 + D_K].astype(jnp.bfloat16)
            vh = vs[rsl, v_base + c0:v_base + c0 + D_K].astype(jnp.bfloat16)

            # scores (1/sqrt(d_k) already folded into Wq/bq)
            sc = lax.dot_general(qh, kh, dim_nums,
                                 preferred_element_type=jnp.float32)      # (s, s)
            # TODO(synk): optional attention mask (mask != None) path not implemented.
            sc = sc - jnp.max(sc, axis=-1, keepdims=True)
            p = jnp.exp(sc)
            p = p * pl.reciprocal(jnp.sum(p, axis=-1, keepdims=True), approx=True)

            ctx_scr[rsl, c0:c0 + D_K] = jnp.dot(p.astype(jnp.bfloat16), vh,
                                                preferred_element_type=jnp.float32)

    if bt <= 4 or s % 8 != 0:
        # Small per-step batch count: static unroll, every slice is static.
        for b in range(bt):
            one_batch(b * s)
    else:
        # Keep only the 8-head loop unrolled; loop over batches with fori_loop so the
        # scheduler window / live ranges stay bounded for large bt.
        def body(b, carry):
            one_batch(pl.multiple_of(b * s, 8))
            return carry
        lax.fori_loop(0, bt, body, 0)


# --------------------------------------------------------------------------------------
# Kernels
# --------------------------------------------------------------------------------------
def _mha_cross_kernel(q_ref, k_ref, v_ref,
                      wq_ref, bq_ref, wk_ref, bk_ref, wv_ref, bv_ref,
                      wo_ref, bo_ref, o_ref,
                      q_scr, k_scr, v_scr, ctx_scr, *, bt, s):
    # Projections over the whole (bt*s, 512) row slab (bf16 MXU inputs, f32 acc),
    # written once to VMEM scratch so only (s, 64) head slices are live afterwards.
    q_scr[...] = jnp.dot(q_ref[...], wq_ref[...],
                         preferred_element_type=jnp.float32) + bq_ref[...]
    k_scr[...] = jnp.dot(k_ref[...], wk_ref[...],
                         preferred_element_type=jnp.float32) + bk_ref[...]
    v_scr[...] = jnp.dot(v_ref[...], wv_ref[...],
                         preferred_element_type=jnp.float32) + bv_ref[...]

    _attend_all(q_scr, k_scr, v_scr, 0, 0, 0, ctx_scr, bt=bt, s=s)

    # Single K=512 output projection for the whole slab; bias added once.
    o_ref[...] = (jnp.dot(ctx_scr[...].astype(jnp.bfloat16), wo_ref[...],
                          preferred_element_type=jnp.float32)
                  + bo_ref[...]).astype(o_ref.dtype)


def _mha_self_kernel(x_ref, wqkv_ref, bqkv_ref, wo_ref, bo_ref, o_ref,
                     qkv_scr, ctx_scr, *, bt, s):
    # One fused (rows, 512) @ (512, 1536) projection produces Q|K|V in a single pass.
    qkv_scr[...] = jnp.dot(x_ref[...], wqkv_ref[...],
                           preferred_element_type=jnp.float32) + bqkv_ref[...]

    _attend_all(qkv_scr, qkv_scr, qkv_scr, 0, D_MODEL, 2 * D_MODEL, ctx_scr, bt=bt, s=s)

    o_ref[...] = (jnp.dot(ctx_scr[...].astype(jnp.bfloat16), wo_ref[...],
                          preferred_element_type=jnp.float32)
                  + bo_ref[...]).astype(o_ref.dtype)


# --------------------------------------------------------------------------------------
# Host-side wrapper
# --------------------------------------------------------------------------------------
def _pick_bt(B, S, max_rows):
    """Number of batch elements folded into one grid step.

    Row slabs are kept 16-row aligned (bf16 min tile for the activation blocks);
    prefer >= 2 grid steps (feeds both v7x TensorCores, keeps in/out pipelining alive),
    then the largest slab under the VMEM-derived cap.  Alignment wins over grid length
    when the two conflict.
    """
    cands = [c for c in range(1, B + 1)
             if B % c == 0 and (c * S) % 16 == 0 and c * S <= max_rows]
    if not cands:
        cands = [c for c in range(1, B + 1) if B % c == 0 and (c * S) % 16 == 0]
    if not cands:
        # No aligned divisor: whole batch in one step (full-array blocks always legal).
        # TODO(synk): pad S to a multiple of 16 + mask instead of this fallback.
        return B
    multi = [c for c in cands if B // c >= 2]
    pool = multi if multi else cands
    return max(pool)


def _vmem_limit_bytes(rows, s, n_act_slabs, vmem_cap):
    act_in = n_act_slabs * rows * D_MODEL * 2 * 2        # bf16 activation slabs, 2 buffers
    out = rows * D_MODEL * 4 * 2                         # f32 output slab, 2 buffers
    weights = 4 * D_MODEL * D_MODEL * 2 * 2              # Wq,Wk,Wv,Wo (bf16), 2 buffers
    biases = 4 * D_MODEL * 4 * 2
    scratch = 4 * rows * D_MODEL * 4                     # projected Q/K/V + ctx scratch (f32)
    work = 8 * s * s * 4 + rows * D_MODEL * 4            # softmax temporaries + slack
    total = act_in + out + weights + biases + scratch + work
    limit = max(2 * total, 16 * 1024 * 1024)             # 2x headroom for compiler scratch
    return int(min(limit, int(vmem_cap * 0.85)))


def multi_head_attention(q, k, v, params):
    """Pallas forward equivalent to MultiHeadAttention.forward(q, k, v, mask=None)."""
    B, S, D = q.shape
    assert D == D_MODEL

    wq, bq, wk, bk, wv, bv, wo, bo = params
    scale = 1.0 / math.sqrt(D_K)

    try:
        vmem_cap = pltpu.get_tpu_info().vmem_capacity_bytes
    except Exception:
        vmem_cap = 64 * 1024 * 1024                      # conservative (v7x per-TC VMEM)
    max_rows = 1024 if vmem_cap >= 100 * 1024 * 1024 else 512   # v5e/v6e vs v7x

    bt = _pick_bt(B, S, max_rows)
    rows = bt * S
    grid = (B // bt,)

    fused = (k is q) and (v is q)                        # self-attention fast path

    # Host-side one-time prep: fold 1/sqrt(d_k) into Wq/bq, bf16 weights (MXU-native),
    # f32 biases (added after f32 accumulation), bf16 activations (halves input DMA).
    wo_b = wo.astype(jnp.bfloat16)
    bo_f = bo.astype(jnp.float32)
    q2 = q.reshape(B * S, D).astype(jnp.bfloat16)

    row_in_spec = pl.BlockSpec((rows, D_MODEL), lambda i: (i, 0))
    row_out_spec = pl.BlockSpec((rows, D_MODEL), lambda i: (i, 0))
    w_spec = pl.BlockSpec((D_MODEL, D_MODEL), lambda i: (0, 0))
    b_spec = pl.BlockSpec((1, D_MODEL), lambda i: (0, 0))
    # TODO(synk): single-buffer grid-invariant weights/biases (pipeline_mode=pl.Buffered(1))
    #             to reclaim ~2 MiB VMEM once reliably supported for pallas_call inputs.
    # TODO(synk): flash-style Sq x KV tiling with online softmax for large S (full (S,S)
    #             per-head scores here are only appropriate for S <= ~512).

    compiler_params = pltpu.CompilerParams(
        dimension_semantics=("parallel",),
        vmem_limit_bytes=_vmem_limit_bytes(rows, S, 1 if fused else 3, vmem_cap),
    )
    out_shape = jax.ShapeDtypeStruct((B * S, D_MODEL), q.dtype)

    if fused:
        wqkv_b = jnp.concatenate([wq * scale, wk, wv], axis=1).astype(jnp.bfloat16)
        bqkv_f = jnp.concatenate([bq * scale, bk, bv], axis=1).astype(jnp.float32)
        out = pl.pallas_call(
            partial(_mha_self_kernel, bt=bt, s=S),
            out_shape=out_shape,
            grid_spec=pltpu.PrefetchScalarGridSpec(
                num_scalar_prefetch=0,
                grid=grid,
                in_specs=[row_in_spec,
                          pl.BlockSpec((D_MODEL, 3 * D_MODEL), lambda i: (0, 0)),
                          pl.BlockSpec((1, 3 * D_MODEL), lambda i: (0, 0)),
                          w_spec, b_spec],
                out_specs=row_out_spec,
                scratch_shapes=[pltpu.VMEM((rows, 3 * D_MODEL), jnp.float32),
                                pltpu.VMEM((rows, D_MODEL), jnp.float32)],
            ),
            compiler_params=compiler_params,
        )(q2, wqkv_b, bqkv_f, wo_b, bo_f)
    else:
        k2 = k.reshape(B * S, D).astype(jnp.bfloat16)
        v2 = v.reshape(B * S, D).astype(jnp.bfloat16)
        wq_b = (wq * scale).astype(jnp.bfloat16)
        bq_f = (bq * scale).astype(jnp.float32)
        wk_b = wk.astype(jnp.bfloat16)
        bk_f = bk.astype(jnp.float32)
        wv_b = wv.astype(jnp.bfloat16)
        bv_f = bv.astype(jnp.float32)
        out = pl.pallas_call(
            partial(_mha_cross_kernel, bt=bt, s=S),
            out_shape=out_shape,
            grid_spec=pltpu.PrefetchScalarGridSpec(
                num_scalar_prefetch=0,
                grid=grid,
                in_specs=[row_in_spec, row_in_spec, row_in_spec,
                          w_spec, b_spec, w_spec, b_spec, w_spec, b_spec,
                          w_spec, b_spec],
                out_specs=row_out_spec,
                scratch_shapes=[pltpu.VMEM((rows, D_MODEL), jnp.float32)] * 4,
            ),
            compiler_params=compiler_params,
        )(q2, k2, v2, wq_b, bq_f, wk_b, bk_f, wv_b, bv_f, wo_b, bo_f)

    return out.reshape(B, S, D_MODEL)


# --------------------------------------------------------------------------------------
# Pure-JAX reference + test harness
# --------------------------------------------------------------------------------------
def reference_mha(q, k, v, params):
    """Pure-JAX f32 reference mirroring the PyTorch forward."""
    wq, bq, wk, bk, wv, bv, wo, bo = params
    B, S, D = q.shape
    Q = q @ wq + bq
    K = k @ wk + bk
    V = v @ wv + bv
    Q = Q.reshape(B, S, N_HEADS, D_K).transpose(0, 2, 1, 3)
    K = K.reshape(B, S, N_HEADS, D_K).transpose(0, 2, 1, 3)
    V = V.reshape(B, S, N_HEADS, D_K).transpose(0, 2, 1, 3)
    scores = jnp.einsum('bhqd,bhkd->bhqk', Q, K) / math.sqrt(D_K)
    attn = jax.nn.softmax(scores, axis=-1)
    ctx = jnp.einsum('bhqk,bhkd->bhqd', attn, V)
    ctx = ctx.transpose(0, 2, 1, 3).reshape(B, S, D)
    return ctx @ wo + bo


def init_params(key):
    keys = jax.random.split(key, 8)
    scale = 0.02
    wq = scale * jax.random.normal(keys[0], (D_MODEL, D_MODEL), jnp.float32)
    wk = scale * jax.random.normal(keys[1], (D_MODEL, D_MODEL), jnp.float32)
    wv = scale * jax.random.normal(keys[2], (D_MODEL, D_MODEL), jnp.float32)
    wo = scale * jax.random.normal(keys[3], (D_MODEL, D_MODEL), jnp.float32)
    bq = scale * jax.random.normal(keys[4], (1, D_MODEL), jnp.float32)
    bk = scale * jax.random.normal(keys[5], (1, D_MODEL), jnp.float32)
    bv = scale * jax.random.normal(keys[6], (1, D_MODEL), jnp.float32)
    bo = scale * jax.random.normal(keys[7], (1, D_MODEL), jnp.float32)
    return (wq, bq, wk, bk, wv, bv, wo, bo)


if __name__ == "__main__":
    key = jax.random.PRNGKey(0)
    k_params, k_q, k_k, k_v = jax.random.split(key, 4)

    B, S = 2, 8
    params = init_params(k_params)
    q = jax.random.normal(k_q, (B, S, D_MODEL), jnp.float32)
    k = jax.random.normal(k_k, (B, S, D_MODEL), jnp.float32)
    v = jax.random.normal(k_v, (B, S, D_MODEL), jnp.float32)

    # cross-attention path (distinct q/k/v)
    out = jax.block_until_ready(multi_head_attention(q, k, v, params))
    ref = jax.block_until_ready(reference_mha(q, k, v, params))
    assert out.shape == (B, S, D_MODEL)
    assert jnp.allclose(out, ref, atol=2e-2, rtol=2e-2), "cross-attention mismatch vs reference"

    # fused-QKV self-attention fast path (q is k is v)
    out_self = jax.block_until_ready(multi_head_attention(q, q, q, params))
    ref_self = jax.block_until_ready(reference_mha(q, q, q, params))
    assert jnp.allclose(out_self, ref_self, atol=2e-2, rtol=2e-2), "self-attention mismatch vs reference"

    print("KERNEL_OK")
</pallas_src>

<mosaic_0001>
module attributes {stable_mosaic.version = 11 : i64} {
  func.func @_mha_cross_kernel(%arg0: i32, %arg1: memref<16x512xbf16, #tpu.memory_space<vmem>>, %arg2: memref<16x512xbf16, #tpu.memory_space<vmem>>, %arg3: memref<16x512xbf16, #tpu.memory_space<vmem>>, %arg4: memref<512x512xbf16, #tpu.memory_space<vmem>>, %arg5: memref<1x512xf32, #tpu.memory_space<vmem>>, %arg6: memref<512x512xbf16, #tpu.memory_space<vmem>>, %arg7: memref<1x512xf32, #tpu.memory_space<vmem>>, %arg8: memref<512x512xbf16, #tpu.memory_space<vmem>>, %arg9: memref<1x512xf32, #tpu.memory_space<vmem>>, %arg10: memref<512x512xbf16, #tpu.memory_space<vmem>>, %arg11: memref<1x512xf32, #tpu.memory_space<vmem>>, %arg12: memref<16x512xf32, #tpu.memory_space<vmem>>, %arg13: memref<16x512xf32, #tpu.memory_space<vmem>>, %arg14: memref<16x512xf32, #tpu.memory_space<vmem>>, %arg15: memref<16x512xf32, #tpu.memory_space<vmem>>, %arg16: memref<16x512xf32, #tpu.memory_space<vmem>>) attributes {dimension_semantics = [#tpu.dimension_semantics<parallel>], iteration_bounds = array<i64: 1>, scalar_prefetch = 0 : i64, scratch_operands = 4 : i64, tpu.core_type = #tpu.core_type<tc>, window_params = [{transform_indices = @transform_0, window_bounds = array<i64: 16, 512>}, {transform_indices = @transform_1, window_bounds = array<i64: 16, 512>}, {transform_indices = @transform_2, window_bounds = array<i64: 16, 512>}, {pipeline_mode = #tpu.pipeline_mode<synchronous>, transform_indices = @transform_3, window_bounds = array<i64: 512, 512>}, {pipeline_mode = #tpu.pipeline_mode<synchronous>, transform_indices = @transform_4, window_bounds = array<i64: 1, 512>}, {pipeline_mode = #tpu.pipeline_mode<synchronous>, transform_indices = @transform_5, window_bounds = array<i64: 512, 512>}, {pipeline_mode = #tpu.pipeline_mode<synchronous>, transform_indices = @transform_6, window_bounds = array<i64: 1, 512>}, {pipeline_mode = #tpu.pipeline_mode<synchronous>, transform_indices = @transform_7, window_bounds = array<i64: 512, 512>}, {pipeline_mode = #tpu.pipeline_mode<synchronous>, transform_indices = @transform_8, window_bounds = array<i64: 1, 512>}, {pipeline_mode = #tpu.pipeline_mode<synchronous>, transform_indices = @transform_9, window_bounds = array<i64: 512, 512>}, {pipeline_mode = #tpu.pipeline_mode<synchronous>, transform_indices = @transform_10, window_bounds = array<i64: 1, 512>}, {transform_indices = @transform_11, window_bounds = array<i64: 16, 512>}]} {
    %c0 = arith.constant 0 : index
    %c0_0 = arith.constant 0 : index
    %0 = vector.load %arg1[%c0, %c0_0] : memref<16x512xbf16, #tpu.memory_space<vmem>>, vector<16x512xbf16>
    %c0_1 = arith.constant 0 : index
    %c0_2 = arith.constant 0 : index
    %1 = vector.load %arg4[%c0_1, %c0_2] : memref<512x512xbf16, #tpu.memory_space<vmem>>, vector<512x512xbf16>
    %cst = arith.constant dense<0.000000e+00> : vector<16x512xf32>
    %2 = tpu.matmul %0, %1, %cst {dimension_numbers = #tpu.dot_dimension_numbers<[1], [0], [0], [1], [0, 0, 1, 1], [], []>} : vector<16x512xbf16>, vector<512x512xbf16>, vector<16x512xf32> -> vector<16x512xf32>
    %c0_3 = arith.constant 0 : index
    %c0_4 = arith.constant 0 : index
    %3 = vector.load %arg5[%c0_3, %c0_4] : memref<1x512xf32, #tpu.memory_space<vmem>>, vector<1x512xf32>
    %4 = vector.broadcast %3 : vector<1x512xf32> to vector<16x512xf32>
    %5 = arith.addf %2, %4 : vector<16x512xf32>
    %c0_5 = arith.constant 0 : index
    %c0_6 = arith.constant 0 : index
    %6 = vector.load %arg13[%c0_5, %c0_6] : memref<16x512xf32, #tpu.memory_space<vmem>>, vector<16x512xf32>
    tpu.vector_store %arg13[%c0_5, %c0_6], %5 {strides = array<i32>} : memref<16x512xf32, #tpu.memory_space<vmem>>, vector<16x512xf32>,
    %c0_7 = arith.constant 0 : index
    %c0_8 = arith.constant 0 : index
    %7 = vector.load %arg2[%c0_7, %c0_8] : memref<16x512xbf16, #tpu.memory_space<vmem>>, vector<16x512xbf16>
    %c0_9 = arith.constant 0 : index
    %c0_10 = arith.constant 0 : index
    %8 = vector.load %arg6[%c0_9, %c0_10] : memref<512x512xbf16, #tpu.memory_space<vmem>>, vector<512x512xbf16>
    %cst_11 = arith.constant dense<0.000000e+00> : vector<16x512xf32>
    %9 = tpu.matmul %7, %8, %cst_11 {dimension_numbers = #tpu.dot_dimension_numbers<[1], [0], [0], [1], [0, 0, 1, 1], [], []>} : vector<16x512xbf16>, vector<512x512xbf16>, vector<16x512xf32> -> vector<16x512xf32>
    %c0_12 = arith.constant 0 : index
    %c0_13 = arith.constant 0 : index
    %10 = vector.load %arg7[%c0_12, %c0_13] : memref<1x512xf32, #tpu.memory_space<vmem>>, vector<1x512xf32>
    %11 = vector.broadcast %10 : vector<1x512xf32> to vector<16x512xf32>
    %12 = arith.addf %9, %11 : vector<16x512xf32>
    %c0_14 = arith.constant 0 : index
    %c0_15 = arith.constant 0 : index
    %13 = vector.load %arg14[%c0_14, %c0_15] : memref<16x512xf32, #tpu.memory_space<vmem>>, vector<16x512xf32>
    tpu.vector_store %arg14[%c0_14, %c0_15], %12 {strides = array<i32>} : memref<16x512xf32, #tpu.memory_space<vmem>>, vector<16x512xf32>,
    %c0_16 = arith.constant 0 : index
    %c0_17 = arith.constant 0 : index
    %14 = vector.load %arg3[%c0_16, %c0_17] : memref<16x512xbf16, #tpu.memory_space<vmem>>, vector<16x512xbf16>
    %c0_18 = arith.constant 0 : index
    %c0_19 = arith.constant 0 : index
    %15 = vector.load %arg8[%c0_18, %c0_19] : memref<512x512xbf16, #tpu.memory_space<vmem>>, vector<512x512xbf16>
    %cst_20 = arith.constant dense<0.000000e+00> : vector<16x512xf32>
    %16 = tpu.matmul %14, %15, %cst_20 {dimension_numbers = #tpu.dot_dimension_numbers<[1], [0], [0], [1], [0, 0, 1, 1], [], []>} : vector<16x512xbf16>, vector<512x512xbf16>, vector<16x512xf32> -> vector<16x512xf32>
    %c0_21 = arith.constant 0 : index
    %c0_22 = arith.constant 0 : index
    %17 = vector.load %arg9[%c0_21, %c0_22] : memref<1x512xf32, #tpu.memory_space<vmem>>, vector<1x512xf32>
    %18 = vector.broadcast %17 : vector<1x512xf32> to vector<16x512xf32>
    %19 = arith.addf %16, %18 : vector<16x512xf32>
    %c0_23 = arith.constant 0 : index
    %c0_24 = arith.constant 0 : index
    %20 = vector.load %arg15[%c0_23, %c0_24] : memref<16x512xf32, #tpu.memory_space<vmem>>, vector<16x512xf32>
    tpu.vector_store %arg15[%c0_23, %c0_24], %19 {strides = array<i32>} : memref<16x512xf32, #tpu.memory_space<vmem>>, vector<16x512xf32>,
    %c0_25 = arith.constant 0 : index
    %c0_26 = arith.constant 0 : index
    %21 = vector.load %arg13[%c0_25, %c0_26] : memref<16x512xf32, #tpu.memory_space<vmem>>, vector<8x64xf32>
    %22 = arith.truncf %21 : vector<8x64xf32> to vector<8x64xbf16>
    %c0_27 = arith.constant 0 : index
    %c0_28 = arith.constant 0 : index
    %23 = vector.load %arg14[%c0_27, %c0_28] : memref<16x512xf32, #tpu.memory_space<vmem>>, vector<8x64xf32>
    %24 = arith.truncf %23 : vector<8x64xf32> to vector<8x64xbf16>
    %c0_29 = arith.constant 0 : index
    %c0_30 = arith.constant 0 : index
    %25 = vector.load %arg15[%c0_29, %c0_30] : memref<16x512xf32, #tpu.memory_space<vmem>>, vector<8x64xf32>
    %26 = arith.truncf %25 : vector<8x64xf32> to vector<8x64xbf16>
    %cst_31 = arith.constant dense<0.000000e+00> : vector<8x8xf32>
    %27 = tpu.matmul %22, %24, %cst_31 {dimension_numbers = #tpu.dot_dimension_numbers<[1], [1], [0], [0], [0, 0, 1, 0], [], []>} : vector<8x64xbf16>, vector<8x64xbf16>, vector<8x8xf32> -> vector<8x8xf32>
    %cst_32 = arith.constant dense<0xFF800000> : vector<8xf32>
    %28 = vector.multi_reduction <maximumf>, %27, %cst_32 [1] : vector<8x8xf32> to vector<8xf32>
    %29 = vector.shape_cast %28 : vector<8xf32> to vector<8x1xf32>
    %30 = vector.broadcast %29 : vector<8x1xf32> to vector<8x8xf32>
    %31 = arith.subf %27, %30 : vector<8x8xf32>
    %32 = math.exp %31 : vector<8x8xf32>
    %cst_33 = arith.constant dense<0.000000e+00> : vector<8xf32>
    %33 = vector.multi_reduction <add>, %32, %cst_33 [1] : vector<8x8xf32> to vector<8xf32>
    %34 = vector.shape_cast %33 : vector<8xf32> to vector<8x1xf32>
    %35 = tpu.reciprocal %34 {approx = true} : vector<8x1xf32> -> vector<8x1xf32>
    %36 = vector.broadcast %35 : vector<8x1xf32> to vector<8x8xf32>
    %37 = arith.mulf %32, %36 : vector<8x8xf32>
    %38 = arith.truncf %37 : vector<8x8xf32> to vector<8x8xbf16>
    %cst_34 = arith.constant dense<0.000000e+00> : vector<8x64xf32>
    %39 = tpu.matmul %38, %26, %cst_34 {dimension_numbers = #tpu.dot_dimension_numbers<[1], [0], [0], [1], [0, 0, 1, 1], [], []>} : vector<8x8xbf16>, vector<8x64xbf16>, vector<8x64xf32> -> vector<8x64xf32>
    %c0_35 = arith.constant 0 : index
    %c0_36 = arith.constant 0 : index
    %40 = vector.load %arg16[%c0_35, %c0_36] : memref<16x512xf32, #tpu.memory_space<vmem>>, vector<8x64xf32>
    tpu.vector_store %arg16[%c0_35, %c0_36], %39 {strides = array<i32>} : memref<16x512xf32, #tpu.memory_space<vmem>>, vector<8x64xf32>,
    %c0_37 = arith.constant 0 : index
    %c64 = arith.constant 64 : index
    %41 = vector.load %arg13[%c0_37, %c64] : memref<16x512xf32, #tpu.memory_space<vmem>>, vector<8x64xf32>
    %42 = arith.truncf %41 : vector<8x64xf32> to vector<8x64xbf16>
    %c0_38 = arith.constant 0 : index
    %c64_39 = arith.constant 64 : index
    %43 = vector.load %arg14[%c0_38, %c64_39] : memref<16x512xf32, #tpu.memory_space<vmem>>, vector<8x64xf32>
    %44 = arith.truncf %43 : vector<8x64xf32> to vector<8x64xbf16>
    %c0_40 = arith.constant 0 : index
    %c64_41 = arith.constant 64 : index
    %45 = vector.load %arg15[%c0_40, %c64_41] : memref<16x512xf32, #tpu.memory_space<vmem>>, vector<8x64xf32>
    %46 = arith.truncf %45 : vector<8x64xf32> to vector<8x64xbf16>
    %cst_42 = arith.constant dense<0.000000e+00> : vector<8x8xf32>
    %47 = tpu.matmul %42, %44, %cst_42 {dimension_numbers = #tpu.dot_dimension_numbers<[1], [1], [0], [0], [0, 0, 1, 0], [], []>} : vector<8x64xbf16>, vector<8x64xbf16>, vector<8x8xf32> -> vector<8x8xf32>
    %cst_43 = arith.constant dense<0xFF800000> : vector<8xf32>
    %48 = vector.multi_reduction <maximumf>, %47, %cst_43 [1] : vector<8x8xf32> to vector<8xf32>
    %49 = vector.shape_cast %48 : vector<8xf32> to vector<8x1xf32>
    %50 = vector.broadcast %49 : vector<8x1xf32> to vector<8x8xf32>
    %51 = arith.subf %47, %50 : vector<8x8xf32>
    %52 = math.exp %51 : vector<8x8xf32>
    %cst_44 = arith.constant dense<0.000000e+00> : vector<8xf32>
    %53 = vector.multi_reduction <add>, %52, %cst_44 [1] : vector<8x8xf32> to vector<8xf32>
    %54 = vector.shape_cast %53 : vector<8xf32> to vector<8x1xf32>
    %55 = tpu.reciprocal %54 {approx = true} : vector<8x1xf32> -> vector<8x1xf32>
    %56 = vector.broadcast %55 : vector<8x1xf32> to vector<8x8xf32>
    %57 = arith.mulf %52, %56 : vector<8x8xf32>
    %58 = arith.truncf %57 : vector<8x8xf32> to vector<8x8xbf16>
    %cst_45 = arith.constant dense<0.000000e+00> : vector<8x64xf32>
    %59 = tpu.matmul %58, %46, %cst_45 {dimension_numbers = #tpu.dot_dimension_numbers<[1], [0], [0], [1], [0, 0, 1, 1], [], []>} : vector<8x8xbf16>, vector<8x64xbf16>, vector<8x64xf32> -> vector<8x64xf32>
    %c0_46 = arith.constant 0 : index
    %c64_47 = arith.constant 64 : index
    %60 = vector.load %arg16[%c0_46, %c64_47] : memref<16x512xf32, #tpu.memory_space<vmem>>, vector<8x64xf32>
    tpu.vector_store %arg16[%c0_46, %c64_47], %59 {strides = array<i32>} : memref<16x512xf32, #tpu.memory_space<vmem>>, vector<8x64xf32>,
    %c0_48 = arith.constant 0 : index
    %c128 = arith.constant 128 : index
    %61 = vector.load %arg13[%c0_48, %c128] : memref<16x512xf32, #tpu.memory_space<vmem>>, vector<8x64xf32>
    %62 = arith.truncf %61 : vector<8x64xf32> to vector<8x64xbf16>
    %c0_49 = arith.constant 0 : index
    %c128_50 = arith.constant 128 : index
    %63 = vector.load %arg14[%c0_49, %c128_50] : memref<16x512xf32, #tpu.memory_space<vmem>>, vector<8x64xf32>
    %64 = arith.truncf %63 : vector<8x64xf32> to vector<8x64xbf16>
    %c0_51 = arith.constant 0 : index
    %c128_52 = arith.constant 128 : index
    %65 = vector.load %arg15[%c0_51, %c128_52] : memref<16x512xf32, #tpu.memory_space<vmem>>, vector<8x64xf32>
    %66 = arith.truncf %65 : vector<8x64xf32> to vector<8x64xbf16>
    %cst_53 = arith.constant dense<0.000000e+00> : vector<8x8xf32>
    %67 = tpu.matmul %62, %64, %cst_53 {dimension_numbers = #tpu.dot_dimension_numbers<[1], [1], [0], [0], [0, 0, 1, 0], [], []>} : vector<8x64xbf16>, vector<8x64xbf16>, vector<8x8xf32> -> vector<8x8xf32>
    %cst_54 = arith.constant dense<0xFF800000> : vector<8xf32>
    %68 = vector.multi_reduction <maximumf>, %67, %cst_54 [1] : vector<8x8xf32> to vector<8xf32>
    %69 = vector.shape_cast %68 : vector<8xf32> to vector<8x1xf32>
    %70 = vector.broadcast %69 : vector<8x1xf32> to vector<8x8xf32>
    %71 = arith.subf %67, %70 : vector<8x8xf32>
    %72 = math.exp %71 : vector<8x8xf32>
    %cst_55 = arith.constant dense<0.000000e+00> : vector<8xf32>
    %73 = vector.multi_reduction <add>, %72, %cst_55 [1] : vector<8x8xf32> to vector<8xf32>
    %74 = vector.shape_cast %73 : vector<8xf32> to vector<8x1xf32>
    %75 = tpu.reciprocal %74 {approx = true} : vector<8x1xf32> -> vector<8x1xf32>
    %76 = vector.broadcast %75 : vector<8x1xf32> to vector<8x8xf32>
    %77 = arith.mulf %72, %76 : vector<8x8xf32>
    %78 = arith.truncf %77 : vector<8x8xf32> to vector<8x8xbf16>
    %cst_56 = arith.constant dense<0.000000e+00> : vector<8x64xf32>
    %79 = tpu.matmul %78, %66, %cst_56 {dimension_numbers = #tpu.dot_dimension_numbers<[1], [0], [0], [1], [0, 0, 1, 1], [], []>} : vector<8x8xbf16>, vector<8x64xbf16>, vector<8x64xf32> -> vector<8x64xf32>
    %c0_57 = arith.constant 0 : index
    %c128_58 = arith.constant 128 : index
    %80 = vector.load %arg16[%c0_57, %c128_58] : memref<16x512xf32, #tpu.memory_space<vmem>>, vector<8x64xf32>
    tpu.vector_store %arg16[%c0_57, %c128_58], %79 {strides = array<i32>} : memref<16x512xf32, #tpu.memory_space<vmem>>, vector<8x64xf32>,
    %c0_59 = arith.constant 0 : index
    %c192 = arith.constant 192 : index
    %81 = vector.load %arg13[%c0_59, %c192] : memref<16x512xf32, #tpu.memory_space<vmem>>, vector<8x64xf32>
    %82 = arith.truncf %81 : vector<8x64xf32> to vector<8x64xbf16>
    %c0_60 = arith.constant 0 : index
    %c192_61 = arith.constant 192 : index
    %83 = vector.load %arg14[%c0_60, %c192_61] : memref<16x512xf32, #tpu.memory_space<vmem>>, vector<8x64xf32>
    %84 = arith.truncf %83 : vector<8x64xf32> to vector<8x64xbf16>
    %c0_62 = arith.constant 0 : index
    %c192_63 = arith.constant 192 : index
    %85 = vector.load %arg15[%c0_62, %c192_63] : memref<16x512xf32, #tpu.memory_space<vmem>>, vector<8x64xf32>
    %86 = arith.truncf %85 : vector<8x64xf32> to vector<8x64xbf16>
    %cst_64 = arith.constant dense<0.000000e+00> : vector<8x8xf32>
    %87 = tpu.matmul %82, %84, %cst_64 {dimension_numbers = #tpu.dot_dimension_numbers<[1], [1], [0], [0], [0, 0, 1, 0], [], []>} : vector<8x64xbf16>, vector<8x64xbf16>, vector<8x8xf32> -> vector<8x8xf32>
    %cst_65 = arith.constant dense<0xFF800000> : vector<8xf32>
    %88 = vector.multi_reduction <maximumf>, %87, %cst_65 [1] : vector<8x8xf32> to vector<8xf32>
    %89 = vector.shape_cast %88 : vector<8xf32> to vector<8x1xf32>
    %90 = vector.broadcast %89 : vector<8x1xf32> to vector<8x8xf32>
    %91 = arith.subf %87, %90 : vector<8x8xf32>
    %92 = math.exp %91 : vector<8x8xf32>
    %cst_66 = arith.constant dense<0.000000e+00> : vector<8xf32>
    %93 = vector.multi_reduction <add>, %92, %cst_66 [1] : vector<8x8xf32> to vector<8xf32>
    %94 = vector.shape_cast %93 : vector<8xf32> to vector<8x1xf32>
    %95 = tpu.reciprocal %94 {approx = true} : vector<8x1xf32> -> vector<8x1xf32>
    %96 = vector.broadcast %95 : vector<8x1xf32> to vector<8x8xf32>
    %97 = arith.mulf %92, %96 : vector<8x8xf32>
    %98 = arith.truncf %97 : vector<8x8xf32> to vector<8x8xbf16>
    %cst_67 = arith.constant dense<0.000000e+00> : vector<8x64xf32>
    %99 = tpu.matmul %98, %86, %cst_67 {dimension_numbers = #tpu.dot_dimension_numbers<[1], [0], [0], [1], [0, 0, 1, 1], [], []>} : vector<8x8xbf16>, vector<8x64xbf16>, vector<8x64xf32> -> vector<8x64xf32>
    %c0_68 = arith.constant 0 : index
    %c192_69 = arith.constant 192 : index
    %100 = vector.load %arg16[%c0_68, %c192_69] : memref<16x512xf32, #tpu.memory_space<vmem>>, vector<8x64xf32>
    tpu.vector_store %arg16[%c0_68, %c192_69], %99 {strides = array<i32>} : memref<16x512xf32, #tpu.memory_space<vmem>>, vector<8x64xf32>,
    %c0_70 = arith.constant 0 : index
    %c256 = arith.constant 256 : index
    %101 = vector.load %arg13[%c0_70, %c256] : memref<16x512xf32, #tpu.memory_space<vmem>>, vector<8x64xf32>
    %102 = arith.truncf %101 : vector<8x64xf32> to vector<8x64xbf16>
    %c0_71 = arith.constant 0 : index
    %c256_72 = arith.constant 256 : index
    %103 = vector.load %arg14[%c0_71, %c256_72] : memref<16x512xf32, #tpu.memory_space<vmem>>, vector<8x64xf32>
    %104 = arith.truncf %103 : vector<8x64xf32> to vector<8x64xbf16>
    %c0_73 = arith.constant 0 : index
    %c256_74 = arith.constant 256 : index
    %105 = vector.load %arg15[%c0_73, %c256_74] : memref<16x512xf32, #tpu.memory_space<vmem>>, vector<8x64xf32>
    %106 = arith.truncf %105 : vector<8x64xf32> to vector<8x64xbf16>
    %cst_75 = arith.constant dense<0.000000e+00> : vector<8x8xf32>
    %107 = tpu.matmul %102, %104, %cst_75 {dimension_numbers = #tpu.dot_dimension_numbers<[1], [1], [0], [0], [0, 0, 1, 0], [], []>} : vector<8x64xbf16>, vector<8x64xbf16>, vector<8x8xf32> -> vector<8x8xf32>
    %cst_76 = arith.constant dense<0xFF800000> : vector<8xf32>
    %108 = vector.multi_reduction <maximumf>, %107, %cst_76 [1] : vector<8x8xf32> to vector<8xf32>
    %109 = vector.shape_cast %108 : vector<8xf32> to vector<8x1xf32>
    %110 = vector.broadcast %109 : vector<8x1xf32> to vector<8x8xf32>
    %111 = arith.subf %107, %110 : vector<8x8xf32>
    %112 = math.exp %111 : vector<8x8xf32>
    %cst_77 = arith.constant dense<0.000000e+00> : vector<8xf32>
    %113 = vector.multi_reduction <add>, %112, %cst_77 [1] : vector<8x8xf32> to vector<8xf32>
    %114 = vector.shape_cast %113 : vector<8xf32> to vector<8x1xf32>
    %115 = tpu.reciprocal %114 {approx = true} : vector<8x1xf32> -> vector<8x1xf32>
    %116 = vector.broadcast %115 : vector<8x1xf32> to vector<8x8xf32>
    %117 = arith.mulf %112, %116 : vector<8x8xf32>
    %118 = arith.truncf %117 : vector<8x8xf32> to vector<8x8xbf16>
    %cst_78 = arith.constant dense<0.000000e+00> : vector<8x64xf32>
    %119 = tpu.matmul %118, %106, %cst_78 {dimension_numbers = #tpu.dot_dimension_numbers<[1], [0], [0], [1], [0, 0, 1, 1], [], []>} : vector<8x8xbf16>, vector<8x64xbf16>, vector<8x64xf32> -> vector<8x64xf32>
    %c0_79 = arith.constant 0 : index
    %c256_80 = arith.constant 256 : index
    %120 = vector.load %arg16[%c0_79, %c256_80] : memref<16x512xf32, #tpu.memory_space<vmem>>, vector<8x64xf32>
    tpu.vector_store %arg16[%c0_79, %c256_80], %119 {strides = array<i32>} : memref<16x512xf32, #tpu.memory_space<vmem>>, vector<8x64xf32>,
    %c0_81 = arith.constant 0 : index
    %c320 = arith.constant 320 : index
    %121 = vector.load %arg13[%c0_81, %c320] : memref<16x512xf32, #tpu.memory_space<vmem>>, vector<8x64xf32>
    %122 = arith.truncf %121 : vector<8x64xf32> to vector<8x64xbf16>
    %c0_82 = arith.constant 0 : index
    %c320_83 = arith.constant 320 : index
    %123 = vector.load %arg14[%c0_82, %c320_83] : memref<16x512xf32, #tpu.memory_space<vmem>>, vector<8x64xf32>
    %124 = arith.truncf %123 : vector<8x64xf32> to vector<8x64xbf16>
    %c0_84 = arith.constant 0 : index
    %c320_85 = arith.constant 320 : index
    %125 = vector.load %arg15[%c0_84, %c320_85] : memref<16x512xf32, #tpu.memory_space<vmem>>, vector<8x64xf32>
    %126 = arith.truncf %125 : vector<8x64xf32> to vector<8x64xbf16>
    %cst_86 = arith.constant dense<0.000000e+00> : vector<8x8xf32>
    %127 = tpu.matmul %122, %124, %cst_86 {dimension_numbers = #tpu.dot_dimension_numbers<[1], [1], [0], [0], [0, 0, 1, 0], [], []>} : vector<8x64xbf16>, vector<8x64xbf16>, vector<8x8xf32> -> vector<8x8xf32>
    %cst_87 = arith.constant dense<0xFF800000> : vector<8xf32>
    %128 = vector.multi_reduction <maximumf>, %127, %cst_87 [1] : vector<8x8xf32> to vector<8xf32>
    %129 = vector.shape_cast %128 : vector<8xf32> to vector<8x1xf32>
    %130 = vector.broadcast %129 : vector<8x1xf32> to vector<8x8xf32>
    %131 = arith.subf %127, %130 : vector<8x8xf32>
    %132 = math.exp %131 : vector<8x8xf32>
    %cst_88 = arith.constant dense<0.000000e+00> : vector<8xf32>
    %133 = vector.multi_reduction <add>, %132, %cst_88 [1] : vector<8x8xf32> to vector<8xf32>
    %134 = vector.shape_cast %133 : vector<8xf32> to vector<8x1xf32>
    %135 = tpu.reciprocal %134 {approx = true} : vector<8x1xf32> -> vector<8x1xf32>
    %136 = vector.broadcast %135 : vector<8x1xf32> to vector<8x8xf32>
    %137 = arith.mulf %132, %136 : vector<8x8xf32>
    %138 = arith.truncf %137 : vector<8x8xf32> to vector<8x8xbf16>
    %cst_89 = arith.constant dense<0.000000e+00> : vector<8x64xf32>
    %139 = tpu.matmul %138, %126, %cst_89 {dimension_numbers = #tpu.dot_dimension_numbers<[1], [0], [0], [1], [0, 0, 1, 1], [], []>} : vector<8x8xbf16>, vector<8x64xbf16>, vector<8x64xf32> -> vector<8x64xf32>
    %c0_90 = arith.constant 0 : index
    %c320_91 = arith.constant 320 : index
    %140 = vector.load %arg16[%c0_90, %c320_91] : memref<16x512xf32, #tpu.memory_space<vmem>>, vector<8x64xf32>
    tpu.vector_store %arg16[%c0_90, %c320_91], %139 {strides = array<i32>} : memref<16x512xf32, #tpu.memory_space<vmem>>, vector<8x64xf32>,
    %c0_92 = arith.constant 0 : index
    %c384 = arith.constant 384 : index
    %141 = vector.load %arg13[%c0_92, %c384] : memref<16x512xf32, #tpu.memory_space<vmem>>, vector<8x64xf32>
    %142 = arith.truncf %141 : vector<8x64xf32> to vector<8x64xbf16>
    %c0_93 = arith.constant 0 : index
    %c384_94 = arith.constant 384 : index
    %143 = vector.load %arg14[%c0_93, %c384_94] : memref<16x512xf32, #tpu.memory_space<vmem>>, vector<8x64xf32>
    %144 = arith.truncf %143 : vector<8x64xf32> to vector<8x64xbf16>
    %c0_95 = arith.constant 0 : index
    %c384_96 = arith.constant 384 : index
    %145 = vector.load %arg15[%c0_95, %c384_96] : memref<16x512xf32, #tpu.memory_space<vmem>>, vector<8x64xf32>
    %146 = arith.truncf %145 : vector<8x64xf32> to vector<8x64xbf16>
    %cst_97 = arith.constant dense<0.000000e+00> : vector<8x8xf32>
    %147 = tpu.matmul %142, %144, %cst_97 {dimension_numbers = #tpu.dot_dimension_numbers<[1], [1], [0], [0], [0, 0, 1, 0], [], []>} : vector<8x64xbf16>, vector<8x64xbf16>, vector<8x8xf32> -> vector<8x8xf32>
    %cst_98 = arith.constant dense<0xFF800000> : vector<8xf32>
    %148 = vector.multi_reduction <maximumf>, %147, %cst_98 [1] : vector<8x8xf32> to vector<8xf32>
    %149 = vector.shape_cast %148 : vector<8xf32> to vector<8x1xf32>
    %150 = vector.broadcast %149 : vector<8x1xf32> to vector<8x8xf32>
    %151 = arith.subf %147, %150 : vector<8x8xf32>
    %152 = math.exp %151 : vector<8x8xf32>
    %cst_99 = arith.constant dense<0.000000e+00> : vector<8xf32>
    %153 = vector.multi_reduction <add>, %152, %cst_99 [1] : vector<8x8xf32> to vector<8xf32>
    %154 = vector.shape_cast %153 : vector<8xf32> to vector<8x1xf32>
    %155 = tpu.reciprocal %154 {approx = true} : vector<8x1xf32> -> vector<8x1xf32>
    %156 = vector.broadcast %155 : vector<8x1xf32> to vector<8x8xf32>
    %157 = arith.mulf %152, %156 : vector<8x8xf32>
    %158 = arith.truncf %157 : vector<8x8xf32> to vector<8x8xbf16>
    %cst_100 = arith.constant dense<0.000000e+00> : vector<8x64xf32>
    %159 = tpu.matmul %158, %146, %cst_100 {dimension_numbers = #tpu.dot_dimension_numbers<[1], [0], [0], [1], [0, 0, 1, 1], [], []>} : vector<8x8xbf16>, vector<8x64xbf16>, vector<8x64xf32> -> vector<8x64xf32>
    %c0_101 = arith.constant 0 : index
    %c384_102 = arith.constant 384 : index
    %160 = vector.load %arg16[%c0_101, %c384_102] : memref<16x512xf32, #tpu.memory_space<vmem>>, vector<8x64xf32>
    tpu.vector_store %arg16[%c0_101, %c384_102], %159 {strides = array<i32>} : memref<16x512xf32, #tpu.memory_space<vmem>>, vector<8x64xf32>,
    %c0_103 = arith.constant 0 : index
    %c448 = arith.constant 448 : index
    %161 = vector.load %arg13[%c0_103, %c448] : memref<16x512xf32, #tpu.memory_space<vmem>>, vector<8x64xf32>
    %162 = arith.truncf %161 : vector<8x64xf32> to vector<8x64xbf16>
    %c0_104 = arith.constant 0 : index
    %c448_105 = arith.constant 448 : index
    %163 = vector.load %arg14[%c0_104, %c448_105] : memref<16x512xf32, #tpu.memory_space<vmem>>, vector<8x64xf32>
    %164 = arith.truncf %163 : vector<8x64xf32> to vector<8x64xbf16>
    %c0_106 = arith.constant 0 : index
    %c448_107 = arith.constant 448 : index
    %165 = vector.load %arg15[%c0_106, %c448_107] : memref<16x512xf32, #tpu.memory_space<vmem>>, vector<8x64xf32>
    %166 = arith.truncf %165 : vector<8x64xf32> to vector<8x64xbf16>
    %cst_108 = arith.constant dense<0.000000e+00> : vector<8x8xf32>
    %167 = tpu.matmul %162, %164, %cst_108 {dimension_numbers = #tpu.dot_dimension_numbers<[1], [1], [0], [0], [0, 0, 1, 0], [], []>} : vector<8x64xbf16>, vector<8x64xbf16>, vector<8x8xf32> -> vector<8x8xf32>
    %cst_109 = arith.constant dense<0xFF800000> : vector<8xf32>
    %168 = vector.multi_reduction <maximumf>, %167, %cst_109 [1] : vector<8x8xf32> to vector<8xf32>
    %169 = vector.shape_cast %168 : vector<8xf32> to vector<8x1xf32>
    %170 = vector.broadcast %169 : vector<8x1xf32> to vector<8x8xf32>
    %171 = arith.subf %167, %170 : vector<8x8xf32>
    %172 = math.exp %171 : vector<8x8xf32>
    %cst_110 = arith.constant dense<0.000000e+00> : vector<8xf32>
    %173 = vector.multi_reduction <add>, %172, %cst_110 [1] : vector<8x8xf32> to vector<8xf32>
    %174 = vector.shape_cast %173 : vector<8xf32> to vector<8x1xf32>
    %175 = tpu.reciprocal %174 {approx = true} : vector<8x1xf32> -> vector<8x1xf32>
    %176 = vector.broadcast %175 : vector<8x1xf32> to vector<8x8xf32>
    %177 = arith.mulf %172, %176 : vector<8x8xf32>
    %178 = arith.truncf %177 : vector<8x8xf32> to vector<8x8xbf16>
    %cst_111 = arith.constant dense<0.000000e+00> : vector<8x64xf32>
    %179 = tpu.matmul %178, %166, %cst_111 {dimension_numbers = #tpu.dot_dimension_numbers<[1], [0], [0], [1], [0, 0, 1, 1], [], []>} : vector<8x8xbf16>, vector<8x64xbf16>, vector<8x64xf32> -> vector<8x64xf32>
    %c0_112 = arith.constant 0 : index
    %c448_113 = arith.constant 448 : index
    %180 = vector.load %arg16[%c0_112, %c448_113] : memref<16x512xf32, #tpu.memory_space<vmem>>, vector<8x64xf32>
    tpu.vector_store %arg16[%c0_112, %c448_113], %179 {strides = array<i32>} : memref<16x512xf32, #tpu.memory_space<vmem>>, vector<8x64xf32>,
    %c8 = arith.constant 8 : index
    %c0_114 = arith.constant 0 : index
    %181 = vector.load %arg13[%c8, %c0_114] : memref<16x512xf32, #tpu.memory_space<vmem>>, vector<8x64xf32>
    %182 = arith.truncf %181 : vector<8x64xf32> to vector<8x64xbf16>
    %c8_115 = arith.constant 8 : index
    %c0_116 = arith.constant 0 : index
    %183 = vector.load %arg14[%c8_115, %c0_116] : memref<16x512xf32, #tpu.memory_space<vmem>>, vector<8x64xf32>
    %184 = arith.truncf %183 : vector<8x64xf32> to vector<8x64xbf16>
    %c8_117 = arith.constant 8 : index
    %c0_118 = arith.constant 0 : index
    %185 = vector.load %arg15[%c8_117, %c0_118] : memref<16x512xf32, #tpu.memory_space<vmem>>, vector<8x64xf32>
    %186 = arith.truncf %185 : vector<8x64xf32> to vector<8x64xbf16>
    %cst_119 = arith.constant dense<0.000000e+00> : vector<8x8xf32>
    %187 = tpu.matmul %182, %184, %cst_119 {dimension_numbers = #tpu.dot_dimension_numbers<[1], [1], [0], [0], [0, 0, 1, 0], [], []>} : vector<8x64xbf16>, vector<8x64xbf16>, vector<8x8xf32> -> vector<8x8xf32>
    %cst_120 = arith.constant dense<0xFF800000> : vector<8xf32>
    %188 = vector.multi_reduction <maximumf>, %187, %cst_120 [1] : vector<8x8xf32> to vector<8xf32>
    %189 = vector.shape_cast %188 : vector<8xf32> to vector<8x1xf32>
    %190 = vector.broadcast %189 : vector<8x1xf32> to vector<8x8xf32>
    %191 = arith.subf %187, %190 : vector<8x8xf32>
    %192 = math.exp %191 : vector<8x8xf32>
    %cst_121 = arith.constant dense<0.000000e+00> : vector<8xf32>
    %193 = vector.multi_reduction <add>, %192, %cst_121 [1] : vector<8x8xf32> to vector<8xf32>
    %194 = vector.shape_cast %193 : vector<8xf32> to vector<8x1xf32>
    %195 = tpu.reciprocal %194 {approx = true} : vector<8x1xf32> -> vector<8x1xf32>
    %196 = vector.broadcast %195 : vector<8x1xf32> to vector<8x8xf32>
    %197 = arith.mulf %192, %196 : vector<8x8xf32>
    %198 = arith.truncf %197 : vector<8x8xf32> to vector<8x8xbf16>
    %cst_122 = arith.constant dense<0.000000e+00> : vector<8x64xf32>
    %199 = tpu.matmul %198, %186, %cst_122 {dimension_numbers = #tpu.dot_dimension_numbers<[1], [0], [0], [1], [0, 0, 1, 1], [], []>} : vector<8x8xbf16>, vector<8x64xbf16>, vector<8x64xf32> -> vector<8x64xf32>
    %c8_123 = arith.constant 8 : index
    %c0_124 = arith.constant 0 : index
    %200 = vector.load %arg16[%c8_123, %c0_124] : memref<16x512xf32, #tpu.memory_space<vmem>>, vector<8x64xf32>
    tpu.vector_store %arg16[%c8_123, %c0_124], %199 {strides = array<i32>} : memref<16x512xf32, #tpu.memory_space<vmem>>, vector<8x64xf32>,
    %c8_125 = arith.constant 8 : index
    %c64_126 = arith.constant 64 : index
    %201 = vector.load %arg13[%c8_125, %c64_126] : memref<16x512xf32, #tpu.memory_space<vmem>>, vector<8x64xf32>
    %202 = arith.truncf %201 : vector<8x64xf32> to vector<8x64xbf16>
    %c8_127 = arith.constant 8 : index
    %c64_128 = arith.constant 64 : index
    %203 = vector.load %arg14[%c8_127, %c64_128] : memref<16x512xf32, #tpu.memory_space<vmem>>, vector<8x64xf32>
    %204 = arith.truncf %203 : vector<8x64xf32> to vector<8x64xbf16>
    %c8_129 = arith.constant 8 : index
    %c64_130 = arith.constant 64 : index
    %205 = vector.load %arg15[%c8_129, %c64_130] : memref<16x512xf32, #tpu.memory_space<vmem>>, vector<8x64xf32>
    %206 = arith.truncf %205 : vector<8x64xf32> to vector<8x64xbf16>
    %cst_131 = arith.constant dense<0.000000e+00> : vector<8x8xf32>
    %207 = tpu.matmul %202, %204, %cst_131 {dimension_numbers = #tpu.dot_dimension_numbers<[1], [1], [0], [0], [0, 0, 1, 0], [], []>} : vector<8x64xbf16>, vector<8x64xbf16>, vector<8x8xf32> -> vector<8x8xf32>
    %cst_132 = arith.constant dense<0xFF800000> : vector<8xf32>
    %208 = vector.multi_reduction <maximumf>, %207, %cst_132 [1] : vector<8x8xf32> to vector<8xf32>
    %209 = vector.shape_cast %208 : vector<8xf32> to vector<8x1xf32>
    %210 = vector.broadcast %209 : vector<8x1xf32> to vector<8x8xf32>
    %211 = arith.subf %207, %210 : vector<8x8xf32>
    %212 = math.exp %211 : vector<8x8xf32>
    %cst_133 = arith.constant dense<0.000000e+00> : vector<8xf32>
    %213 = vector.multi_reduction <add>, %212, %cst_133 [1] : vector<8x8xf32> to vector<8xf32>
    %214 = vector.shape_cast %213 : vector<8xf32> to vector<8x1xf32>
    %215 = tpu.reciprocal %214 {approx = true} : vector<8x1xf32> -> vector<8x1xf32>
    %216 = vector.broadcast %215 : vector<8x1xf32> to vector<8x8xf32>
    %217 = arith.mulf %212, %216 : vector<8x8xf32>
    %218 = arith.truncf %217 : vector<8x8xf32> to vector<8x8xbf16>
    %cst_134 = arith.constant dense<0.000000e+00> : vector<8x64xf32>
    %219 = tpu.matmul %218, %206, %cst_134 {dimension_numbers = #tpu.dot_dimension_numbers<[1], [0], [0], [1], [0, 0, 1, 1], [], []>} : vector<8x8xbf16>, vector<8x64xbf16>, vector<8x64xf32> -> vector<8x64xf32>
    %c8_135 = arith.constant 8 : index
    %c64_136 = arith.constant 64 : index
    %220 = vector.load %arg16[%c8_135, %c64_136] : memref<16x512xf32, #tpu.memory_space<vmem>>, vector<8x64xf32>
    tpu.vector_store %arg16[%c8_135, %c64_136], %219 {strides = array<i32>} : memref<16x512xf32, #tpu.memory_space<vmem>>, vector<8x64xf32>,
    %c8_137 = arith.constant 8 : index
    %c128_138 = arith.constant 128 : index
    %221 = vector.load %arg13[%c8_137, %c128_138] : memref<16x512xf32, #tpu.memory_space<vmem>>, vector<8x64xf32>
    %222 = arith.truncf %221 : vector<8x64xf32> to vector<8x64xbf16>
    %c8_139 = arith.constant 8 : index
    %c128_140 = arith.constant 128 : index
    %223 = vector.load %arg14[%c8_139, %c128_140] : memref<16x512xf32, #tpu.memory_space<vmem>>, vector<8x64xf32>
    %224 = arith.truncf %223 : vector<8x64xf32> to vector<8x64xbf16>
    %c8_141 = arith.constant 8 : index
    %c128_142 = arith.constant 128 : index
    %225 = vector.load %arg15[%c8_141, %c128_142] : memref<16x512xf32, #tpu.memory_space<vmem>>, vector<8x64xf32>
    %226 = arith.truncf %225 : vector<8x64xf32> to vector<8x64xbf16>
    %cst_143 = arith.constant dense<0.000000e+00> : vector<8x8xf32>
    %227 = tpu.matmul %222, %224, %cst_143 {dimension_numbers = #tpu.dot_dimension_numbers<[1], [1], [0], [0], [0, 0, 1, 0], [], []>} : vector<8x64xbf16>, vector<8x64xbf16>, vector<8x8xf32> -> vector<8x8xf32>
    %cst_144 = arith.constant dense<0xFF800000> : vector<8xf32>
    %228 = vector.multi_reduction <maximumf>, %227, %cst_144 [1] : vector<8x8xf32> to vector<8xf32>
    %229 = vector.shape_cast %228 : vector<8xf32> to vector<8x1xf32>
    %230 = vector.broadcast %229 : vector<8x1xf32> to vector<8x8xf32>
    %231 = arith.subf %227, %230 : vector<8x8xf32>
    %232 = math.exp %231 : vector<8x8xf32>
    %cst_145 = arith.constant dense<0.000000e+00> : vector<8xf32>
    %233 = vector.multi_reduction <add>, %232, %cst_145 [1] : vector<8x8xf32> to vector<8xf32>
    %234 = vector.shape_cast %233 : vector<8xf32> to vector<8x1xf32>
    %235 = tpu.reciprocal %234 {approx = true} : vector<8x1xf32> -> vector<8x1xf32>
    %236 = vector.broadcast %235 : vector<8x1xf32> to vector<8x8xf32>
    %237 = arith.mulf %232, %236 : vector<8x8xf32>
    %238 = arith.truncf %237 : vector<8x8xf32> to vector<8x8xbf16>
    %cst_146 = arith.constant dense<0.000000e+00> : vector<8x64xf32>
    %239 = tpu.matmul %238, %226, %cst_146 {dimension_numbers = #tpu.dot_dimension_numbers<[1], [0], [0], [1], [0, 0, 1, 1], [], []>} : vector<8x8xbf16>, vector<8x64xbf16>, vector<8x64xf32> -> vector<8x64xf32>
    %c8_147 = arith.constant 8 : index
    %c128_148 = arith.constant 128 : index
    %240 = vector.load %arg16[%c8_147, %c128_148] : memref<16x512xf32, #tpu.memory_space<vmem>>, vector<8x64xf32>
    tpu.vector_store %arg16[%c8_147, %c128_148], %239 {strides = array<i32>} : memref<16x512xf32, #tpu.memory_space<vmem>>, vector<8x64xf32>,
    %c8_149 = arith.constant 8 : index
    %c192_150 = arith.constant 192 : index
    %241 = vector.load %arg13[%c8_149, %c192_150] : memref<16x512xf32, #tpu.memory_space<vmem>>, vector<8x64xf32>
    %242 = arith.truncf %241 : vector<8x64xf32> to vector<8x64xbf16>
    %c8_151 = arith.constant 8 : index
    %c192_152 = arith.constant 192 : index
    %243 = vector.load %arg14[%c8_151, %c192_152] : memref<16x512xf32, #tpu.memory_space<vmem>>, vector<8x64xf32>
    %244 = arith.truncf %243 : vector<8x64xf32> to vector<8x64xbf16>
    %c8_153 = arith.constant 8 : index
    %c192_154 = arith.constant 192 : index
    %245 = vector.load %arg15[%c8_153, %c192_154] : memref<16x512xf32, #tpu.memory_space<vmem>>, vector<8x64xf32>
    %246 = arith.truncf %245 : vector<8x64xf32> to vector<8x64xbf16>
    %cst_155 = arith.constant dense<0.000000e+00> : vector<8x8xf32>
    %247 = tpu.matmul %242, %244, %cst_155 {dimension_numbers = #tpu.dot_dimension_numbers<[1], [1], [0], [0], [0, 0, 1, 0], [], []>} : vector<8x64xbf16>, vector<8x64xbf16>, vector<8x8xf32> -> vector<8x8xf32>
    %cst_156 = arith.constant dense<0xFF800000> : vector<8xf32>
    %248 = vector.multi_reduction <maximumf>, %247, %cst_156 [1] : vector<8x8xf32> to vector<8xf32>
    %249 = vector.shape_cast %248 : vector<8xf32> to vector<8x1xf32>
    %250 = vector.broadcast %249 : vector<8x1xf32> to vector<8x8xf32>
    %251 = arith.subf %247, %250 : vector<8x8xf32>
    %252 = math.exp %251 : vector<8x8xf32>
    %cst_157 = arith.constant dense<0.000000e+00> : vector<8xf32>
    %253 = vector.multi_reduction <add>, %252, %cst_157 [1] : vector<8x8xf32> to vector<8xf32>
    %254 = vector.shape_cast %253 : vector<8xf32> to vector<8x1xf32>
    %255 = tpu.reciprocal %254 {approx = true} : vector<8x1xf32> -> vector<8x1xf32>
    %256 = vector.broadcast %255 : vector<8x1xf32> to vector<8x8xf32>
    %257 = arith.mulf %252, %256 : vector<8x8xf32>
    %258 = arith.truncf %257 : vector<8x8xf32> to vector<8x8xbf16>
    %cst_158 = arith.constant dense<0.000000e+00> : vector<8x64xf32>
    %259 = tpu.matmul %258, %246, %cst_158 {dimension_numbers = #tpu.dot_dimension_numbers<[1], [0], [0], [1], [0, 0, 1, 1], [], []>} : vector<8x8xbf16>, vector<8x64xbf16>, vector<8x64xf32> -> vector<8x64xf32>
    %c8_159 = arith.constant 8 : index
    %c192_160 = arith.constant 192 : index
    %260 = vector.load %arg16[%c8_159, %c192_160] : memref<16x512xf32, #tpu.memory_space<vmem>>, vector<8x64xf32>
    tpu.vector_store %arg16[%c8_159, %c192_160], %259 {strides = array<i32>} : memref<16x512xf32, #tpu.memory_space<vmem>>, vector<8x64xf32>,
    %c8_161 = arith.constant 8 : index
    %c256_162 = arith.constant 256 : index
    %261 = vector.load %arg13[%c8_161, %c256_162] : memref<16x512xf32, #tpu.memory_space<vmem>>, vector<8x64xf32>
    %262 = arith.truncf %261 : vector<8x64xf32> to vector<8x64xbf16>
    %c8_163 = arith.constant 8 : index
    %c256_164 = arith.constant 256 : index
    %263 = vector.load %arg14[%c8_163, %c256_164] : memref<16x512xf32, #tpu.memory_space<vmem>>, vector<8x64xf32>
    %264 = arith.truncf %263 : vector<8x64xf32> to vector<8x64xbf16>
    %c8_165 = arith.constant 8 : index
    %c256_166 = arith.constant 256 : index
    %265 = vector.load %arg15[%c8_165, %c256_166] : memref<16x512xf32, #tpu.memory_space<vmem>>, vector<8x64xf32>
    %266 = arith.truncf %265 : vector<8x64xf32> to vector<8x64xbf16>
    %cst_167 = arith.constant dense<0.000000e+00> : vector<8x8xf32>
    %267 = tpu.matmul %262, %264, %cst_167 {dimension_numbers = #tpu.dot_dimension_numbers<[1], [1], [0], [0], [0, 0, 1, 0], [], []>} : vector<8x64xbf16>, vector<8x64xbf16>, vector<8x8xf32> -> vector<8x8xf32>
    %cst_168 = arith.constant dense<0xFF800000> : vector<8xf32>
    %268 = vector.multi_reduction <maximumf>, %267, %cst_168 [1] : vector<8x8xf32> to vector<8xf32>
    %269 = vector.shape_cast %268 : vector<8xf32> to vector<8x1xf32>
    %270 = vector.broadcast %269 : vector<8x1xf32> to vector<8x8xf32>
    %271 = arith.subf %267, %270 : vector<8x8xf32>
    %272 = math.exp %271 : vector<8x8xf32>
    %cst_169 = arith.constant dense<0.000000e+00> : vector<8xf32>
    %273 = vector.multi_reduction <add>, %272, %cst_169 [1] : vector<8x8xf32> to vector<8xf32>
    %274 = vector.shape_cast %273 : vector<8xf32> to vector<8x1xf32>
    %275 = tpu.reciprocal %274 {approx = true} : vector<8x1xf32> -> vector<8x1xf32>
    %276 = vector.broadcast %275 : vector<8x1xf32> to vector<8x8xf32>
    %277 = arith.mulf %272, %276 : vector<8x8xf32>
    %278 = arith.truncf %277 : vector<8x8xf32> to vector<8x8xbf16>
    %cst_170 = arith.constant dense<0.000000e+00> : vector<8x64xf32>
    %279 = tpu.matmul %278, %266, %cst_170 {dimension_numbers = #tpu.dot_dimension_numbers<[1], [0], [0], [1], [0, 0, 1, 1], [], []>} : vector<8x8xbf16>, vector<8x64xbf16>, vector<8x64xf32> -> vector<8x64xf32>
    %c8_171 = arith.constant 8 : index
    %c256_172 = arith.constant 256 : index
    %280 = vector.load %arg16[%c8_171, %c256_172] : memref<16x512xf32, #tpu.memory_space<vmem>>, vector<8x64xf32>
    tpu.vector_store %arg16[%c8_171, %c256_172], %279 {strides = array<i32>} : memref<16x512xf32, #tpu.memory_space<vmem>>, vector<8x64xf32>,
    %c8_173 = arith.constant 8 : index
    %c320_174 = arith.constant 320 : index
    %281 = vector.load %arg13[%c8_173, %c320_174] : memref<16x512xf32, #tpu.memory_space<vmem>>, vector<8x64xf32>
    %282 = arith.truncf %281 : vector<8x64xf32> to vector<8x64xbf16>
    %c8_175 = arith.constant 8 : index
    %c320_176 = arith.constant 320 : index
    %283 = vector.load %arg14[%c8_175, %c320_176] : memref<16x512xf32, #tpu.memory_space<vmem>>, vector<8x64xf32>
    %284 = arith.truncf %283 : vector<8x64xf32> to vector<8x64xbf16>
    %c8_177 = arith.constant 8 : index
    %c320_178 = arith.constant 320 : index
    %285 = vector.load %arg15[%c8_177, %c320_178] : memref<16x512xf32, #tpu.memory_space<vmem>>, vector<8x64xf32>
    %286 = arith.truncf %285 : vector<8x64xf32> to vector<8x64xbf16>
    %cst_179 = arith.constant dense<0.000000e+00> : vector<8x8xf32>
    %287 = tpu.matmul %282, %284, %cst_179 {dimension_numbers = #tpu.dot_dimension_numbers<[1], [1], [0], [0], [0, 0, 1, 0], [], []>} : vector<8x64xbf16>, vector<8x64xbf16>, vector<8x8xf32> -> vector<8x8xf32>
    %cst_180 = arith.constant dense<0xFF800000> : vector<8xf32>
    %288 = vector.multi_reduction <maximumf>, %287, %cst_180 [1] : vector<8x8xf32> to vector<8xf32>
    %289 = vector.shape_cast %288 : vector<8xf32> to vector<8x1xf32>
    %290 = vector.broadcast %289 : vector<8x1xf32> to vector<8x8xf32>
    %291 = arith.subf %287, %290 : vector<8x8xf32>
    %292 = math.exp %291 : vector<8x8xf32>
    %cst_181 = arith.constant dense<0.000000e+00> : vector<8xf32>
    %293 = vector.multi_reduction <add>, %292, %cst_181 [1] : vector<8x8xf32> to vector<8xf32>
    %294 = vector.shape_cast %293 : vector<8xf32> to vector<8x1xf32>
    %295 = tpu.reciprocal %294 {approx = true} : vector<8x1xf32> -> vector<8x1xf32>
    %296 = vector.broadcast %295 : vector<8x1xf32> to vector<8x8xf32>
    %297 = arith.mulf %292, %296 : vector<8x8xf32>
    %298 = arith.truncf %297 : vector<8x8xf32> to vector<8x8xbf16>
    %cst_182 = arith.constant dense<0.000000e+00> : vector<8x64xf32>
    %299 = tpu.matmul %298, %286, %cst_182 {dimension_numbers = #tpu.dot_dimension_numbers<[1], [0], [0], [1], [0, 0, 1, 1], [], []>} : vector<8x8xbf16>, vector<8x64xbf16>, vector<8x64xf32> -> vector<8x64xf32>
    %c8_183 = arith.constant 8 : index
    %c320_184 = arith.constant 320 : index
    %300 = vector.load %arg16[%c8_183, %c320_184] : memref<16x512xf32, #tpu.memory_space<vmem>>, vector<8x64xf32>
    tpu.vector_store %arg16[%c8_183, %c320_184], %299 {strides = array<i32>} : memref<16x512xf32, #tpu.memory_space<vmem>>, vector<8x64xf32>,
    %c8_185 = arith.constant 8 : index
    %c384_186 = arith.constant 384 : index
    %301 = vector.load %arg13[%c8_185, %c384_186] : memref<16x512xf32, #tpu.memory_space<vmem>>, vector<8x64xf32>
    %302 = arith.truncf %301 : vector<8x64xf32> to vector<8x64xbf16>
    %c8_187 = arith.constant 8 : index
    %c384_188 = arith.constant 384 : index
    %303 = vector.load %arg14[%c8_187, %c384_188] : memref<16x512xf32, #tpu.memory_space<vmem>>, vector<8x64xf32>
    %304 = arith.truncf %303 : vector<8x64xf32> to vector<8x64xbf16>
    %c8_189 = arith.constant 8 : index
    %c384_190 = arith.constant 384 : index
    %305 = vector.load %arg15[%c8_189, %c384_190] : memref<16x512xf32, #tpu.memory_space<vmem>>, vector<8x64xf32>
    %306 = arith.truncf %305 : vector<8x64xf32> to vector<8x64xbf16>
    %cst_191 = arith.constant dense<0.000000e+00> : vector<8x8xf32>
    %307 = tpu.matmul %302, %304, %cst_191 {dimension_numbers = #tpu.dot_dimension_numbers<[1], [1], [0], [0], [0, 0, 1, 0], [], []>} : vector<8x64xbf16>, vector<8x64xbf16>, vector<8x8xf32> -> vector<8x8xf32>
    %cst_192 = arith.constant dense<0xFF800000> : vector<8xf32>
    %308 = vector.multi_reduction <maximumf>, %307, %cst_192 [1] : vector<8x8xf32> to vector<8xf32>
    %309 = vector.shape_cast %308 : vector<8xf32> to vector<8x1xf32>
    %310 = vector.broadcast %309 : vector<8x1xf32> to vector<8x8xf32>
    %311 = arith.subf %307, %310 : vector<8x8xf32>
    %312 = math.exp %311 : vector<8x8xf32>
    %cst_193 = arith.constant dense<0.000000e+00> : vector<8xf32>
    %313 = vector.multi_reduction <add>, %312, %cst_193 [1] : vector<8x8xf32> to vector<8xf32>
    %314 = vector.shape_cast %313 : vector<8xf32> to vector<8x1xf32>
    %315 = tpu.reciprocal %314 {approx = true} : vector<8x1xf32> -> vector<8x1xf32>
    %316 = vector.broadcast %315 : vector<8x1xf32> to vector<8x8xf32>
    %317 = arith.mulf %312, %316 : vector<8x8xf32>
    %318 = arith.truncf %317 : vector<8x8xf32> to vector<8x8xbf16>
    %cst_194 = arith.constant dense<0.000000e+00> : vector<8x64xf32>
    %319 = tpu.matmul %318, %306, %cst_194 {dimension_numbers = #tpu.dot_dimension_numbers<[1], [0], [0], [1], [0, 0, 1, 1], [], []>} : vector<8x8xbf16>, vector<8x64xbf16>, vector<8x64xf32> -> vector<8x64xf32>
    %c8_195 = arith.constant 8 : index
    %c384_196 = arith.constant 384 : index
    %320 = vector.load %arg16[%c8_195, %c384_196] : memref<16x512xf32, #tpu.memory_space<vmem>>, vector<8x64xf32>
    tpu.vector_store %arg16[%c8_195, %c384_196], %319 {strides = array<i32>} : memref<16x512xf32, #tpu.memory_space<vmem>>, vector<8x64xf32>,
    %c8_197 = arith.constant 8 : index
    %c448_198 = arith.constant 448 : index
    %321 = vector.load %arg13[%c8_197, %c448_198] : memref<16x512xf32, #tpu.memory_space<vmem>>, vector<8x64xf32>
    %322 = arith.truncf %321 : vector<8x64xf32> to vector<8x64xbf16>
    %c8_199 = arith.constant 8 : index
    %c448_200 = arith.constant 448 : index
    %323 = vector.load %arg14[%c8_199, %c448_200] : memref<16x512xf32, #tpu.memory_space<vmem>>, vector<8x64xf32>
    %324 = arith.truncf %323 : vector<8x64xf32> to vector<8x64xbf16>
    %c8_201 = arith.constant 8 : index
    %c448_202 = arith.constant 448 : index
    %325 = vector.load %arg15[%c8_201, %c448_202] : memref<16x512xf32, #tpu.memory_space<vmem>>, vector<8x64xf32>
    %326 = arith.truncf %325 : vector<8x64xf32> to vector<8x64xbf16>
    %cst_203 = arith.constant dense<0.000000e+00> : vector<8x8xf32>
    %327 = tpu.matmul %322, %324, %cst_203 {dimension_numbers = #tpu.dot_dimension_numbers<[1], [1], [0], [0], [0, 0, 1, 0], [], []>} : vector<8x64xbf16>, vector<8x64xbf16>, vector<8x8xf32> -> vector<8x8xf32>
    %cst_204 = arith.constant dense<0xFF800000> : vector<8xf32>
    %328 = vector.multi_reduction <maximumf>, %327, %cst_204 [1] : vector<8x8xf32> to vector<8xf32>
    %329 = vector.shape_cast %328 : vector<8xf32> to vector<8x1xf32>
    %330 = vector.broadcast %329 : vector<8x1xf32> to vector<8x8xf32>
    %331 = arith.subf %327, %330 : vector<8x8xf32>
    %332 = math.exp %331 : vector<8x8xf32>
    %cst_205 = arith.constant dense<0.000000e+00> : vector<8xf32>
    %333 = vector.multi_reduction <add>, %332, %cst_205 [1] : vector<8x8xf32> to vector<8xf32>
    %334 = vector.shape_cast %333 : vector<8xf32> to vector<8x1xf32>
    %335 = tpu.reciprocal %334 {approx = true} : vector<8x1xf32> -> vector<8x1xf32>
    %336 = vector.broadcast %335 : vector<8x1xf32> to vector<8x8xf32>
    %337 = arith.mulf %332, %336 : vector<8x8xf32>
    %338 = arith.truncf %337 : vector<8x8xf32> to vector<8x8xbf16>
    %cst_206 = arith.constant dense<0.000000e+00> : vector<8x64xf32>
    %339 = tpu.matmul %338, %326, %cst_206 {dimension_numbers = #tpu.dot_dimension_numbers<[1], [0], [0], [1], [0, 0, 1, 1], [], []>} : vector<8x8xbf16>, vector<8x64xbf16>, vector<8x64xf32> -> vector<8x64xf32>
    %c8_207 = arith.constant 8 : index
    %c448_208 = arith.constant 448 : index
    %340 = vector.load %arg16[%c8_207, %c448_208] : memref<16x512xf32, #tpu.memory_space<vmem>>, vector<8x64xf32>
    tpu.vector_store %arg16[%c8_207, %c448_208], %339 {strides = array<i32>} : memref<16x512xf32, #tpu.memory_space<vmem>>, vector<8x64xf32>,
    %c0_209 = arith.constant 0 : index
    %c0_210 = arith.constant 0 : index
    %341 = vector.load %arg16[%c0_209, %c0_210] : memref<16x512xf32, #tpu.memory_space<vmem>>, vector<16x512xf32>
    %342 = arith.truncf %341 : vector<16x512xf32> to vector<16x512xbf16>
    %c0_211 = arith.constant 0 : index
    %c0_212 = arith.constant 0 : index
    %343 = vector.load %arg10[%c0_211, %c0_212] : memref<512x512xbf16, #tpu.memory_space<vmem>>, vector<512x512xbf16>
    %cst_213 = arith.constant dense<0.000000e+00> : vector<16x512xf32>
    %344 = tpu.matmul %342, %343, %cst_213 {dimension_numbers = #tpu.dot_dimension_numbers<[1], [0], [0], [1], [0, 0, 1, 1], [], []>} : vector<16x512xbf16>, vector<512x512xbf16>, vector<16x512xf32> -> vector<16x512xf32>
    %c0_214 = arith.constant 0 : index
    %c0_215 = arith.constant 0 : index
    %345 = vector.load %arg11[%c0_214, %c0_215] : memref<1x512xf32, #tpu.memory_space<vmem>>, vector<1x512xf32>
    %346 = vector.broadcast %345 : vector<1x512xf32> to vector<16x512xf32>
    %347 = arith.addf %344, %346 : vector<16x512xf32>
    %c0_216 = arith.constant 0 : index
    %c0_217 = arith.constant 0 : index
    %348 = vector.load %arg12[%c0_216, %c0_217] : memref<16x512xf32, #tpu.memory_space<vmem>>, vector<16x512xf32>
    tpu.vector_store %arg12[%c0_216, %c0_217], %347 {strides = array<i32>} : memref<16x512xf32, #tpu.memory_space<vmem>>, vector<16x512xf32>,
    return
  }
  func.func @transform_0(%arg0: i32) -> (i32, i32) {
    %c0_i32 = arith.constant 0 : i32
    %c0_i32_0 = arith.constant 0 : i32
    return %arg0, %c0_i32 : i32, i32
  }
  func.func @transform_1(%arg0: i32) -> (i32, i32) {
    %c0_i32 = arith.constant 0 : i32
    %c0_i32_0 = arith.constant 0 : i32
    return %arg0, %c0_i32 : i32, i32
  }
  func.func @transform_2(%arg0: i32) -> (i32, i32) {
    %c0_i32 = arith.constant 0 : i32
    %c0_i32_0 = arith.constant 0 : i32
    return %arg0, %c0_i32 : i32, i32
  }
  func.func @transform_3(%arg0: i32) -> (i32, i32) {
    %c0_i32 = arith.constant 0 : i32
    %c0_i32_0 = arith.constant 0 : i32
    %c0_i32_1 = arith.constant 0 : i32
    return %c0_i32, %c0_i32_0 : i32, i32
  }
  func.func @transform_4(%arg0: i32) -> (i32, i32) {
    %c0_i32 = arith.constant 0 : i32
    %c0_i32_0 = arith.constant 0 : i32
    %c0_i32_1 = arith.constant 0 : i32
    return %c0_i32, %c0_i32_0 : i32, i32
  }
  func.func @transform_5(%arg0: i32) -> (i32, i32) {
    %c0_i32 = arith.constant 0 : i32
    %c0_i32_0 = arith.constant 0 : i32
    %c0_i32_1 = arith.constant 0 : i32
    return %c0_i32, %c0_i32_0 : i32, i32
  }
  func.func @transform_6(%arg0: i32) -> (i32, i32) {
    %c0_i32 = arith.constant 0 : i32
    %c0_i32_0 = arith.constant 0 : i32
    %c0_i32_1 = arith.constant 0 : i32
    return %c0_i32, %c0_i32_0 : i32, i32
  }
  func.func @transform_7(%arg0: i32) -> (i32, i32) {
    %c0_i32 = arith.constant 0 : i32
    %c0_i32_0 = arith.constant 0 : i32
    %c0_i32_1 = arith.constant 0 : i32
    return %c0_i32, %c0_i32_0 : i32, i32
  }
  func.func @transform_8(%arg0: i32) -> (i32, i32) {
    %c0_i32 = arith.constant 0 : i32
    %c0_i32_0 = arith.constant 0 : i32
    %c0_i32_1 = arith.constant 0 : i32
    return %c0_i32, %c0_i32_0 : i32, i32
  }
  func.func @transform_9(%arg0: i32) -> (i32, i32) {
    %c0_i32 = arith.constant 0 : i32
    %c0_i32_0 = arith.constant 0 : i32
    %c0_i32_1 = arith.constant 0 : i32
    return %c0_i32, %c0_i32_0 : i32, i32
  }
  func.func @transform_10(%arg0: i32) -> (i32, i32) {
    %c0_i32 = arith.constant 0 : i32
    %c0_i32_0 = arith.constant 0 : i32
    %c0_i32_1 = arith.constant 0 : i32
    return %c0_i32, %c0_i32_0 : i32, i32
  }
  func.func @transform_11(%arg0: i32) -> (i32, i32) {
    %c0_i32 = arith.constant 0 : i32
    %c0_i32_0 = arith.constant 0 : i32
    return %arg0, %c0_i32 : i32, i32
  }
}

</mosaic_0001>

<llo_original>
// kernel: tpu_custom_call.1
$region0: #{tpu_custom_call.1}
  #allocation0 [shape = 'u32[]', space=smem, size = 0x4, offset = 0x4, fixed_abs, tag = 'smem constant byte address 0x4 - core index']
  #allocation1 [shape = 'u32[72,128]{1,0:T(1,128)}', space=vmem, size = 0x9000, scoped, tag = 'internal scratch']
  #allocation2 [shape = 'f32[16,512]{1,0:T(8,128)}', space=vmem, size = 0x8000, scoped, tag = 'scratch operand']
  #allocation3 [shape = 'f32[16,512]{1,0:T(8,128)}', space=vmem, size = 0x8000, scoped, tag = 'scratch operand']
  #allocation4 [shape = 'f32[16,512]{1,0:T(8,128)}', space=vmem, size = 0x8000, scoped, tag = 'scratch operand']
  #allocation5 [shape = 'f32[16,512]{1,0:T(8,128)}', space=vmem, size = 0x8000, scoped, tag = 'scratch operand']
  %s0 = inlined_call_operand.hbm [shape: bf16[16,512], index: 0, kind: input, shape index: {}]
  %s1 = inlined_call_operand.hbm [shape: bf16[16,512], index: 1, kind: input, shape index: {}]
  %s2 = inlined_call_operand.hbm [shape: bf16[16,512], index: 2, kind: input, shape index: {}]
  %s3 = inlined_call_operand.hbm [shape: bf16[512,512], index: 3, kind: input, shape index: {}]
  %s4 = inlined_call_operand.hbm [shape: f32[1,512], index: 4, kind: input, shape index: {}]
  %s5 = inlined_call_operand.hbm [shape: bf16[512,512], index: 5, kind: input, shape index: {}]
  %s6 = inlined_call_operand.vmem [shape: f32[1,512], index: 6, kind: input, shape index: {}]
  %s7 = inlined_call_operand.hbm [shape: bf16[512,512], index: 7, kind: input, shape index: {}]
  %s8 = inlined_call_operand.hbm [shape: f32[1,512], index: 8, kind: input, shape index: {}]
  %s9 = inlined_call_operand.hbm [shape: bf16[512,512], index: 9, kind: input, shape index: {}]
  %s10 = inlined_call_operand.vmem [shape: f32[1,512], index: 10, kind: input, shape index: {}]
  %s11 = inlined_call_operand.hbm [shape: f32[16,512], index: 11, kind: output, shape index: {}]
  %s12 = sld [smem:[#allocation0]]
  $region90: #{tpu_custom_call.1} parent=0
    _
  %s14 = ssub.s32 1, %s12
  %s15 = scalar_select 0, %s14, %s12
  $region1: #{tpu_custom_call.1} parent=0
    #allocation6 [shape = 'u8[16384]{0}', space=vmem, size = 0x4000, scoped, tag = 'input window, operand 0, single buffered']
    #allocation7 [shape = 's32[1]{0}', space=sflag, size = 0x4, scoped, tag = 'scoped memory for tpu_custom_call.1']
    #allocation8 [shape = 's32[1]{0}', space=sflag, size = 0x4, scoped, tag = 'scoped memory for tpu_custom_call.1']
    #allocation9 [shape = 'u8[16384]{0}', space=vmem, size = 0x4000, scoped, tag = 'input window, operand 1, single buffered']
    #allocation10 [shape = 's32[1]{0}', space=sflag, size = 0x4, scoped, tag = 'scoped memory for tpu_custom_call.1']
    #allocation11 [shape = 'u8[16384]{0}', space=vmem, size = 0x4000, scoped, tag = 'input window, operand 2, single buffered']
    #allocation12 [shape = 'u8[524288]{0}', space=vmem, size = 0x80000, scoped, tag = 'input window, operand 3, single buffered']
    #allocation13 [shape = 's32[1]{0}', space=sflag, size = 0x4, scoped, tag = 'scoped memory for tpu_custom_call.1']
    #allocation14 [shape = 'u8[2048]{0}', space=vmem, size = 0x800, scoped, tag = 'input window, operand 4, single buffered']
    #allocation15 [shape = 'u8[524288]{0}', space=vmem, size = 0x80000, scoped, tag = 'input window, operand 5, single buffered']
    #allocation16 [shape = 's32[1]{0}', space=sflag, size = 0x4, scoped, tag = 'scoped memory for tpu_custom_call.1']
    #allocation17 [shape = 'u8[524288]{0}', space=vmem, size = 0x80000, scoped, tag = 'input window, operand 7, single buffered']
    #allocation18 [shape = 'u8[2048]{0}', space=vmem, size = 0x800, scoped, tag = 'input window, operand 8, single buffered']
    #allocation19 [shape = 's32[1]{0}', space=sflag, size = 0x4, scoped, tag = 'scoped memory for tpu_custom_call.1']
    #allocation20 [shape = 'u8[524288]{0}', space=vmem, size = 0x80000, scoped, tag = 'input window, operand 9, single buffered']
    #allocation21 [shape = 'u8[32768]{0}', space=vmem, size = 0x8000, scoped, tag = 'output window, operand 0, single buffered']
    %16 = vsyncpa [#allocation7], 0
    %17 = vsyncpa [#allocation10], 0
    %18 = vsyncpa [#allocation13], 0
    %19 = vsyncpa [#allocation16], 0
    %20 = vsyncpa [#allocation19], 0
    %21 = vsyncpa [#allocation8], 0
    // Predicated region
    $region2: #{tpu_custom_call.1} parent=1 // pred_check
      _
    $region3: #{tpu_custom_call.1} parent=1 // pred_check_branch
      %23 = sbr.rel (0) target = $region5
    $region4: #{tpu_custom_call.1} parent=1 // pred_region
      %25 = vsyncadd [#allocation7], 0
      %s26 = sshll.u32 %s0, 4
      %s27 = int_to_ptr.hbm [resolvable:$true] %s26
      %s28 = sshll.u32 [#allocation6], 4
      %s29 = int_to_ptr.vmem [resolvable:$true] %s28
      %34 = dma.hbm_to_vmem [thread:$0]  %s27, 512, %s29, [#allocation7], 256, 256, 16
    $region5: #{tpu_custom_call.1} parent=1 // pred_fallthru
      _
    // Predicated region
    $region6: #{tpu_custom_call.1} parent=1 // pred_check
      _
    $region7: #{tpu_custom_call.1} parent=1 // pred_check_branch
      %36 = sbr.rel (0) target = $region9
    $region8: #{tpu_custom_call.1} parent=1 // pred_region
      %38 = vsyncadd [#allocation10], 0
      %s39 = sshll.u32 %s1, 4
      %s40 = int_to_ptr.hbm [resolvable:$true] %s39
      %s41 = sshll.u32 [#allocation9], 4
      %s42 = int_to_ptr.vmem [resolvable:$true] %s41
      %47 = dma.hbm_to_vmem [thread:$0]  %s40, 512, %s42, [#allocation10], 256, 256, 16
    $region9: #{tpu_custom_call.1} parent=1 // pred_fallthru
      _
    // Predicated region
    $region10: #{tpu_custom_call.1} parent=1 // pred_check
      _
    $region11: #{tpu_custom_call.1} parent=1 // pred_check_branch
      %49 = sbr.rel (0) target = $region13
    $region12: #{tpu_custom_call.1} parent=1 // pred_region
      %51 = vsyncadd [#allocation10], 0
      %s52 = sshll.u32 %s2, 4
      %s53 = int_to_ptr.hbm [resolvable:$true] %s52
      %s54 = sshll.u32 [#allocation11], 4
      %s55 = int_to_ptr.vmem [resolvable:$true] %s54
      %60 = dma.hbm_to_vmem [thread:$0]  %s53, 512, %s55, [#allocation10], 256, 256, 16
    $region13: #{tpu_custom_call.1} parent=1 // pred_fallthru
      _
    // Predicated region
    $region14: #{tpu_custom_call.1} parent=1 // pred_check
      _
    $region15: #{tpu_custom_call.1} parent=1 // pred_check_branch
      %62 = sbr.rel (0) target = $region17
    $region16: #{tpu_custom_call.1} parent=1 // pred_region
      %64 = vsyncadd [#allocation13], 0
      %s65 = sshll.u32 %s3, 4
      %s66 = int_to_ptr.hbm [resolvable:$true] %s65
      %s67 = sshll.u32 [#allocation12], 4
      %s68 = int_to_ptr.vmem [resolvable:$true] %s67
      %73 = dma.hbm_to_vmem [thread:$0]  %s66, 16384, %s68, [#allocation13], 256, 256, 16
    $region17: #{tpu_custom_call.1} parent=1 // pred_fallthru
      _
    // Predicated region
    $region18: #{tpu_custom_call.1} parent=1 // pred_check
      _
    $region19: #{tpu_custom_call.1} parent=1 // pred_check_branch
      %75 = sbr.rel (0) target = $region21
    $region20: #{tpu_custom_call.1} parent=1 // pred_region
      %77 = vsyncadd [#allocation13], 0
      %s79 = sshll.u32 %s4, 4
      %s80 = int_to_ptr.hbm [resolvable:$true] %s79
      %s81 = sshll.u32 [#allocation14], 4
      %s82 = int_to_ptr.vmem [resolvable:$true] %s81
      %84 = dma.hbm_to_vmem [thread:$0]  %s80, 64, %s82, [#allocation13]
    $region21: #{tpu_custom_call.1} parent=1 // pred_fallthru
      _
    // Predicated region
    $region22: #{tpu_custom_call.1} parent=1 // pred_check
      _
    $region23: #{tpu_custom_call.1} parent=1 // pred_check_branch
      %86 = sbr.rel (0) target = $region25
    $region24: #{tpu_custom_call.1} parent=1 // pred_region
      %88 = vsyncadd [#allocation16], 0
      %s89 = sshll.u32 %s5, 4
      %s90 = int_to_ptr.hbm [resolvable:$true] %s89
      %s91 = sshll.u32 [#allocation15], 4
      %s92 = int_to_ptr.vmem [resolvable:$true] %s91
      %97 = dma.hbm_to_vmem [thread:$0]  %s90, 16384, %s92, [#allocation16], 256, 256, 16
    $region25: #{tpu_custom_call.1} parent=1 // pred_fallthru
      _
    // Predicated region
    $region26: #{tpu_custom_call.1} parent=1 // pred_check
      _
    $region27: #{tpu_custom_call.1} parent=1 // pred_check_branch
      %99 = sbr.rel (0) target = $region29
    $region28: #{tpu_custom_call.1} parent=1 // pred_region
      _
    $region29: #{tpu_custom_call.1} parent=1 // pred_fallthru
      _
    // Predicated region
    $region30: #{tpu_custom_call.1} parent=1 // pred_check
      _
    $region31: #{tpu_custom_call.1} parent=1 // pred_check_branch
      %101 = sbr.rel (0) target = $region33
    $region32: #{tpu_custom_call.1} parent=1 // pred_region
      %103 = vsyncadd [#allocation16], 0
      %s104 = sshll.u32 %s7, 4
      %s105 = int_to_ptr.hbm [resolvable:$true] %s104
      %s106 = sshll.u32 [#allocation17], 4
      %s107 = int_to_ptr.vmem [resolvable:$true] %s106
      %112 = dma.hbm_to_vmem [thread:$0]  %s105, 16384, %s107, [#allocation16], 256, 256, 16
    $region33: #{tpu_custom_call.1} parent=1 // pred_fallthru
      _
    // Predicated region
    $region34: #{tpu_custom_call.1} parent=1 // pred_check
      _
    $region35: #{tpu_custom_call.1} parent=1 // pred_check_branch
      %114 = sbr.rel (0) target = $region37
    $region36: #{tpu_custom_call.1} parent=1 // pred_region
      %116 = vsyncadd [#allocation19], 0
      %s118 = sshll.u32 %s8, 4
      %s119 = int_to_ptr.hbm [resolvable:$true] %s118
      %s120 = sshll.u32 [#allocation18], 4
      %s121 = int_to_ptr.vmem [resolvable:$true] %s120
      %123 = dma.hbm_to_vmem [thread:$0]  %s119, 64, %s121, [#allocation19]
    $region37: #{tpu_custom_call.1} parent=1 // pred_fallthru
      _
    // Predicated region
    $region38: #{tpu_custom_call.1} parent=1 // pred_check
      _
    $region39: #{tpu_custom_call.1} parent=1 // pred_check_branch
      %125 = sbr.rel (0) target = $region41
    $region40: #{tpu_custom_call.1} parent=1 // pred_region
      %127 = vsyncadd [#allocation19], 0
      %s128 = sshll.u32 %s9, 4
      %s129 = int_to_ptr.hbm [resolvable:$true] %s128
      %s130 = sshll.u32 [#allocation20], 4
      %s131 = int_to_ptr.vmem [resolvable:$true] %s130
      %136 = dma.hbm_to_vmem [thread:$0]  %s129, 16384, %s131, [#allocation19], 256, 256, 16
    $region41: #{tpu_custom_call.1} parent=1 // pred_fallthru
      _
    // Predicated region
    $region42: #{tpu_custom_call.1} parent=1 // pred_check
      _
    $region43: #{tpu_custom_call.1} parent=1 // pred_check_branch
      %138 = sbr.rel (0) target = $region45
    $region44: #{tpu_custom_call.1} parent=1 // pred_region
      _
    $region45: #{tpu_custom_call.1} parent=1 // pred_fallthru
      _
    // Predicated region
    $region46: #{tpu_custom_call.1} parent=1 // pred_check
      _
    $region47: #{tpu_custom_call.1} parent=1 // pred_check_branch
      %140 = sbr.rel (0) target = $region49
    $region48: #{tpu_custom_call.1} parent=1 // pred_region
      %142 = dma.done [#allocation7], 512
    $region49: #{tpu_custom_call.1} parent=1 // pred_fallthru
      _
    // Predicated region
    $region50: #{tpu_custom_call.1} parent=1 // pred_check
      _
    $region51: #{tpu_custom_call.1} parent=1 // pred_check_branch
      %144 = sbr.rel (0) target = $region53
    $region52: #{tpu_custom_call.1} parent=1 // pred_region
      %146 = dma.done [#allocation10], 512
    $region53: #{tpu_custom_call.1} parent=1 // pred_fallthru
      _
    // Predicated region
    $region54: #{tpu_custom_call.1} parent=1 // pred_check
      _
    $region55: #{tpu_custom_call.1} parent=1 // pred_check_branch
      %148 = sbr.rel (0) target = $region57
    $region56: #{tpu_custom_call.1} parent=1 // pred_region
      %150 = dma.done [#allocation10], 512
    $region57: #{tpu_custom_call.1} parent=1 // pred_fallthru
      _
    // Predicated region
    $region58: #{tpu_custom_call.1} parent=1 // pred_check
      _
    $region59: #{tpu_custom_call.1} parent=1 // pred_check_branch
      %152 = sbr.rel (0) target = $region61
    $region60: #{tpu_custom_call.1} parent=1 // pred_region
      %154 = dma.done [#allocation13], 16384
    $region61: #{tpu_custom_call.1} parent=1 // pred_fallthru
      _
    // Predicated region
    $region62: #{tpu_custom_call.1} parent=1 // pred_check
      _
    $region63: #{tpu_custom_call.1} parent=1 // pred_check_branch
      %156 = sbr.rel (0) target = $region65
    $region64: #{tpu_custom_call.1} parent=1 // pred_region
      %158 = dma.done [#allocation13], 64
    $region65: #{tpu_custom_call.1} parent=1 // pred_fallthru
      _
    // Predicated region
    $region66: #{tpu_custom_call.1} parent=1 // pred_check
      _
    $region67: #{tpu_custom_call.1} parent=1 // pred_check_branch
      %160 = sbr.rel (0) target = $region69
    $region68: #{tpu_custom_call.1} parent=1 // pred_region
      %162 = dma.done [#allocation16], 16384
    $region69: #{tpu_custom_call.1} parent=1 // pred_fallthru
      _
    // Predicated region
    $region70: #{tpu_custom_call.1} parent=1 // pred_check
      _
    $region71: #{tpu_custom_call.1} parent=1 // pred_check_branch
      %164 = sbr.rel (0) target = $region73
    $region72: #{tpu_custom_call.1} parent=1 // pred_region
      %166 = dma.done [#allocation16], 16384
    $region73: #{tpu_custom_call.1} parent=1 // pred_fallthru
      _
    // Predicated region
    $region74: #{tpu_custom_call.1} parent=1 // pred_check
      _
    $region75: #{tpu_custom_call.1} parent=1 // pred_check_branch
      %168 = sbr.rel (0) target = $region77
    $region76: #{tpu_custom_call.1} parent=1 // pred_region
      %170 = dma.done [#allocation19], 64
    $region77: #{tpu_custom_call.1} parent=1 // pred_fallthru
      _
    // Predicated region
    $region78: #{tpu_custom_call.1} parent=1 // pred_check
      _
    $region79: #{tpu_custom_call.1} parent=1 // pred_check_branch
      %172 = sbr.rel (0) target = $region81
    $region80: #{tpu_custom_call.1} parent=1 // pred_region
      %174 = dma.done [#allocation19], 16384
    $region81: #{tpu_custom_call.1} parent=1 // pred_fallthru
      _
    %v176 = vld [vmem:[#allocation6] sm:$0xff]
    %v177 = vld [vmem:[#allocation6 + $0x8] sm:$0xff]
    %v178 = vld [vmem:[#allocation6 + $0x10] sm:$0xff]
    %v179 = vld [vmem:[#allocation6 + $0x18] sm:$0xff]
    %v180 = vld [vmem:[#allocation12] sm:$0xff]
    %v181 = vld [vmem:[#allocation12 + $0x8] sm:$0xff]
    %v182 = vld [vmem:[#allocation12 + $0x10] sm:$0xff]
    %v183 = vld [vmem:[#allocation12 + $0x18] sm:$0xff]
    %v184 = vld [vmem:[#allocation12 + $0x20] sm:$0xff]
    %v185 = vld [vmem:[#allocation12 + $0x28] sm:$0xff]
    %v186 = vld [vmem:[#allocation12 + $0x30] sm:$0xff]
    %v187 = vld [vmem:[#allocation12 + $0x38] sm:$0xff]
    %v188 = vld [vmem:[#allocation12 + $0x40] sm:$0xff]
    %v189 = vld [vmem:[#allocation12 + $0x48] sm:$0xff]
    %v190 = vld [vmem:[#allocation12 + $0x50] sm:$0xff]
    %v191 = vld [vmem:[#allocation12 + $0x58] sm:$0xff]
    %v192 = vld [vmem:[#allocation12 + $0x60] sm:$0xff]
    %v193 = vld [vmem:[#allocation12 + $0x68] sm:$0xff]
    %v194 = vld [vmem:[#allocation12 + $0x70] sm:$0xff]
    %v195 = vld [vmem:[#allocation12 + $0x78] sm:$0xff]
    %v196 = vld [vmem:[#allocation12 + $0x80] sm:$0xff]
    %v197 = vld [vmem:[#allocation12 + $0x88] sm:$0xff]
    %v198 = vld [vmem:[#allocation12 + $0x90] sm:$0xff]
    %v199 = vld [vmem:[#allocation12 + $0x98] sm:$0xff]
    %v200 = vld [vmem:[#allocation12 + $0xa0] sm:$0xff]
    %v201 = vld [vmem:[#allocation12 + $0xa8] sm:$0xff]
    %v202 = vld [vmem:[#allocation12 + $0xb0] sm:$0xff]
    %v203 = vld [vmem:[#allocation12 + $0xb8] sm:$0xff]
    %v204 = vld [vmem:[#allocation12 + $0xc0] sm:$0xff]
    %v205 = vld [vmem:[#allocation12 + $0xc8] sm:$0xff]
    %v206 = vld [vmem:[#allocation12 + $0xd0] sm:$0xff]
    %v207 = vld [vmem:[#allocation12 + $0xd8] sm:$0xff]
    %v208 = vld [vmem:[#allocation12 + $0xe0] sm:$0xff]
    %v209 = vld [vmem:[#allocation12 + $0xe8] sm:$0xff]
    %v210 = vld [vmem:[#allocation12 + $0xf0] sm:$0xff]
    %v211 = vld [vmem:[#allocation12 + $0xf8] sm:$0xff]
    %v212 = vld [vmem:[#allocation12 + $0x100] sm:$0xff]
    %v213 = vld [vmem:[#allocation12 + $0x108] sm:$0xff]
    %v214 = vld [vmem:[#allocation12 + $0x110] sm:$0xff]
    %v215 = vld [vmem:[#allocation12 + $0x118] sm:$0xff]
    %v216 = vld [vmem:[#allocation12 + $0x120] sm:$0xff]
    %v217 = vld [vmem:[#allocation12 + $0x128] sm:$0xff]
    %v218 = vld [vmem:[#allocation12 + $0x130] sm:$0xff]
    %v219 = vld [vmem:[#allocation12 + $0x138] sm:$0xff]
    %v220 = vld [vmem:[#allocation12 + $0x140] sm:$0xff]
    %v221 = vld [vmem:[#allocation12 + $0x148] sm:$0xff]
    %v222 = vld [vmem:[#allocation12 + $0x150] sm:$0xff]
    %v223 = vld [vmem:[#allocation12 + $0x158] sm:$0xff]
    %v224 = vld [vmem:[#allocation12 + $0x160] sm:$0xff]
    %v225 = vld [vmem:[#allocation12 + $0x168] sm:$0xff]
    %v226 = vld [vmem:[#allocation12 + $0x170] sm:$0xff]
    %v227 = vld [vmem:[#allocation12 + $0x178] sm:$0xff]
    %v228 = vld [vmem:[#allocation12 + $0x180] sm:$0xff]
    %v229 = vld [vmem:[#allocation12 + $0x188] sm:$0xff]
    %v230 = vld [vmem:[#allocation12 + $0x190] sm:$0xff]
    %v231 = vld [vmem:[#allocation12 + $0x198] sm:$0xff]
    %v232 = vld [vmem:[#allocation12 + $0x1a0] sm:$0xff]
    %v233 = vld [vmem:[#allocation12 + $0x1a8] sm:$0xff]
    %v234 = vld [vmem:[#allocation12 + $0x1b0] sm:$0xff]
    %v235 = vld [vmem:[#allocation12 + $0x1b8] sm:$0xff]
    %v236 = vld [vmem:[#allocation12 + $0x1c0] sm:$0xff]
    %v237 = vld [vmem:[#allocation12 + $0x1c8] sm:$0xff]
    %v238 = vld [vmem:[#allocation12 + $0x1d0] sm:$0xff]
    %v239 = vld [vmem:[#allocation12 + $0x1d8] sm:$0xff]
    %v240 = vld [vmem:[#allocation12 + $0x1e0] sm:$0xff]
    %v241 = vld [vmem:[#allocation12 + $0x1e8] sm:$0xff]
    %v242 = vld [vmem:[#allocation12 + $0x1f0] sm:$0xff]
    %v243 = vld [vmem:[#allocation12 + $0x1f8] sm:$0xff]
    %v244 = vld [vmem:[#allocation12 + $0x200] sm:$0xff]
    %v245 = vld [vmem:[#allocation12 + $0x208] sm:$0xff]
    %v246 = vld [vmem:[#allocation12 + $0x210] sm:$0xff]
    %v247 = vld [vmem:[#allocation12 + $0x218] sm:$0xff]
    %v248 = vld [vmem:[#allocation12 + $0x220] sm:$0xff]
    %v249 = vld [vmem:[#allocation12 + $0x228] sm:$0xff]
    %v250 = vld [vmem:[#allocation12 + $0x230] sm:$0xff]
    %v251 = vld [vmem:[#allocation12 + $0x238] sm:$0xff]
    %v252 = vld [vmem:[#allocation12 + $0x240] sm:$0xff]
    %v253 = vld [vmem:[#allocation12 + $0x248] sm:$0xff]
    %v254 = vld [vmem:[#allocation12 + $0x250] sm:$0xff]
    %v255 = vld [vmem:[#allocation12 + $0x258] sm:$0xff]
    %v256 = vld [vmem:[#allocation12 + $0x260] sm:$0xff]
    %v257 = vld [vmem:[#allocation12 + $0x268] sm:$0xff]
    %v258 = vld [vmem:[#allocation12 + $0x270] sm:$0xff]
    %v259 = vld [vmem:[#allocation12 + $0x278] sm:$0xff]
    %v260 = vld [vmem:[#allocation12 + $0x280] sm:$0xff]
    %v261 = vld [vmem:[#allocation12 + $0x288] sm:$0xff]
    %v262 = vld [vmem:[#allocation12 + $0x290] sm:$0xff]
    %v263 = vld [vmem:[#allocation12 + $0x298] sm:$0xff]
    %v264 = vld [vmem:[#allocation12 + $0x2a0] sm:$0xff]
    %v265 = vld [vmem:[#allocation12 + $0x2a8] sm:$0xff]
    %v266 = vld [vmem:[#allocation12 + $0x2b0] sm:$0xff]
    %v267 = vld [vmem:[#allocation12 + $0x2b8] sm:$0xff]
    %v268 = vld [vmem:[#allocation12 + $0x2c0] sm:$0xff]
    %v269 = vld [vmem:[#allocation12 + $0x2c8] sm:$0xff]
    %v270 = vld [vmem:[#allocation12 + $0x2d0] sm:$0xff]
    %v271 = vld [vmem:[#allocation12 + $0x2d8] sm:$0xff]
    %v272 = vld [vmem:[#allocation12 + $0x2e0] sm:$0xff]
    %v273 = vld [vmem:[#allocation12 + $0x2e8] sm:$0xff]
    %v274 = vld [vmem:[#allocation12 + $0x2f0] sm:$0xff]
    %v275 = vld [vmem:[#allocation12 + $0x2f8] sm:$0xff]
    %v276 = vld [vmem:[#allocation12 + $0x300] sm:$0xff]
    %v277 = vld [vmem:[#allocation12 + $0x308] sm:$0xff]
    %v278 = vld [vmem:[#allocation12 + $0x310] sm:$0xff]
    %v279 = vld [vmem:[#allocation12 + $0x318] sm:$0xff]
    %v280 = vld [vmem:[#allocation12 + $0x320] sm:$0xff]
    %v281 = vld [vmem:[#allocation12 + $0x328] sm:$0xff]
    %v282 = vld [vmem:[#allocation12 + $0x330] sm:$0xff]
    %v283 = vld [vmem:[#allocation12 + $0x338] sm:$0xff]
    %v284 = vld [vmem:[#allocation12 + $0x340] sm:$0xff]
    %v285 = vld [vmem:[#allocation12 + $0x348] sm:$0xff]
    %v286 = vld [vmem:[#allocation12 + $0x350] sm:$0xff]
    %v287 = vld [vmem:[#allocation12 + $0x358] sm:$0xff]
    %v288 = vld [vmem:[#allocation12 + $0x360] sm:$0xff]
    %v289 = vld [vmem:[#allocation12 + $0x368] sm:$0xff]
    %v290 = vld [vmem:[#allocation12 + $0x370] sm:$0xff]
    %v291 = vld [vmem:[#allocation12 + $0x378] sm:$0xff]
    %v292 = vld [vmem:[#allocation12 + $0x380] sm:$0xff]
    %v293 = vld [vmem:[#allocation12 + $0x388] sm:$0xff]
    %v294 = vld [vmem:[#allocation12 + $0x390] sm:$0xff]
    %v295 = vld [vmem:[#allocation12 + $0x398] sm:$0xff]
    %v296 = vld [vmem:[#allocation12 + $0x3a0] sm:$0xff]
    %v297 = vld [vmem:[#allocation12 + $0x3a8] sm:$0xff]
    %v298 = vld [vmem:[#allocation12 + $0x3b0] sm:$0xff]
    %v299 = vld [vmem:[#allocation12 + $0x3b8] sm:$0xff]
    %v300 = vld [vmem:[#allocation12 + $0x3c0] sm:$0xff]
    %v301 = vld [vmem:[#allocation12 + $0x3c8] sm:$0xff]
    %v302 = vld [vmem:[#allocation12 + $0x3d0] sm:$0xff]
    %v303 = vld [vmem:[#allocation12 + $0x3d8] sm:$0xff]
    %v304 = vld [vmem:[#allocation12 + $0x3e0] sm:$0xff]
    %v305 = vld [vmem:[#allocation12 + $0x3e8] sm:$0xff]
    %v306 = vld [vmem:[#allocation12 + $0x3f0] sm:$0xff]
    %v307 = vld [vmem:[#allocation12 + $0x3f8] sm:$0xff]
    %v308 = vld [vmem:[#allocation14] sm:$0xf]
    %v310 = vperm.slane %v308, 0
    %v311 = vperm.slane %v308, 1
    %v312 = vperm.slane %v308, 2
    %v313 = vperm.slane %v308, 3
    %v322 = vunpack.c.l.b16 %v176
    %v323 = vunpack.c.h.b16 %v176
    %v324 = vunpack.c.l.b16 %v177
    %v325 = vunpack.c.h.b16 %v177
    %v326 = vunpack.c.l.b16 %v178
    %v327 = vunpack.c.h.b16 %v178
    %v328 = vunpack.c.l.b16 %v179
    %v329 = vunpack.c.h.b16 %v179
    %v330 = vpack.c.b16 %v326, %v322
    %v331 = vpack.c.b16 %v327, %v323
    %v332 = vpack.c.b16 %v328, %v324
    %v333 = vpack.c.b16 %v329, %v325
    %v466 = vunpack.c.l.b16 %v180
    %v467 = vunpack.c.h.b16 %v180
    %v468 = vunpack.c.l.b16 %v181
    %v469 = vunpack.c.h.b16 %v181
    %v470 = vunpack.c.l.b16 %v182
    %v471 = vunpack.c.h.b16 %v182
    %v472 = vunpack.c.l.b16 %v183
    %v473 = vunpack.c.h.b16 %v183
    %v474 = vunpack.c.l.b16 %v184
    %v475 = vunpack.c.h.b16 %v184
    %v476 = vunpack.c.l.b16 %v185
    %v477 = vunpack.c.h.b16 %v185
    %v478 = vunpack.c.l.b16 %v186
    %v479 = vunpack.c.h.b16 %v186
    %v480 = vunpack.c.l.b16 %v187
    %v481 = vunpack.c.h.b16 %v187
    %v482 = vunpack.c.l.b16 %v188
    %v483 = vunpack.c.h.b16 %v188
    %v484 = vunpack.c.l.b16 %v189
    %v485 = vunpack.c.h.b16 %v189
    %v486 = vunpack.c.l.b16 %v190
    %v487 = vunpack.c.h.b16 %v190
    %v488 = vunpack.c.l.b16 %v191
    %v489 = vunpack.c.h.b16 %v191
    %v490 = vunpack.c.l.b16 %v192
    %v491 = vunpack.c.h.b16 %v192
    %v492 = vunpack.c.l.b16 %v193
    %v493 = vunpack.c.h.b16 %v193
    %v494 = vunpack.c.l.b16 %v194
    %v495 = vunpack.c.h.b16 %v194
    %v496 = vunpack.c.l.b16 %v195
    %v497 = vunpack.c.h.b16 %v195
    %v498 = vunpack.c.l.b16 %v196
    %v499 = vunpack.c.h.b16 %v196
    %v500 = vunpack.c.l.b16 %v197
    %v501 = vunpack.c.h.b16 %v197
    %v502 = vunpack.c.l.b16 %v198
    %v503 = vunpack.c.h.b16 %v198
    %v504 = vunpack.c.l.b16 %v199
    %v505 = vunpack.c.h.b16 %v199
    %v506 = vunpack.c.l.b16 %v200
    %v507 = vunpack.c.h.b16 %v200
    %v508 = vunpack.c.l.b16 %v201
    %v509 = vunpack.c.h.b16 %v201
    %v510 = vunpack.c.l.b16 %v202
    %v511 = vunpack.c.h.b16 %v202
    %v512 = vunpack.c.l.b16 %v203
    %v513 = vunpack.c.h.b16 %v203
    %v514 = vunpack.c.l.b16 %v204
    %v515 = vunpack.c.h.b16 %v204
    %v516 = vunpack.c.l.b16 %v205
    %v517 = vunpack.c.h.b16 %v205
    %v518 = vunpack.c.l.b16 %v206
    %v519 = vunpack.c.h.b16 %v206
    %v520 = vunpack.c.l.b16 %v207
    %v521 = vunpack.c.h.b16 %v207
    %v522 = vunpack.c.l.b16 %v208
    %v523 = vunpack.c.h.b16 %v208
    %v524 = vunpack.c.l.b16 %v209
    %v525 = vunpack.c.h.b16 %v209
    %v526 = vunpack.c.l.b16 %v210
    %v527 = vunpack.c.h.b16 %v210
    %v528 = vunpack.c.l.b16 %v211
    %v529 = vunpack.c.h.b16 %v211
    %v530 = vunpack.c.l.b16 %v212
    %v531 = vunpack.c.h.b16 %v212
    %v532 = vunpack.c.l.b16 %v213
    %v533 = vunpack.c.h.b16 %v213
    %v534 = vunpack.c.l.b16 %v214
    %v535 = vunpack.c.h.b16 %v214
    %v536 = vunpack.c.l.b16 %v215
    %v537 = vunpack.c.h.b16 %v215
    %v538 = vunpack.c.l.b16 %v216
    %v539 = vunpack.c.h.b16 %v216
    %v540 = vunpack.c.l.b16 %v217
    %v541 = vunpack.c.h.b16 %v217
    %v542 = vunpack.c.l.b16 %v218
    %v543 = vunpack.c.h.b16 %v218
    %v544 = vunpack.c.l.b16 %v219
    %v545 = vunpack.c.h.b16 %v219
    %v546 = vunpack.c.l.b16 %v220
    %v547 = vunpack.c.h.b16 %v220
    %v548 = vunpack.c.l.b16 %v221
    %v549 = vunpack.c.h.b16 %v221
    %v550 = vunpack.c.l.b16 %v222
    %v551 = vunpack.c.h.b16 %v222
    %v552 = vunpack.c.l.b16 %v223
    %v553 = vunpack.c.h.b16 %v223
    %v554 = vunpack.c.l.b16 %v224
    %v555 = vunpack.c.h.b16 %v224
    %v556 = vunpack.c.l.b16 %v225
    %v557 = vunpack.c.h.b16 %v225
    %v558 = vunpack.c.l.b16 %v226
    %v559 = vunpack.c.h.b16 %v226
    %v560 = vunpack.c.l.b16 %v227
    %v561 = vunpack.c.h.b16 %v227
    %v562 = vunpack.c.l.b16 %v228
    %v563 = vunpack.c.h.b16 %v228
    %v564 = vunpack.c.l.b16 %v229
    %v565 = vunpack.c.h.b16 %v229
    %v566 = vunpack.c.l.b16 %v230
    %v567 = vunpack.c.h.b16 %v230
    %v568 = vunpack.c.l.b16 %v231
    %v569 = vunpack.c.h.b16 %v231
    %v570 = vunpack.c.l.b16 %v232
    %v571 = vunpack.c.h.b16 %v232
    %v572 = vunpack.c.l.b16 %v233
    %v573 = vunpack.c.h.b16 %v233
    %v574 = vunpack.c.l.b16 %v234
    %v575 = vunpack.c.h.b16 %v234
    %v576 = vunpack.c.l.b16 %v235
    %v577 = vunpack.c.h.b16 %v235
    %v578 = vunpack.c.l.b16 %v236
    %v579 = vunpack.c.h.b16 %v236
    %v580 = vunpack.c.l.b16 %v237
    %v581 = vunpack.c.h.b16 %v237
    %v582 = vunpack.c.l.b16 %v238
    %v583 = vunpack.c.h.b16 %v238
    %v584 = vunpack.c.l.b16 %v239
    %v585 = vunpack.c.h.b16 %v239
    %v586 = vunpack.c.l.b16 %v240
    %v587 = vunpack.c.h.b16 %v240
    %v588 = vunpack.c.l.b16 %v241
    %v589 = vunpack.c.h.b16 %v241
    %v590 = vunpack.c.l.b16 %v242
    %v591 = vunpack.c.h.b16 %v242
    %v592 = vunpack.c.l.b16 %v243
    %v593 = vunpack.c.h.b16 %v243
    %v594 = vunpack.c.l.b16 %v244
    %v595 = vunpack.c.h.b16 %v244
    %v596 = vunpack.c.l.b16 %v245
    %v597 = vunpack.c.h.b16 %v245
    %v598 = vunpack.c.l.b16 %v246
    %v599 = vunpack.c.h.b16 %v246
    %v600 = vunpack.c.l.b16 %v247
    %v601 = vunpack.c.h.b16 %v247
    %v602 = vunpack.c.l.b16 %v248
    %v603 = vunpack.c.h.b16 %v248
    %v604 = vunpack.c.l.b16 %v249
    %v605 = vunpack.c.h.b16 %v249
    %v606 = vunpack.c.l.b16 %v250
    %v607 = vunpack.c.h.b16 %v250
    %v608 = vunpack.c.l.b16 %v251
    %v609 = vunpack.c.h.b16 %v251
    %v610 = vunpack.c.l.b16 %v252
    %v611 = vunpack.c.h.b16 %v252
    %v612 = vunpack.c.l.b16 %v253
    %v613 = vunpack.c.h.b16 %v253
    %v614 = vunpack.c.l.b16 %v254
    %v615 = vunpack.c.h.b16 %v254
    %v616 = vunpack.c.l.b16 %v255
    %v617 = vunpack.c.h.b16 %v255
    %v618 = vunpack.c.l.b16 %v256
    %v619 = vunpack.c.h.b16 %v256
    %v620 = vunpack.c.l.b16 %v257
    %v621 = vunpack.c.h.b16 %v257
    %v622 = vunpack.c.l.b16 %v258
    %v623 = vunpack.c.h.b16 %v258
    %v624 = vunpack.c.l.b16 %v259
    %v625 = vunpack.c.h.b16 %v259
    %v626 = vunpack.c.l.b16 %v260
    %v627 = vunpack.c.h.b16 %v260
    %v628 = vunpack.c.l.b16 %v261
    %v629 = vunpack.c.h.b16 %v261
    %v630 = vunpack.c.l.b16 %v262
    %v631 = vunpack.c.h.b16 %v262
    %v632 = vunpack.c.l.b16 %v263
    %v633 = vunpack.c.h.b16 %v263
    %v634 = vunpack.c.l.b16 %v264
    %v635 = vunpack.c.h.b16 %v264
    %v636 = vunpack.c.l.b16 %v265
    %v637 = vunpack.c.h.b16 %v265
    %v638 = vunpack.c.l.b16 %v266
    %v639 = vunpack.c.h.b16 %v266
    %v640 = vunpack.c.l.b16 %v267
    %v641 = vunpack.c.h.b16 %v267
    %v642 = vunpack.c.l.b16 %v268
    %v643 = vunpack.c.h.b16 %v268
    %v644 = vunpack.c.l.b16 %v269
    %v645 = vunpack.c.h.b16 %v269
    %v646 = vunpack.c.l.b16 %v270
    %v647 = vunpack.c.h.b16 %v270
    %v648 = vunpack.c.l.b16 %v271
    %v649 = vunpack.c.h.b16 %v271
    %v650 = vunpack.c.l.b16 %v272
    %v651 = vunpack.c.h.b16 %v272
    %v652 = vunpack.c.l.b16 %v273
    %v653 = vunpack.c.h.b16 %v273
    %v654 = vunpack.c.l.b16 %v274
    %v655 = vunpack.c.h.b16 %v274
    %v656 = vunpack.c.l.b16 %v275
    %v657 = vunpack.c.h.b16 %v275
    %v658 = vunpack.c.l.b16 %v276
    %v659 = vunpack.c.h.b16 %v276
    %v660 = vunpack.c.l.b16 %v277
    %v661 = vunpack.c.h.b16 %v277
    %v662 = vunpack.c.l.b16 %v278
    %v663 = vunpack.c.h.b16 %v278
    %v664 = vunpack.c.l.b16 %v279
    %v665 = vunpack.c.h.b16 %v279
    %v666 = vunpack.c.l.b16 %v280
    %v667 = vunpack.c.h.b16 %v280
    %v668 = vunpack.c.l.b16 %v281
    %v669 = vunpack.c.h.b16 %v281
    %v670 = vunpack.c.l.b16 %v282
    %v671 = vunpack.c.h.b16 %v282
    %v672 = vunpack.c.l.b16 %v283
    %v673 = vunpack.c.h.b16 %v283
    %v674 = vunpack.c.l.b16 %v284
    %v675 = vunpack.c.h.b16 %v284
    %v676 = vunpack.c.l.b16 %v285
    %v677 = vunpack.c.h.b16 %v285
    %v678 = vunpack.c.l.b16 %v286
    %v679 = vunpack.c.h.b16 %v286
    %v680 = vunpack.c.l.b16 %v287
    %v681 = vunpack.c.h.b16 %v287
    %v682 = vunpack.c.l.b16 %v288
    %v683 = vunpack.c.h.b16 %v288
    %v684 = vunpack.c.l.b16 %v289
    %v685 = vunpack.c.h.b16 %v289
    %v686 = vunpack.c.l.b16 %v290
    %v687 = vunpack.c.h.b16 %v290
    %v688 = vunpack.c.l.b16 %v291
    %v689 = vunpack.c.h.b16 %v291
    %v690 = vunpack.c.l.b16 %v292
    %v691 = vunpack.c.h.b16 %v292
    %v692 = vunpack.c.l.b16 %v293
    %v693 = vunpack.c.h.b16 %v293
    %v694 = vunpack.c.l.b16 %v294
    %v695 = vunpack.c.h.b16 %v294
    %v696 = vunpack.c.l.b16 %v295
    %v697 = vunpack.c.h.b16 %v295
    %v698 = vunpack.c.l.b16 %v296
    %v699 = vunpack.c.h.b16 %v296
    %v700 = vunpack.c.l.b16 %v297
    %v701 = vunpack.c.h.b16 %v297
    %v702 = vunpack.c.l.b16 %v298
    %v703 = vunpack.c.h.b16 %v298
    %v704 = vunpack.c.l.b16 %v299
    %v705 = vunpack.c.h.b16 %v299
    %v706 = vunpack.c.l.b16 %v300
    %v707 = vunpack.c.h.b16 %v300
    %v708 = vunpack.c.l.b16 %v301
    %v709 = vunpack.c.h.b16 %v301
    %v710 = vunpack.c.l.b16 %v302
    %v711 = vunpack.c.h.b16 %v302
    %v712 = vunpack.c.l.b16 %v303
    %v713 = vunpack.c.h.b16 %v303
    %v714 = vunpack.c.l.b16 %v304
    %v715 = vunpack.c.h.b16 %v304
    %v716 = vunpack.c.l.b16 %v305
    %v717 = vunpack.c.h.b16 %v305
    %v718 = vunpack.c.l.b16 %v306
    %v719 = vunpack.c.h.b16 %v306
    %v720 = vunpack.c.l.b16 %v307
    %v721 = vunpack.c.h.b16 %v307
    %v722 = vpack.c.b16 %v470, %v466
    %v723 = vpack.c.b16 %v471, %v467
    %v724 = vpack.c.b16 %v472, %v468
    %v725 = vpack.c.b16 %v473, %v469
    %v726 = vpack.c.b16 %v478, %v474
    %v727 = vpack.c.b16 %v479, %v475
    %v728 = vpack.c.b16 %v480, %v476
    %v729 = vpack.c.b16 %v481, %v477
    %v730 = vpack.c.b16 %v486, %v482
    %v731 = vpack.c.b16 %v487, %v483
    %v732 = vpack.c.b16 %v488, %v484
    %v733 = vpack.c.b16 %v489, %v485
    %v734 = vpack.c.b16 %v494, %v490
    %v735 = vpack.c.b16 %v495, %v491
    %v736 = vpack.c.b16 %v496, %v492
    %v737 = vpack.c.b16 %v497, %v493
    %v738 = vpack.c.b16 %v502, %v498
    %v739 = vpack.c.b16 %v503, %v499
    %v740 = vpack.c.b16 %v504, %v500
    %v741 = vpack.c.b16 %v505, %v501
    %v742 = vpack.c.b16 %v510, %v506
    %v743 = vpack.c.b16 %v511, %v507
    %v744 = vpack.c.b16 %v512, %v508
    %v745 = vpack.c.b16 %v513, %v509
    %v746 = vpack.c.b16 %v518, %v514
    %v747 = vpack.c.b16 %v519, %v515
    %v748 = vpack.c.b16 %v520, %v516
    %v749 = vpack.c.b16 %v521, %v517
    %v750 = vpack.c.b16 %v526, %v522
    %v751 = vpack.c.b16 %v527, %v523
    %v752 = vpack.c.b16 %v528, %v524
    %v753 = vpack.c.b16 %v529, %v525
    %v754 = vpack.c.b16 %v534, %v530
    %v755 = vpack.c.b16 %v535, %v531
    %v756 = vpack.c.b16 %v536, %v532
    %v757 = vpack.c.b16 %v537, %v533
    %v758 = vpack.c.b16 %v542, %v538
    %v759 = vpack.c.b16 %v543, %v539
    %v760 = vpack.c.b16 %v544, %v540
    %v761 = vpack.c.b16 %v545, %v541
    %v762 = vpack.c.b16 %v550, %v546
    %v763 = vpack.c.b16 %v551, %v547
    %v764 = vpack.c.b16 %v552, %v548
    %v765 = vpack.c.b16 %v553, %v549
    %v766 = vpack.c.b16 %v558, %v554
    %v767 = vpack.c.b16 %v559, %v555
    %v768 = vpack.c.b16 %v560, %v556
    %v769 = vpack.c.b16 %v561, %v557
    %v770 = vpack.c.b16 %v566, %v562
    %v771 = vpack.c.b16 %v567, %v563
    %v772 = vpack.c.b16 %v568, %v564
    %v773 = vpack.c.b16 %v569, %v565
    %v774 = vpack.c.b16 %v574, %v570
    %v775 = vpack.c.b16 %v575, %v571
    %v776 = vpack.c.b16 %v576, %v572
    %v777 = vpack.c.b16 %v577, %v573
    %v778 = vpack.c.b16 %v582, %v578
    %v779 = vpack.c.b16 %v583, %v579
    %v780 = vpack.c.b16 %v584, %v580
    %v781 = vpack.c.b16 %v585, %v581
    %v782 = vpack.c.b16 %v590, %v586
    %v783 = vpack.c.b16 %v591, %v587
    %v784 = vpack.c.b16 %v592, %v588
    %v785 = vpack.c.b16 %v593, %v589
    %v786 = vpack.c.b16 %v598, %v594
    %v787 = vpack.c.b16 %v599, %v595
    %v788 = vpack.c.b16 %v600, %v596
    %v789 = vpack.c.b16 %v601, %v597
    %v790 = vpack.c.b16 %v606, %v602
    %v791 = vpack.c.b16 %v607, %v603
    %v792 = vpack.c.b16 %v608, %v604
    %v793 = vpack.c.b16 %v609, %v605
    %v794 = vpack.c.b16 %v614, %v610
    %v795 = vpack.c.b16 %v615, %v611
    %v796 = vpack.c.b16 %v616, %v612
    %v797 = vpack.c.b16 %v617, %v613
    %v798 = vpack.c.b16 %v622, %v618
    %v799 = vpack.c.b16 %v623, %v619
    %v800 = vpack.c.b16 %v624, %v620
    %v801 = vpack.c.b16 %v625, %v621
    %v802 = vpack.c.b16 %v630, %v626
    %v803 = vpack.c.b16 %v631, %v627
    %v804 = vpack.c.b16 %v632, %v628
    %v805 = vpack.c.b16 %v633, %v629
    %v806 = vpack.c.b16 %v638, %v634
    %v807 = vpack.c.b16 %v639, %v635
    %v808 = vpack.c.b16 %v640, %v636
    %v809 = vpack.c.b16 %v641, %v637
    %v810 = vpack.c.b16 %v646, %v642
    %v811 = vpack.c.b16 %v647, %v643
    %v812 = vpack.c.b16 %v648, %v644
    %v813 = vpack.c.b16 %v649, %v645
    %v814 = vpack.c.b16 %v654, %v650
    %v815 = vpack.c.b16 %v655, %v651
    %v816 = vpack.c.b16 %v656, %v652
    %v817 = vpack.c.b16 %v657, %v653
    %v818 = vpack.c.b16 %v662, %v658
    %v819 = vpack.c.b16 %v663, %v659
    %v820 = vpack.c.b16 %v664, %v660
    %v821 = vpack.c.b16 %v665, %v661
    %v822 = vpack.c.b16 %v670, %v666
    %v823 = vpack.c.b16 %v671, %v667
    %v824 = vpack.c.b16 %v672, %v668
    %v825 = vpack.c.b16 %v673, %v669
    %v826 = vpack.c.b16 %v678, %v674
    %v827 = vpack.c.b16 %v679, %v675
    %v828 = vpack.c.b16 %v680, %v676
    %v829 = vpack.c.b16 %v681, %v677
    %v830 = vpack.c.b16 %v686, %v682
    %v831 = vpack.c.b16 %v687, %v683
    %v832 = vpack.c.b16 %v688, %v684
    %v833 = vpack.c.b16 %v689, %v685
    %v834 = vpack.c.b16 %v694, %v690
    %v835 = vpack.c.b16 %v695, %v691
    %v836 = vpack.c.b16 %v696, %v692
    %v837 = vpack.c.b16 %v697, %v693
    %v838 = vpack.c.b16 %v702, %v698
    %v839 = vpack.c.b16 %v703, %v699
    %v840 = vpack.c.b16 %v704, %v700
    %v841 = vpack.c.b16 %v705, %v701
    %v842 = vpack.c.b16 %v710, %v706
    %v843 = vpack.c.b16 %v711, %v707
    %v844 = vpack.c.b16 %v712, %v708
    %v845 = vpack.c.b16 %v713, %v709
    %v846 = vpack.c.b16 %v718, %v714
    %v847 = vpack.c.b16 %v719, %v715
    %v848 = vpack.c.b16 %v720, %v716
    %v849 = vpack.c.b16 %v721, %v717
    %978 = vmatpush.bf16.msra.mxu0 %v750
    %979 = vmatpush.bf16.msra.mxu0 %v746
    %980 = vmatpush.bf16.msra.mxu0 %v742
    %981 = vmatpush.bf16.msra.mxu0 %v738
    %982 = vmatpush.bf16.msra.mxu0 %v734
    %983 = vmatpush.bf16.msra.mxu0 %v730
    %984 = vmatpush.bf16.msra.mxu0 %v726
    %985 = vmatpush.bf16.msra.mxu0 %v722
    %986 = vmatmul.bf16.gmra.mxu0 %v330
    %v987 = vpop.f32.mrf.mxu0
    %v988 = vadd.f32 %v310, %v987
    %v989 = vpop.f32.mrf.mxu0
    %v990 = vadd.f32 %v310, %v989
    %991 = vdwg.mxu0
    %992 = vmatpush.bf16.msra.mxu0 %v782
    %993 = vmatpush.bf16.msra.mxu0 %v778
    %994 = vmatpush.bf16.msra.mxu0 %v774
    %995 = vmatpush.bf16.msra.mxu0 %v770
    %996 = vmatpush.bf16.msra.mxu0 %v766
    %997 = vmatpush.bf16.msra.mxu0 %v762
    %998 = vmatpush.bf16.msra.mxu0 %v758
    %999 = vmatpush.bf16.msra.mxu0 %v754
    %1000 = vmatmul.bf16.gmra.mxu0 %v331
    %v1001 = vpop.f32.mrf.mxu0
    %v1002 = vadd.f32 %v988, %v1001
    %v1003 = vpop.f32.mrf.mxu0
    %v1004 = vadd.f32 %v990, %v1003
    %1005 = vdwg.mxu0
    %1006 = vmatpush.bf16.msra.mxu0 %v814
    %1007 = vmatpush.bf16.msra.mxu0 %v810
    %1008 = vmatpush.bf16.msra.mxu0 %v806
    %1009 = vmatpush.bf16.msra.mxu0 %v802
    %1010 = vmatpush.bf16.msra.mxu0 %v798
    %1011 = vmatpush.bf16.msra.mxu0 %v794
    %1012 = vmatpush.bf16.msra.mxu0 %v790
    %1013 = vmatpush.bf16.msra.mxu0 %v786
    %1014 = vmatmul.bf16.gmra.mxu0 %v332
    %v1015 = vpop.f32.mrf.mxu0
    %v1016 = vadd.f32 %v1002, %v1015
    %v1017 = vpop.f32.mrf.mxu0
    %v1018 = vadd.f32 %v1004, %v1017
    %1019 = vdwg.mxu0
    %1020 = vmatpush.bf16.msra.mxu0 %v846
    %1021 = vmatpush.bf16.msra.mxu0 %v842
    %1022 = vmatpush.bf16.msra.mxu0 %v838
    %1023 = vmatpush.bf16.msra.mxu0 %v834
    %1024 = vmatpush.bf16.msra.mxu0 %v830
    %1025 = vmatpush.bf16.msra.mxu0 %v826
    %1026 = vmatpush.bf16.msra.mxu0 %v822
    %1027 = vmatpush.bf16.msra.mxu0 %v818
    %1028 = vmatmul.bf16.gmra.mxu0 %v333
    %v1029 = vpop.f32.mrf.mxu0
    %v1030 = vadd.f32 %v1016, %v1029
    %v1031 = vpop.f32.mrf.mxu0
    %v1032 = vadd.f32 %v1018, %v1031
    %1033 = vdwg.mxu0
    %1034 = vmatpush.bf16.msra.mxu0 %v751
    %1035 = vmatpush.bf16.msra.mxu0 %v747
    %1036 = vmatpush.bf16.msra.mxu0 %v743
    %1037 = vmatpush.bf16.msra.mxu0 %v739
    %1038 = vmatpush.bf16.msra.mxu0 %v735
    %1039 = vmatpush.bf16.msra.mxu0 %v731
    %1040 = vmatpush.bf16.msra.mxu0 %v727
    %1041 = vmatpush.bf16.msra.mxu0 %v723
    %1042 = vmatmul.bf16.gmra.mxu0 %v330
    %v1043 = vpop.f32.mrf.mxu0
    %v1044 = vadd.f32 %v311, %v1043
    %v1045 = vpop.f32.mrf.mxu0
    %v1046 = vadd.f32 %v311, %v1045
    %1047 = vdwg.mxu0
    %1048 = vmatpush.bf16.msra.mxu0 %v783
    %1049 = vmatpush.bf16.msra.mxu0 %v779
    %1050 = vmatpush.bf16.msra.mxu0 %v775
    %1051 = vmatpush.bf16.msra.mxu0 %v771
    %1052 = vmatpush.bf16.msra.mxu0 %v767
    %1053 = vmatpush.bf16.msra.mxu0 %v763
    %1054 = vmatpush.bf16.msra.mxu0 %v759
    %1055 = vmatpush.bf16.msra.mxu0 %v755
    %1056 = vmatmul.bf16.gmra.mxu0 %v331
    %v1057 = vpop.f32.mrf.mxu0
    %v1058 = vadd.f32 %v1044, %v1057
    %v1059 = vpop.f32.mrf.mxu0
    %v1060 = vadd.f32 %v1046, %v1059
    %1061 = vdwg.mxu0
    %1062 = vmatpush.bf16.msra.mxu0 %v815
    %1063 = vmatpush.bf16.msra.mxu0 %v811
    %1064 = vmatpush.bf16.msra.mxu0 %v807
    %1065 = vmatpush.bf16.msra.mxu0 %v803
    %1066 = vmatpush.bf16.msra.mxu0 %v799
    %1067 = vmatpush.bf16.msra.mxu0 %v795
    %1068 = vmatpush.bf16.msra.mxu0 %v791
    %1069 = vmatpush.bf16.msra.mxu0 %v787
    %1070 = vmatmul.bf16.gmra.mxu0 %v332
    %v1071 = vpop.f32.mrf.mxu0
    %v1072 = vadd.f32 %v1058, %v1071
    %v1073 = vpop.f32.mrf.mxu0
    %v1074 = vadd.f32 %v1060, %v1073
    %1075 = vdwg.mxu0
    %1076 = vmatpush.bf16.msra.mxu0 %v847
    %1077 = vmatpush.bf16.msra.mxu0 %v843
    %1078 = vmatpush.bf16.msra.mxu0 %v839
    %1079 = vmatpush.bf16.msra.mxu0 %v835
    %1080 = vmatpush.bf16.msra.mxu0 %v831
    %1081 = vmatpush.bf16.msra.mxu0 %v827
    %1082 = vmatpush.bf16.msra.mxu0 %v823
    %1083 = vmatpush.bf16.msra.mxu0 %v819
    %1084 = vmatmul.bf16.gmra.mxu0 %v333
    %v1085 = vpop.f32.mrf.mxu0
    %v1086 = vadd.f32 %v1072, %v1085
    %v1087 = vpop.f32.mrf.mxu0
    %v1088 = vadd.f32 %v1074, %v1087
    %1089 = vdwg.mxu0
    %1090 = vmatpush.bf16.msra.mxu0 %v752
    %1091 = vmatpush.bf16.msra.mxu0 %v748
    %1092 = vmatpush.bf16.msra.mxu0 %v744
    %1093 = vmatpush.bf16.msra.mxu0 %v740
    %1094 = vmatpush.bf16.msra.mxu0 %v736
    %1095 = vmatpush.bf16.msra.mxu0 %v732
    %1096 = vmatpush.bf16.msra.mxu0 %v728
    %1097 = vmatpush.bf16.msra.mxu0 %v724
    %1098 = vmatmul.bf16.gmra.mxu0 %v330
    %v1099 = vpop.f32.mrf.mxu0
    %v1100 = vadd.f32 %v312, %v1099
    %v1101 = vpop.f32.mrf.mxu0
    %v1102 = vadd.f32 %v312, %v1101
    %1103 = vdwg.mxu0
    %1104 = vmatpush.bf16.msra.mxu0 %v784
    %1105 = vmatpush.bf16.msra.mxu0 %v780
    %1106 = vmatpush.bf16.msra.mxu0 %v776
    %1107 = vmatpush.bf16.msra.mxu0 %v772
    %1108 = vmatpush.bf16.msra.mxu0 %v768
    %1109 = vmatpush.bf16.msra.mxu0 %v764
    %1110 = vmatpush.bf16.msra.mxu0 %v760
    %1111 = vmatpush.bf16.msra.mxu0 %v756
    %1112 = vmatmul.bf16.gmra.mxu0 %v331
    %v1113 = vpop.f32.mrf.mxu0
    %v1114 = vadd.f32 %v1100, %v1113
    %v1115 = vpop.f32.mrf.mxu0
    %v1116 = vadd.f32 %v1102, %v1115
    %1117 = vdwg.mxu0
    %1118 = vmatpush.bf16.msra.mxu0 %v816
    %1119 = vmatpush.bf16.msra.mxu0 %v812
    %1120 = vmatpush.bf16.msra.mxu0 %v808
    %1121 = vmatpush.bf16.msra.mxu0 %v804
    %1122 = vmatpush.bf16.msra.mxu0 %v800
    %1123 = vmatpush.bf16.msra.mxu0 %v796
    %1124 = vmatpush.bf16.msra.mxu0 %v792
    %1125 = vmatpush.bf16.msra.mxu0 %v788
    %1126 = vmatmul.bf16.gmra.mxu0 %v332
    %v1127 = vpop.f32.mrf.mxu0
    %v1128 = vadd.f32 %v1114, %v1127
    %v1129 = vpop.f32.mrf.mxu0
    %v1130 = vadd.f32 %v1116, %v1129
    %1131 = vdwg.mxu0
    %1132 = vmatpush.bf16.msra.mxu0 %v848
    %1133 = vmatpush.bf16.msra.mxu0 %v844
    %1134 = vmatpush.bf16.msra.mxu0 %v840
    %1135 = vmatpush.bf16.msra.mxu0 %v836
    %1136 = vmatpush.bf16.msra.mxu0 %v832
    %1137 = vmatpush.bf16.msra.mxu0 %v828
    %1138 = vmatpush.bf16.msra.mxu0 %v824
    %1139 = vmatpush.bf16.msra.mxu0 %v820
    %1140 = vmatmul.bf16.gmra.mxu0 %v333
    %v1141 = vpop.f32.mrf.mxu0
    %v1142 = vadd.f32 %v1128, %v1141
    %v1143 = vpop.f32.mrf.mxu0
    %v1144 = vadd.f32 %v1130, %v1143
    %1145 = vdwg.mxu0
    %1146 = vmatpush.bf16.msra.mxu0 %v753
    %1147 = vmatpush.bf16.msra.mxu0 %v749
    %1148 = vmatpush.bf16.msra.mxu0 %v745
    %1149 = vmatpush.bf16.msra.mxu0 %v741
    %1150 = vmatpush.bf16.msra.mxu0 %v737
    %1151 = vmatpush.bf16.msra.mxu0 %v733
    %1152 = vmatpush.bf16.msra.mxu0 %v729
    %1153 = vmatpush.bf16.msra.mxu0 %v725
    %1154 = vmatmul.bf16.gmra.mxu0 %v330
    %v1155 = vpop.f32.mrf.mxu0
    %v1156 = vadd.f32 %v313, %v1155
    %v1157 = vpop.f32.mrf.mxu0
    %v1158 = vadd.f32 %v313, %v1157
    %1159 = vdwg.mxu0
    %1160 = vmatpush.bf16.msra.mxu0 %v785
    %1161 = vmatpush.bf16.msra.mxu0 %v781
    %1162 = vmatpush.bf16.msra.mxu0 %v777
    %1163 = vmatpush.bf16.msra.mxu0 %v773
    %1164 = vmatpush.bf16.msra.mxu0 %v769
    %1165 = vmatpush.bf16.msra.mxu0 %v765
    %1166 = vmatpush.bf16.msra.mxu0 %v761
    %1167 = vmatpush.bf16.msra.mxu0 %v757
    %1168 = vmatmul.bf16.gmra.mxu0 %v331
    %v1169 = vpop.f32.mrf.mxu0
    %v1170 = vadd.f32 %v1156, %v1169
    %v1171 = vpop.f32.mrf.mxu0
    %v1172 = vadd.f32 %v1158, %v1171
    %1173 = vdwg.mxu0
    %1174 = vmatpush.bf16.msra.mxu0 %v817
    %1175 = vmatpush.bf16.msra.mxu0 %v813
    %1176 = vmatpush.bf16.msra.mxu0 %v809
    %1177 = vmatpush.bf16.msra.mxu0 %v805
    %1178 = vmatpush.bf16.msra.mxu0 %v801
    %1179 = vmatpush.bf16.msra.mxu0 %v797
    %1180 = vmatpush.bf16.msra.mxu0 %v793
    %1181 = vmatpush.bf16.msra.mxu0 %v789
    %1182 = vmatmul.bf16.gmra.mxu0 %v332
    %v1183 = vpop.f32.mrf.mxu0
    %v1184 = vadd.f32 %v1170, %v1183
    %v1185 = vpop.f32.mrf.mxu0
    %v1186 = vadd.f32 %v1172, %v1185
    %1187 = vdwg.mxu0
    %1188 = vmatpush.bf16.msra.mxu0 %v849
    %1189 = vmatpush.bf16.msra.mxu0 %v845
    %1190 = vmatpush.bf16.msra.mxu0 %v841
    %1191 = vmatpush.bf16.msra.mxu0 %v837
    %1192 = vmatpush.bf16.msra.mxu0 %v833
    %1193 = vmatpush.bf16.msra.mxu0 %v829
    %1194 = vmatpush.bf16.msra.mxu0 %v825
    %1195 = vmatpush.bf16.msra.mxu0 %v821
    %1196 = vmatmul.bf16.gmra.mxu0 %v333
    %v1197 = vpop.f32.mrf.mxu0
    %v1198 = vadd.f32 %v1184, %v1197
    %v1199 = vpop.f32.mrf.mxu0
    %v1200 = vadd.f32 %v1186, %v1199
    %1201 = vdwg.mxu0
    %1202 = vst [vmem:[#allocation2] sm:$0xff] %v1030
    %1203 = vst [vmem:[#allocation2 + $0x8] sm:$0xff] %v1086
    %1204 = vst [vmem:[#allocation2 + $0x10] sm:$0xff] %v1142
    %1205 = vst [vmem:[#allocation2 + $0x18] sm:$0xff] %v1198
    %1206 = vst [vmem:[#allocation2 + $0x20] sm:$0xff] %v1032
    %1207 = vst [vmem:[#allocation2 + $0x28] sm:$0xff] %v1088
    %1208 = vst [vmem:[#allocation2 + $0x30] sm:$0xff] %v1144
    %1209 = vst [vmem:[#allocation2 + $0x38] sm:$0xff] %v1200
    %v1210 = vld [vmem:[#allocation9] sm:$0xff]
    %v1211 = vld [vmem:[#allocation9 + $0x8] sm:$0xff]
    %v1212 = vld [vmem:[#allocation9 + $0x10] sm:$0xff]
    %v1213 = vld [vmem:[#allocation9 + $0x18] sm:$0xff]
    %v1214 = vld [vmem:[#allocation15] sm:$0xff]
    %v1215 = vld [vmem:[#allocation15 + $0x8] sm:$0xff]
    %v1216 = vld [vmem:[#allocation15 + $0x10] sm:$0xff]
    %v1217 = vld [vmem:[#allocation15 + $0x18] sm:$0xff]
    %v1218 = vld [vmem:[#allocation15 + $0x20] sm:$0xff]
    %v1219 = vld [vmem:[#allocation15 + $0x28] sm:$0xff]
    %v1220 = vld [vmem:[#allocation15 + $0x30] sm:$0xff]
    %v1221 = vld [vmem:[#allocation15 + $0x38] sm:$0xff]
    %v1222 = vld [vmem:[#allocation15 + $0x40] sm:$0xff]
    %v1223 = vld [vmem:[#allocation15 + $0x48] sm:$0xff]
    %v1224 = vld [vmem:[#allocation15 + $0x50] sm:$0xff]
    %v1225 = vld [vmem:[#allocation15 + $0x58] sm:$0xff]
    %v1226 = vld [vmem:[#allocation15 + $0x60] sm:$0xff]
    %v1227 = vld [vmem:[#allocation15 + $0x68] sm:$0xff]
    %v1228 = vld [vmem:[#allocation15 + $0x70] sm:$0xff]
    %v1229 = vld [vmem:[#allocation15 + $0x78] sm:$0xff]
    %v1230 = vld [vmem:[#allocation15 + $0x80] sm:$0xff]
    %v1231 = vld [vmem:[#allocation15 + $0x88] sm:$0xff]
    %v1232 = vld [vmem:[#allocation15 + $0x90] sm:$0xff]
    %v1233 = vld [vmem:[#allocation15 + $0x98] sm:$0xff]
    %v1234 = vld [vmem:[#allocation15 + $0xa0] sm:$0xff]
    %v1235 = vld [vmem:[#allocation15 + $0xa8] sm:$0xff]
    %v1236 = vld [vmem:[#allocation15 + $0xb0] sm:$0xff]
    %v1237 = vld [vmem:[#allocation15 + $0xb8] sm:$0xff]
    %v1238 = vld [vmem:[#allocation15 + $0xc0] sm:$0xff]
    %v1239 = vld [vmem:[#allocation15 + $0xc8] sm:$0xff]
    %v1240 = vld [vmem:[#allocation15 + $0xd0] sm:$0xff]
    %v1241 = vld [vmem:[#allocation15 + $0xd8] sm:$0xff]
    %v1242 = vld [vmem:[#allocation15 + $0xe0] sm:$0xff]
    %v1243 = vld [vmem:[#allocation15 + $0xe8] sm:$0xff]
    %v1244 = vld [vmem:[#allocation15 + $0xf0] sm:$0xff]
    %v1245 = vld [vmem:[#allocation15 + $0xf8] sm:$0xff]
    %v1246 = vld [vmem:[#allocation15 + $0x100] sm:$0xff]
    %v1247 = vld [vmem:[#allocation15 + $0x108] sm:$0xff]
    %v1248 = vld [vmem:[#allocation15 + $0x110] sm:$0xff]
    %v1249 = vld [vmem:[#allocation15 + $0x118] sm:$0xff]
    %v1250 = vld [vmem:[#allocation15 + $0x120] sm:$0xff]
    %v1251 = vld [vmem:[#allocation15 + $0x128] sm:$0xff]
    %v1252 = vld [vmem:[#allocation15 + $0x130] sm:$0xff]
    %v1253 = vld [vmem:[#allocation15 + $0x138] sm:$0xff]
    %v1254 = vld [vmem:[#allocation15 + $0x140] sm:$0xff]
    %v1255 = vld [vmem:[#allocation15 + $0x148] sm:$0xff]
    %v1256 = vld [vmem:[#allocation15 + $0x150] sm:$0xff]
    %v1257 = vld [vmem:[#allocation15 + $0x158] sm:$0xff]
    %v1258 = vld [vmem:[#allocation15 + $0x160] sm:$0xff]
    %v1259 = vld [vmem:[#allocation15 + $0x168] sm:$0xff]
    %v1260 = vld [vmem:[#allocation15 + $0x170] sm:$0xff]
    %v1261 = vld [vmem:[#allocation15 + $0x178] sm:$0xff]
    %v1262 = vld [vmem:[#allocation15 + $0x180] sm:$0xff]
    %v1263 = vld [vmem:[#allocation15 + $0x188] sm:$0xff]
    %v1264 = vld [vmem:[#allocation15 + $0x190] sm:$0xff]
    %v1265 = vld [vmem:[#allocation15 + $0x198] sm:$0xff]
    %v1266 = vld [vmem:[#allocation15 + $0x1a0] sm:$0xff]
    %v1267 = vld [vmem:[#allocation15 + $0x1a8] sm:$0xff]
    %v1268 = vld [vmem:[#allocation15 + $0x1b0] sm:$0xff]
    %v1269 = vld [vmem:[#allocation15 + $0x1b8] sm:$0xff]
    %v1270 = vld [vmem:[#allocation15 + $0x1c0] sm:$0xff]
    %v1271 = vld [vmem:[#allocation15 + $0x1c8] sm:$0xff]
    %v1272 = vld [vmem:[#allocation15 + $0x1d0] sm:$0xff]
    %v1273 = vld [vmem:[#allocation15 + $0x1d8] sm:$0xff]
    %v1274 = vld [vmem:[#allocation15 + $0x1e0] sm:$0xff]
    %v1275 = vld [vmem:[#allocation15 + $0x1e8] sm:$0xff]
    %v1276 = vld [vmem:[#allocation15 + $0x1f0] sm:$0xff]
    %v1277 = vld [vmem:[#allocation15 + $0x1f8] sm:$0xff]
    %v1278 = vld [vmem:[#allocation15 + $0x200] sm:$0xff]
    %v1279 = vld [vmem:[#allocation15 + $0x208] sm:$0xff]
    %v1280 = vld [vmem:[#allocation15 + $0x210] sm:$0xff]
    %v1281 = vld [vmem:[#allocation15 + $0x218] sm:$0xff]
    %v1282 = vld [vmem:[#allocation15 + $0x220] sm:$0xff]
    %v1283 = vld [vmem:[#allocation15 + $0x228] sm:$0xff]
    %v1284 = vld [vmem:[#allocation15 + $0x230] sm:$0xff]
    %v1285 = vld [vmem:[#allocation15 + $0x238] sm:$0xff]
    %v1286 = vld [vmem:[#allocation15 + $0x240] sm:$0xff]
    %v1287 = vld [vmem:[#allocation15 + $0x248] sm:$0xff]
    %v1288 = vld [vmem:[#allocation15 + $0x250] sm:$0xff]
    %v1289 = vld [vmem:[#allocation15 + $0x258] sm:$0xff]
    %v1290 = vld [vmem:[#allocation15 + $0x260] sm:$0xff]
    %v1291 = vld [vmem:[#allocation15 + $0x268] sm:$0xff]
    %v1292 = vld [vmem:[#allocation15 + $0x270] sm:$0xff]
    %v1293 = vld [vmem:[#allocation15 + $0x278] sm:$0xff]
    %v1294 = vld [vmem:[#allocation15 + $0x280] sm:$0xff]
    %v1295 = vld [vmem:[#allocation15 + $0x288] sm:$0xff]
    %v1296 = vld [vmem:[#allocation15 + $0x290] sm:$0xff]
    %v1297 = vld [vmem:[#allocation15 + $0x298] sm:$0xff]
    %v1298 = vld [vmem:[#allocation15 + $0x2a0] sm:$0xff]
    %v1299 = vld [vmem:[#allocation15 + $0x2a8] sm:$0xff]
    %v1300 = vld [vmem:[#allocation15 + $0x2b0] sm:$0xff]
    %v1301 = vld [vmem:[#allocation15 + $0x2b8] sm:$0xff]
    %v1302 = vld [vmem:[#allocation15 + $0x2c0] sm:$0xff]
    %v1303 = vld [vmem:[#allocation15 + $0x2c8] sm:$0xff]
    %v1304 = vld [vmem:[#allocation15 + $0x2d0] sm:$0xff]
    %v1305 = vld [vmem:[#allocation15 + $0x2d8] sm:$0xff]
    %v1306 = vld [vmem:[#allocation15 + $0x2e0] sm:$0xff]
    %v1307 = vld [vmem:[#allocation15 + $0x2e8] sm:$0xff]
    %v1308 = vld [vmem:[#allocation15 + $0x2f0] sm:$0xff]
    %v1309 = vld [vmem:[#allocation15 + $0x2f8] sm:$0xff]
    %v1310 = vld [vmem:[#allocation15 + $0x300] sm:$0xff]
    %v1311 = vld [vmem:[#allocation15 + $0x308] sm:$0xff]
    %v1312 = vld [vmem:[#allocation15 + $0x310] sm:$0xff]
    %v1313 = vld [vmem:[#allocation15 + $0x318] sm:$0xff]
    %v1314 = vld [vmem:[#allocation15 + $0x320] sm:$0xff]
    %v1315 = vld [vmem:[#allocation15 + $0x328] sm:$0xff]
    %v1316 = vld [vmem:[#allocation15 + $0x330] sm:$0xff]
    %v1317 = vld [vmem:[#allocation15 + $0x338] sm:$0xff]
    %v1318 = vld [vmem:[#allocation15 + $0x340] sm:$0xff]
    %v1319 = vld [vmem:[#allocation15 + $0x348] sm:$0xff]
    %v1320 = vld [vmem:[#allocation15 + $0x350] sm:$0xff]
    %v1321 = vld [vmem:[#allocation15 + $0x358] sm:$0xff]
    %v1322 = vld [vmem:[#allocation15 + $0x360] sm:$0xff]
    %v1323 = vld [vmem:[#allocation15 + $0x368] sm:$0xff]
    %v1324 = vld [vmem:[#allocation15 + $0x370] sm:$0xff]
    %v1325 = vld [vmem:[#allocation15 + $0x378] sm:$0xff]
    %v1326 = vld [vmem:[#allocation15 + $0x380] sm:$0xff]
    %v1327 = vld [vmem:[#allocation15 + $0x388] sm:$0xff]
    %v1328 = vld [vmem:[#allocation15 + $0x390] sm:$0xff]
    %v1329 = vld [vmem:[#allocation15 + $0x398] sm:$0xff]
    %v1330 = vld [vmem:[#allocation15 + $0x3a0] sm:$0xff]
    %v1331 = vld [vmem:[#allocation15 + $0x3a8] sm:$0xff]
    %v1332 = vld [vmem:[#allocation15 + $0x3b0] sm:$0xff]
    %v1333 = vld [vmem:[#allocation15 + $0x3b8] sm:$0xff]
    %v1334 = vld [vmem:[#allocation15 + $0x3c0] sm:$0xff]
    %v1335 = vld [vmem:[#allocation15 + $0x3c8] sm:$0xff]
    %v1336 = vld [vmem:[#allocation15 + $0x3d0] sm:$0xff]
    %v1337 = vld [vmem:[#allocation15 + $0x3d8] sm:$0xff]
    %v1338 = vld [vmem:[#allocation15 + $0x3e0] sm:$0xff]
    %v1339 = vld [vmem:[#allocation15 + $0x3e8] sm:$0xff]
    %v1340 = vld [vmem:[#allocation15 + $0x3f0] sm:$0xff]
    %v1341 = vld [vmem:[#allocation15 + $0x3f8] sm:$0xff]
    %v1342 = vld [vmem:[%s6] sm:$0xf]
    %v1344 = vperm.slane %v1342, 0
    %v1345 = vperm.slane %v1342, 1
    %v1346 = vperm.slane %v1342, 2
    %v1347 = vperm.slane %v1342, 3
    %v1356 = vunpack.c.l.b16 %v1210
    %v1357 = vunpack.c.h.b16 %v1210
    %v1358 = vunpack.c.l.b16 %v1211
    %v1359 = vunpack.c.h.b16 %v1211
    %v1360 = vunpack.c.l.b16 %v1212
    %v1361 = vunpack.c.h.b16 %v1212
    %v1362 = vunpack.c.l.b16 %v1213
    %v1363 = vunpack.c.h.b16 %v1213
    %v1364 = vpack.c.b16 %v1360, %v1356
    %v1365 = vpack.c.b16 %v1361, %v1357
    %v1366 = vpack.c.b16 %v1362, %v1358
    %v1367 = vpack.c.b16 %v1363, %v1359
    %v1500 = vunpack.c.l.b16 %v1214
    %v1501 = vunpack.c.h.b16 %v1214
    %v1502 = vunpack.c.l.b16 %v1215
    %v1503 = vunpack.c.h.b16 %v1215
    %v1504 = vunpack.c.l.b16 %v1216
    %v1505 = vunpack.c.h.b16 %v1216
    %v1506 = vunpack.c.l.b16 %v1217
    %v1507 = vunpack.c.h.b16 %v1217
    %v1508 = vunpack.c.l.b16 %v1218
    %v1509 = vunpack.c.h.b16 %v1218
    %v1510 = vunpack.c.l.b16 %v1219
    %v1511 = vunpack.c.h.b16 %v1219
    %v1512 = vunpack.c.l.b16 %v1220
    %v1513 = vunpack.c.h.b16 %v1220
    %v1514 = vunpack.c.l.b16 %v1221
    %v1515 = vunpack.c.h.b16 %v1221
    %v1516 = vunpack.c.l.b16 %v1222
    %v1517 = vunpack.c.h.b16 %v1222
    %v1518 = vunpack.c.l.b16 %v1223
    %v1519 = vunpack.c.h.b16 %v1223
    %v1520 = vunpack.c.l.b16 %v1224
    %v1521 = vunpack.c.h.b16 %v1224
    %v1522 = vunpack.c.l.b16 %v1225
    %v1523 = vunpack.c.h.b16 %v1225
    %v1524 = vunpack.c.l.b16 %v1226
    %v1525 = vunpack.c.h.b16 %v1226
    %v1526 = vunpack.c.l.b16 %v1227
    %v1527 = vunpack.c.h.b16 %v1227
    %v1528 = vunpack.c.l.b16 %v1228
    %v1529 = vunpack.c.h.b16 %v1228
    %v1530 = vunpack.c.l.b16 %v1229
    %v1531 = vunpack.c.h.b16 %v1229
    %v1532 = vunpack.c.l.b16 %v1230
    %v1533 = vunpack.c.h.b16 %v1230
    %v1534 = vunpack.c.l.b16 %v1231
    %v1535 = vunpack.c.h.b16 %v1231
    %v1536 = vunpack.c.l.b16 %v1232
    %v1537 = vunpack.c.h.b16 %v1232
    %v1538 = vunpack.c.l.b16 %v1233
    %v1539 = vunpack.c.h.b16 %v1233
    %v1540 = vunpack.c.l.b16 %v1234
    %v1541 = vunpack.c.h.b16 %v1234
    %v1542 = vunpack.c.l.b16 %v1235
    %v1543 = vunpack.c.h.b16 %v1235
    %v1544 = vunpack.c.l.b16 %v1236
    %v1545 = vunpack.c.h.b16 %v1236
    %v1546 = vunpack.c.l.b16 %v1237
    %v1547 = vunpack.c.h.b16 %v1237
    %v1548 = vunpack.c.l.b16 %v1238
    %v1549 = vunpack.c.h.b16 %v1238
    %v1550 = vunpack.c.l.b16 %v1239
    %v1551 = vunpack.c.h.b16 %v1239
    %v1552 = vunpack.c.l.b16 %v1240
    %v1553 = vunpack.c.h.b16 %v1240
    %v1554 = vunpack.c.l.b16 %v1241
    %v1555 = vunpack.c.h.b16 %v1241
    %v1556 = vunpack.c.l.b16 %v1242
    %v1557 = vunpack.c.h.b16 %v1242
    %v1558 = vunpack.c.l.b16 %v1243
    %v1559 = vunpack.c.h.b16 %v1243
    %v1560 = vunpack.c.l.b16 %v1244
    %v1561 = vunpack.c.h.b16 %v1244
    %v1562 = vunpack.c.l.b16 %v1245
    %v1563 = vunpack.c.h.b16 %v1245
    %v1564 = vunpack.c.l.b16 %v1246
    %v1565 = vunpack.c.h.b16 %v1246
    %v1566 = vunpack.c.l.b16 %v1247
    %v1567 = vunpack.c.h.b16 %v1247
    %v1568 = vunpack.c.l.b16 %v1248
    %v1569 = vunpack.c.h.b16 %v1248
    %v1570 = vunpack.c.l.b16 %v1249
    %v1571 = vunpack.c.h.b16 %v1249
    %v1572 = vunpack.c.l.b16 %v1250
    %v1573 = vunpack.c.h.b16 %v1250
    %v1574 = vunpack.c.l.b16 %v1251
    %v1575 = vunpack.c.h.b16 %v1251
    %v1576 = vunpack.c.l.b16 %v1252
    %v1577 = vunpack.c.h.b16 %v1252
    %v1578 = vunpack.c.l.b16 %v1253
    %v1579 = vunpack.c.h.b16 %v1253
    %v1580 = vunpack.c.l.b16 %v1254
    %v1581 = vunpack.c.h.b16 %v1254
    %v1582 = vunpack.c.l.b16 %v1255
    %v1583 = vunpack.c.h.b16 %v1255
    %v1584 = vunpack.c.l.b16 %v1256
    %v1585 = vunpack.c.h.b16 %v1256
    %v1586 = vunpack.c.l.b16 %v1257
    %v1587 = vunpack.c.h.b16 %v1257
    %v1588 = vunpack.c.l.b16 %v1258
    %v1589 = vunpack.c.h.b16 %v1258
    %v1590 = vunpack.c.l.b16 %v1259
    %v1591 = vunpack.c.h.b16 %v1259
    %v1592 = vunpack.c.l.b16 %v1260
    %v1593 = vunpack.c.h.b16 %v1260
    %v1594 = vunpack.c.l.b16 %v1261
    %v1595 = vunpack.c.h.b16 %v1261
    %v1596 = vunpack.c.l.b16 %v1262
    %v1597 = vunpack.c.h.b16 %v1262
    %v1598 = vunpack.c.l.b16 %v1263
    %v1599 = vunpack.c.h.b16 %v1263
    %v1600 = vunpack.c.l.b16 %v1264
    %v1601 = vunpack.c.h.b16 %v1264
    %v1602 = vunpack.c.l.b16 %v1265
    %v1603 = vunpack.c.h.b16 %v1265
    %v1604 = vunpack.c.l.b16 %v1266
    %v1605 = vunpack.c.h.b16 %v1266
    %v1606 = vunpack.c.l.b16 %v1267
    %v1607 = vunpack.c.h.b16 %v1267
    %v1608 = vunpack.c.l.b16 %v1268
    %v1609 = vunpack.c.h.b16 %v1268
    %v1610 = vunpack.c.l.b16 %v1269
    %v1611 = vunpack.c.h.b16 %v1269
    %v1612 = vunpack.c.l.b16 %v1270
    %v1613 = vunpack.c.h.b16 %v1270
    %v1614 = vunpack.c.l.b16 %v1271
    %v1615 = vunpack.c.h.b16 %v1271
    %v1616 = vunpack.c.l.b16 %v1272
    %v1617 = vunpack.c.h.b16 %v1272
    %v1618 = vunpack.c.l.b16 %v1273
    %v1619 = vunpack.c.h.b16 %v1273
    %v1620 = vunpack.c.l.b16 %v1274
    %v1621 = vunpack.c.h.b16 %v1274
    %v1622 = vunpack.c.l.b16 %v1275
    %v1623 = vunpack.c.h.b16 %v1275
    %v1624 = vunpack.c.l.b16 %v1276
    %v1625 = vunpack.c.h.b16 %v1276
    %v1626 = vunpack.c.l.b16 %v1277
    %v1627 = vunpack.c.h.b16 %v1277
    %v1628 = vunpack.c.l.b16 %v1278
    %v1629 = vunpack.c.h.b16 %v1278
    %v1630 = vunpack.c.l.b16 %v1279
    %v1631 = vunpack.c.h.b16 %v1279
    %v1632 = vunpack.c.l.b16 %v1280
    %v1633 = vunpack.c.h.b16 %v1280
    %v1634 = vunpack.c.l.b16 %v1281
    %v1635 = vunpack.c.h.b16 %v1281
    %v1636 = vunpack.c.l.b16 %v1282
    %v1637 = vunpack.c.h.b16 %v1282
    %v1638 = vunpack.c.l.b16 %v1283
    %v1639 = vunpack.c.h.b16 %v1283
    %v1640 = vunpack.c.l.b16 %v1284
    %v1641 = vunpack.c.h.b16 %v1284
    %v1642 = vunpack.c.l.b16 %v1285
    %v1643 = vunpack.c.h.b16 %v1285
    %v1644 = vunpack.c.l.b16 %v1286
    %v1645 = vunpack.c.h.b16 %v1286
    %v1646 = vunpack.c.l.b16 %v1287
    %v1647 = vunpack.c.h.b16 %v1287
    %v1648 = vunpack.c.l.b16 %v1288
    %v1649 = vunpack.c.h.b16 %v1288
    %v1650 = vunpack.c.l.b16 %v1289
    %v1651 = vunpack.c.h.b16 %v1289
    %v1652 = vunpack.c.l.b16 %v1290
    %v1653 = vunpack.c.h.b16 %v1290
    %v1654 = vunpack.c.l.b16 %v1291
    %v1655 = vunpack.c.h.b16 %v1291
    %v1656 = vunpack.c.l.b16 %v1292
    %v1657 = vunpack.c.h.b16 %v1292
    %v1658 = vunpack.c.l.b16 %v1293
    %v1659 = vunpack.c.h.b16 %v1293
    %v1660 = vunpack.c.l.b16 %v1294
    %v1661 = vunpack.c.h.b16 %v1294
    %v1662 = vunpack.c.l.b16 %v1295
    %v1663 = vunpack.c.h.b16 %v1295
    %v1664 = vunpack.c.l.b16 %v1296
    %v1665 = vunpack.c.h.b16 %v1296
    %v1666 = vunpack.c.l.b16 %v1297
    %v1667 = vunpack.c.h.b16 %v1297
    %v1668 = vunpack.c.l.b16 %v1298
    %v1669 = vunpack.c.h.b16 %v1298
    %v1670 = vunpack.c.l.b16 %v1299
    %v1671 = vunpack.c.h.b16 %v1299
    %v1672 = vunpack.c.l.b16 %v1300
    %v1673 = vunpack.c.h.b16 %v1300
    %v1674 = vunpack.c.l.b16 %v1301
    %v1675 = vunpack.c.h.b16 %v1301
    %v1676 = vunpack.c.l.b16 %v1302
    %v1677 = vunpack.c.h.b16 %v1302
    %v1678 = vunpack.c.l.b16 %v1303
    %v1679 = vunpack.c.h.b16 %v1303
    %v1680 = vunpack.c.l.b16 %v1304
    %v1681 = vunpack.c.h.b16 %v1304
    %v1682 = vunpack.c.l.b16 %v1305
    %v1683 = vunpack.c.h.b16 %v1305
    %v1684 = vunpack.c.l.b16 %v1306
    %v1685 = vunpack.c.h.b16 %v1306
    %v1686 = vunpack.c.l.b16 %v1307
    %v1687 = vunpack.c.h.b16 %v1307
    %v1688 = vunpack.c.l.b16 %v1308
    %v1689 = vunpack.c.h.b16 %v1308
    %v1690 = vunpack.c.l.b16 %v1309
    %v1691 = vunpack.c.h.b16 %v1309
    %v1692 = vunpack.c.l.b16 %v1310
    %v1693 = vunpack.c.h.b16 %v1310
    %v1694 = vunpack.c.l.b16 %v1311
    %v1695 = vunpack.c.h.b16 %v1311
    %v1696 = vunpack.c.l.b16 %v1312
    %v1697 = vunpack.c.h.b16 %v1312
    %v1698 = vunpack.c.l.b16 %v1313
    %v1699 = vunpack.c.h.b16 %v1313
    %v1700 = vunpack.c.l.b16 %v1314
    %v1701 = vunpack.c.h.b16 %v1314
    %v1702 = vunpack.c.l.b16 %v1315
    %v1703 = vunpack.c.h.b16 %v1315
    %v1704 = vunpack.c.l.b16 %v1316
    %v1705 = vunpack.c.h.b16 %v1316
    %v1706 = vunpack.c.l.b16 %v1317
    %v1707 = vunpack.c.h.b16 %v1317
    %v1708 = vunpack.c.l.b16 %v1318
    %v1709 = vunpack.c.h.b16 %v1318
    %v1710 = vunpack.c.l.b16 %v1319
    %v1711 = vunpack.c.h.b16 %v1319
    %v1712 = vunpack.c.l.b16 %v1320
    %v1713 = vunpack.c.h.b16 %v1320
    %v1714 = vunpack.c.l.b16 %v1321
    %v1715 = vunpack.c.h.b16 %v1321
    %v1716 = vunpack.c.l.b16 %v1322
    %v1717 = vunpack.c.h.b16 %v1322
    %v1718 = vunpack.c.l.b16 %v1323
    %v1719 = vunpack.c.h.b16 %v1323
    %v1720 = vunpack.c.l.b16 %v1324
    %v1721 = vunpack.c.h.b16 %v1324
    %v1722 = vunpack.c.l.b16 %v1325
    %v1723 = vunpack.c.h.b16 %v1325
    %v1724 = vunpack.c.l.b16 %v1326
    %v1725 = vunpack.c.h.b16 %v1326
    %v1726 = vunpack.c.l.b16 %v1327
    %v1727 = vunpack.c.h.b16 %v1327
    %v1728 = vunpack.c.l.b16 %v1328
    %v1729 = vunpack.c.h.b16 %v1328
    %v1730 = vunpack.c.l.b16 %v1329
    %v1731 = vunpack.c.h.b16 %v1329
    %v1732 = vunpack.c.l.b16 %v1330
    %v1733 = vunpack.c.h.b16 %v1330
    %v1734 = vunpack.c.l.b16 %v1331
    %v1735 = vunpack.c.h.b16 %v1331
    %v1736 = vunpack.c.l.b16 %v1332
    %v1737 = vunpack.c.h.b16 %v1332
    %v1738 = vunpack.c.l.b16 %v1333
    %v1739 = vunpack.c.h.b16 %v1333
    %v1740 = vunpack.c.l.b16 %v1334
    %v1741 = vunpack.c.h.b16 %v1334
    %v1742 = vunpack.c.l.b16 %v1335
    %v1743 = vunpack.c.h.b16 %v1335
    %v1744 = vunpack.c.l.b16 %v1336
    %v1745 = vunpack.c.h.b16 %v1336
    %v1746 = vunpack.c.l.b16 %v1337
    %v1747 = vunpack.c.h.b16 %v1337
    %v1748 = vunpack.c.l.b16 %v1338
    %v1749 = vunpack.c.h.b16 %v1338
    %v1750 = vunpack.c.l.b16 %v1339
    %v1751 = vunpack.c.h.b16 %v1339
    %v1752 = vunpack.c.l.b16 %v1340
    %v1753 = vunpack.c.h.b16 %v1340
    %v1754 = vunpack.c.l.b16 %v1341
    %v1755 = vunpack.c.h.b16 %v1341
    %v1756 = vpack.c.b16 %v1504, %v1500
    %v1757 = vpack.c.b16 %v1505, %v1501
    %v1758 = vpack.c.b16 %v1506, %v1502
    %v1759 = vpack.c.b16 %v1507, %v1503
    %v1760 = vpack.c.b16 %v1512, %v1508
    %v1761 = vpack.c.b16 %v1513, %v1509
    %v1762 = vpack.c.b16 %v1514, %v1510
    %v1763 = vpack.c.b16 %v1515, %v1511
    %v1764 = vpack.c.b16 %v1520, %v1516
    %v1765 = vpack.c.b16 %v1521, %v1517
    %v1766 = vpack.c.b16 %v1522, %v1518
    %v1767 = vpack.c.b16 %v1523, %v1519
    %v1768 = vpack.c.b16 %v1528, %v1524
    %v1769 = vpack.c.b16 %v1529, %v1525
    %v1770 = vpack.c.b16 %v1530, %v1526
    %v1771 = vpack.c.b16 %v1531, %v1527
    %v1772 = vpack.c.b16 %v1536, %v1532
    %v1773 = vpack.c.b16 %v1537, %v1533
    %v1774 = vpack.c.b16 %v1538, %v1534
    %v1775 = vpack.c.b16 %v1539, %v1535
    %v1776 = vpack.c.b16 %v1544, %v1540
    %v1777 = vpack.c.b16 %v1545, %v1541
    %v1778 = vpack.c.b16 %v1546, %v1542
    %v1779 = vpack.c.b16 %v1547, %v1543
    %v1780 = vpack.c.b16 %v1552, %v1548
    %v1781 = vpack.c.b16 %v1553, %v1549
    %v1782 = vpack.c.b16 %v1554, %v1550
    %v1783 = vpack.c.b16 %v1555, %v1551
    %v1784 = vpack.c.b16 %v1560, %v1556
    %v1785 = vpack.c.b16 %v1561, %v1557
    %v1786 = vpack.c.b16 %v1562, %v1558
    %v1787 = vpack.c.b16 %v1563, %v1559
    %v1788 = vpack.c.b16 %v1568, %v1564
    %v1789 = vpack.c.b16 %v1569, %v1565
    %v1790 = vpack.c.b16 %v1570, %v1566
    %v1791 = vpack.c.b16 %v1571, %v1567
    %v1792 = vpack.c.b16 %v1576, %v1572
    %v1793 = vpack.c.b16 %v1577, %v1573
    %v1794 = vpack.c.b16 %v1578, %v1574
    %v1795 = vpack.c.b16 %v1579, %v1575
    %v1796 = vpack.c.b16 %v1584, %v1580
    %v1797 = vpack.c.b16 %v1585, %v1581
    %v1798 = vpack.c.b16 %v1586, %v1582
    %v1799 = vpack.c.b16 %v1587, %v1583
    %v1800 = vpack.c.b16 %v1592, %v1588
    %v1801 = vpack.c.b16 %v1593, %v1589
    %v1802 = vpack.c.b16 %v1594, %v1590
    %v1803 = vpack.c.b16 %v1595, %v1591
    %v1804 = vpack.c.b16 %v1600, %v1596
    %v1805 = vpack.c.b16 %v1601, %v1597
    %v1806 = vpack.c.b16 %v1602, %v1598
    %v1807 = vpack.c.b16 %v1603, %v1599
    %v1808 = vpack.c.b16 %v1608, %v1604
    %v1809 = vpack.c.b16 %v1609, %v1605
    %v1810 = vpack.c.b16 %v1610, %v1606
    %v1811 = vpack.c.b16 %v1611, %v1607
    %v1812 = vpack.c.b16 %v1616, %v1612
    %v1813 = vpack.c.b16 %v1617, %v1613
    %v1814 = vpack.c.b16 %v1618, %v1614
    %v1815 = vpack.c.b16 %v1619, %v1615
    %v1816 = vpack.c.b16 %v1624, %v1620
    %v1817 = vpack.c.b16 %v1625, %v1621
    %v1818 = vpack.c.b16 %v1626, %v1622
    %v1819 = vpack.c.b16 %v1627, %v1623
    %v1820 = vpack.c.b16 %v1632, %v1628
    %v1821 = vpack.c.b16 %v1633, %v1629
    %v1822 = vpack.c.b16 %v1634, %v1630
    %v1823 = vpack.c.b16 %v1635, %v1631
    %v1824 = vpack.c.b16 %v1640, %v1636
    %v1825 = vpack.c.b16 %v1641, %v1637
    %v1826 = vpack.c.b16 %v1642, %v1638
    %v1827 = vpack.c.b16 %v1643, %v1639
    %v1828 = vpack.c.b16 %v1648, %v1644
    %v1829 = vpack.c.b16 %v1649, %v1645
    %v1830 = vpack.c.b16 %v1650, %v1646
    %v1831 = vpack.c.b16 %v1651, %v1647
    %v1832 = vpack.c.b16 %v1656, %v1652
    %v1833 = vpack.c.b16 %v1657, %v1653
    %v1834 = vpack.c.b16 %v1658, %v1654
    %v1835 = vpack.c.b16 %v1659, %v1655
    %v1836 = vpack.c.b16 %v1664, %v1660
    %v1837 = vpack.c.b16 %v1665, %v1661
    %v1838 = vpack.c.b16 %v1666, %v1662
    %v1839 = vpack.c.b16 %v1667, %v1663
    %v1840 = vpack.c.b16 %v1672, %v1668
    %v1841 = vpack.c.b16 %v1673, %v1669
    %v1842 = vpack.c.b16 %v1674, %v1670
    %v1843 = vpack.c.b16 %v1675, %v1671
    %v1844 = vpack.c.b16 %v1680, %v1676
    %v1845 = vpack.c.b16 %v1681, %v1677
    %v1846 = vpack.c.b16 %v1682, %v1678
    %v1847 = vpack.c.b16 %v1683, %v1679
    %v1848 = vpack.c.b16 %v1688, %v1684
    %v1849 = vpack.c.b16 %v1689, %v1685
    %v1850 = vpack.c.b16 %v1690, %v1686
    %v1851 = vpack.c.b16 %v1691, %v1687
    %v1852 = vpack.c.b16 %v1696, %v1692
    %v1853 = vpack.c.b16 %v1697, %v1693
    %v1854 = vpack.c.b16 %v1698, %v1694
    %v1855 = vpack.c.b16 %v1699, %v1695
    %v1856 = vpack.c.b16 %v1704, %v1700
    %v1857 = vpack.c.b16 %v1705, %v1701
    %v1858 = vpack.c.b16 %v1706, %v1702
    %v1859 = vpack.c.b16 %v1707, %v1703
    %v1860 = vpack.c.b16 %v1712, %v1708
    %v1861 = vpack.c.b16 %v1713, %v1709
    %v1862 = vpack.c.b16 %v1714, %v1710
    %v1863 = vpack.c.b16 %v1715, %v1711
    %v1864 = vpack.c.b16 %v1720, %v1716
    %v1865 = vpack.c.b16 %v1721, %v1717
    %v1866 = vpack.c.b16 %v1722, %v1718
    %v1867 = vpack.c.b16 %v1723, %v1719
    %v1868 = vpack.c.b16 %v1728, %v1724
    %v1869 = vpack.c.b16 %v1729, %v1725
    %v1870 = vpack.c.b16 %v1730, %v1726
    %v1871 = vpack.c.b16 %v1731, %v1727
    %v1872 = vpack.c.b16 %v1736, %v1732
    %v1873 = vpack.c.b16 %v1737, %v1733
    %v1874 = vpack.c.b16 %v1738, %v1734
    %v1875 = vpack.c.b16 %v1739, %v1735
    %v1876 = vpack.c.b16 %v1744, %v1740
    %v1877 = vpack.c.b16 %v1745, %v1741
    %v1878 = vpack.c.b16 %v1746, %v1742
    %v1879 = vpack.c.b16 %v1747, %v1743
    %v1880 = vpack.c.b16 %v1752, %v1748
    %v1881 = vpack.c.b16 %v1753, %v1749
    %v1882 = vpack.c.b16 %v1754, %v1750
    %v1883 = vpack.c.b16 %v1755, %v1751
    %2012 = vmatpush.bf16.msra.mxu0 %v1784
    %2013 = vmatpush.bf16.msra.mxu0 %v1780
    %2014 = vmatpush.bf16.msra.mxu0 %v1776
    %2015 = vmatpush.bf16.msra.mxu0 %v1772
    %2016 = vmatpush.bf16.msra.mxu0 %v1768
    %2017 = vmatpush.bf16.msra.mxu0 %v1764
    %2018 = vmatpush.bf16.msra.mxu0 %v1760
    %2019 = vmatpush.bf16.msra.mxu0 %v1756
    %2020 = vmatmul.bf16.gmra.mxu0 %v1364
    %v2021 = vpop.f32.mrf.mxu0
    %v2022 = vadd.f32 %v1344, %v2021
    %v2023 = vpop.f32.mrf.mxu0
    %v2024 = vadd.f32 %v1344, %v2023
    %2025 = vdwg.mxu0
    %2026 = vmatpush.bf16.msra.mxu0 %v1816
    %2027 = vmatpush.bf16.msra.mxu0 %v1812
    %2028 = vmatpush.bf16.msra.mxu0 %v1808
    %2029 = vmatpush.bf16.msra.mxu0 %v1804
    %2030 = vmatpush.bf16.msra.mxu0 %v1800
    %2031 = vmatpush.bf16.msra.mxu0 %v1796
    %2032 = vmatpush.bf16.msra.mxu0 %v1792
    %2033 = vmatpush.bf16.msra.mxu0 %v1788
    %2034 = vmatmul.bf16.gmra.mxu0 %v1365
    %v2035 = vpop.f32.mrf.mxu0
    %v2036 = vadd.f32 %v2022, %v2035
    %v2037 = vpop.f32.mrf.mxu0
    %v2038 = vadd.f32 %v2024, %v2037
    %2039 = vdwg.mxu0
    %2040 = vmatpush.bf16.msra.mxu0 %v1848
    %2041 = vmatpush.bf16.msra.mxu0 %v1844
    %2042 = vmatpush.bf16.msra.mxu0 %v1840
    %2043 = vmatpush.bf16.msra.mxu0 %v1836
    %2044 = vmatpush.bf16.msra.mxu0 %v1832
    %2045 = vmatpush.bf16.msra.mxu0 %v1828
    %2046 = vmatpush.bf16.msra.mxu0 %v1824
    %2047 = vmatpush.bf16.msra.mxu0 %v1820
    %2048 = vmatmul.bf16.gmra.mxu0 %v1366
    %v2049 = vpop.f32.mrf.mxu0
    %v2050 = vadd.f32 %v2036, %v2049
    %v2051 = vpop.f32.mrf.mxu0
    %v2052 = vadd.f32 %v2038, %v2051
    %2053 = vdwg.mxu0
    %2054 = vmatpush.bf16.msra.mxu0 %v1880
    %2055 = vmatpush.bf16.msra.mxu0 %v1876
    %2056 = vmatpush.bf16.msra.mxu0 %v1872
    %2057 = vmatpush.bf16.msra.mxu0 %v1868
    %2058 = vmatpush.bf16.msra.mxu0 %v1864
    %2059 = vmatpush.bf16.msra.mxu0 %v1860
    %2060 = vmatpush.bf16.msra.mxu0 %v1856
    %2061 = vmatpush.bf16.msra.mxu0 %v1852
    %2062 = vmatmul.bf16.gmra.mxu0 %v1367
    %v2063 = vpop.f32.mrf.mxu0
    %v2064 = vadd.f32 %v2050, %v2063
    %v2065 = vpop.f32.mrf.mxu0
    %v2066 = vadd.f32 %v2052, %v2065
    %2067 = vdwg.mxu0
    %2068 = vmatpush.bf16.msra.mxu0 %v1785
    %2069 = vmatpush.bf16.msra.mxu0 %v1781
    %2070 = vmatpush.bf16.msra.mxu0 %v1777
    %2071 = vmatpush.bf16.msra.mxu0 %v1773
    %2072 = vmatpush.bf16.msra.mxu0 %v1769
    %2073 = vmatpush.bf16.msra.mxu0 %v1765
    %2074 = vmatpush.bf16.msra.mxu0 %v1761
    %2075 = vmatpush.bf16.msra.mxu0 %v1757
    %2076 = vmatmul.bf16.gmra.mxu0 %v1364
    %v2077 = vpop.f32.mrf.mxu0
    %v2078 = vadd.f32 %v1345, %v2077
    %v2079 = vpop.f32.mrf.mxu0
    %v2080 = vadd.f32 %v1345, %v2079
    %2081 = vdwg.mxu0
    %2082 = vmatpush.bf16.msra.mxu0 %v1817
    %2083 = vmatpush.bf16.msra.mxu0 %v1813
    %2084 = vmatpush.bf16.msra.mxu0 %v1809
    %2085 = vmatpush.bf16.msra.mxu0 %v1805
    %2086 = vmatpush.bf16.msra.mxu0 %v1801
    %2087 = vmatpush.bf16.msra.mxu0 %v1797
    %2088 = vmatpush.bf16.msra.mxu0 %v1793
    %2089 = vmatpush.bf16.msra.mxu0 %v1789
    %2090 = vmatmul.bf16.gmra.mxu0 %v1365
    %v2091 = vpop.f32.mrf.mxu0
    %v2092 = vadd.f32 %v2078, %v2091
    %v2093 = vpop.f32.mrf.mxu0
    %v2094 = vadd.f32 %v2080, %v2093
    %2095 = vdwg.mxu0
    %2096 = vmatpush.bf16.msra.mxu0 %v1849
    %2097 = vmatpush.bf16.msra.mxu0 %v1845
    %2098 = vmatpush.bf16.msra.mxu0 %v1841
    %2099 = vmatpush.bf16.msra.mxu0 %v1837
    %2100 = vmatpush.bf16.msra.mxu0 %v1833
    %2101 = vmatpush.bf16.msra.mxu0 %v1829
    %2102 = vmatpush.bf16.msra.mxu0 %v1825
    %2103 = vmatpush.bf16.msra.mxu0 %v1821
    %2104 = vmatmul.bf16.gmra.mxu0 %v1366
    %v2105 = vpop.f32.mrf.mxu0
    %v2106 = vadd.f32 %v2092, %v2105
    %v2107 = vpop.f32.mrf.mxu0
    %v2108 = vadd.f32 %v2094, %v2107
    %2109 = vdwg.mxu0
    %2110 = vmatpush.bf16.msra.mxu0 %v1881
    %2111 = vmatpush.bf16.msra.mxu0 %v1877
    %2112 = vmatpush.bf16.msra.mxu0 %v1873
    %2113 = vmatpush.bf16.msra.mxu0 %v1869
    %2114 = vmatpush.bf16.msra.mxu0 %v1865
    %2115 = vmatpush.bf16.msra.mxu0 %v1861
    %2116 = vmatpush.bf16.msra.mxu0 %v1857
    %2117 = vmatpush.bf16.msra.mxu0 %v1853
    %2118 = vmatmul.bf16.gmra.mxu0 %v1367
    %v2119 = vpop.f32.mrf.mxu0
    %v2120 = vadd.f32 %v2106, %v2119
    %v2121 = vpop.f32.mrf.mxu0
    %v2122 = vadd.f32 %v2108, %v2121
    %2123 = vdwg.mxu0
    %2124 = vmatpush.bf16.msra.mxu0 %v1786
    %2125 = vmatpush.bf16.msra.mxu0 %v1782
    %2126 = vmatpush.bf16.msra.mxu0 %v1778
    %2127 = vmatpush.bf16.msra.mxu0 %v1774
    %2128 = vmatpush.bf16.msra.mxu0 %v1770
    %2129 = vmatpush.bf16.msra.mxu0 %v1766
    %2130 = vmatpush.bf16.msra.mxu0 %v1762
    %2131 = vmatpush.bf16.msra.mxu0 %v1758
    %2132 = vmatmul.bf16.gmra.mxu0 %v1364
    %v2133 = vpop.f32.mrf.mxu0
    %v2134 = vadd.f32 %v1346, %v2133
    %v2135 = vpop.f32.mrf.mxu0
    %v2136 = vadd.f32 %v1346, %v2135
    %2137 = vdwg.mxu0
    %2138 = vmatpush.bf16.msra.mxu0 %v1818
    %2139 = vmatpush.bf16.msra.mxu0 %v1814
    %2140 = vmatpush.bf16.msra.mxu0 %v1810
    %2141 = vmatpush.bf16.msra.mxu0 %v1806
    %2142 = vmatpush.bf16.msra.mxu0 %v1802
    %2143 = vmatpush.bf16.msra.mxu0 %v1798
    %2144 = vmatpush.bf16.msra.mxu0 %v1794
    %2145 = vmatpush.bf16.msra.mxu0 %v1790
    %2146 = vmatmul.bf16.gmra.mxu0 %v1365
    %v2147 = vpop.f32.mrf.mxu0
    %v2148 = vadd.f32 %v2134, %v2147
    %v2149 = vpop.f32.mrf.mxu0
    %v2150 = vadd.f32 %v2136, %v2149
    %2151 = vdwg.mxu0
    %2152 = vmatpush.bf16.msra.mxu0 %v1850
    %2153 = vmatpush.bf16.msra.mxu0 %v1846
    %2154 = vmatpush.bf16.msra.mxu0 %v1842
    %2155 = vmatpush.bf16.msra.mxu0 %v1838
    %2156 = vmatpush.bf16.msra.mxu0 %v1834
    %2157 = vmatpush.bf16.msra.mxu0 %v1830
    %2158 = vmatpush.bf16.msra.mxu0 %v1826
    %2159 = vmatpush.bf16.msra.mxu0 %v1822
    %2160 = vmatmul.bf16.gmra.mxu0 %v1366
    %v2161 = vpop.f32.mrf.mxu0
    %v2162 = vadd.f32 %v2148, %v2161
    %v2163 = vpop.f32.mrf.mxu0
    %v2164 = vadd.f32 %v2150, %v2163
    %2165 = vdwg.mxu0
    %2166 = vmatpush.bf16.msra.mxu0 %v1882
    %2167 = vmatpush.bf16.msra.mxu0 %v1878
    %2168 = vmatpush.bf16.msra.mxu0 %v1874
    %2169 = vmatpush.bf16.msra.mxu0 %v1870
    %2170 = vmatpush.bf16.msra.mxu0 %v1866
    %2171 = vmatpush.bf16.msra.mxu0 %v1862
    %2172 = vmatpush.bf16.msra.mxu0 %v1858
    %2173 = vmatpush.bf16.msra.mxu0 %v1854
    %2174 = vmatmul.bf16.gmra.mxu0 %v1367
    %v2175 = vpop.f32.mrf.mxu0
    %v2176 = vadd.f32 %v2162, %v2175
    %v2177 = vpop.f32.mrf.mxu0
    %v2178 = vadd.f32 %v2164, %v2177
    %2179 = vdwg.mxu0
    %2180 = vmatpush.bf16.msra.mxu0 %v1787
    %2181 = vmatpush.bf16.msra.mxu0 %v1783
    %2182 = vmatpush.bf16.msra.mxu0 %v1779
    %2183 = vmatpush.bf16.msra.mxu0 %v1775
    %2184 = vmatpush.bf16.msra.mxu0 %v1771
    %2185 = vmatpush.bf16.msra.mxu0 %v1767
    %2186 = vmatpush.bf16.msra.mxu0 %v1763
    %2187 = vmatpush.bf16.msra.mxu0 %v1759
    %2188 = vmatmul.bf16.gmra.mxu0 %v1364
    %v2189 = vpop.f32.mrf.mxu0
    %v2190 = vadd.f32 %v1347, %v2189
    %v2191 = vpop.f32.mrf.mxu0
    %v2192 = vadd.f32 %v1347, %v2191
    %2193 = vdwg.mxu0
    %2194 = vmatpush.bf16.msra.mxu0 %v1819
    %2195 = vmatpush.bf16.msra.mxu0 %v1815
    %2196 = vmatpush.bf16.msra.mxu0 %v1811
    %2197 = vmatpush.bf16.msra.mxu0 %v1807
    %2198 = vmatpush.bf16.msra.mxu0 %v1803
    %2199 = vmatpush.bf16.msra.mxu0 %v1799
    %2200 = vmatpush.bf16.msra.mxu0 %v1795
    %2201 = vmatpush.bf16.msra.mxu0 %v1791
    %2202 = vmatmul.bf16.gmra.mxu0 %v1365
    %v2203 = vpop.f32.mrf.mxu0
    %v2204 = vadd.f32 %v2190, %v2203
    %v2205 = vpop.f32.mrf.mxu0
    %v2206 = vadd.f32 %v2192, %v2205
    %2207 = vdwg.mxu0
    %2208 = vmatpush.bf16.msra.mxu0 %v1851
    %2209 = vmatpush.bf16.msra.mxu0 %v1847
    %2210 = vmatpush.bf16.msra.mxu0 %v1843
    %2211 = vmatpush.bf16.msra.mxu0 %v1839
    %2212 = vmatpush.bf16.msra.mxu0 %v1835
    %2213 = vmatpush.bf16.msra.mxu0 %v1831
    %2214 = vmatpush.bf16.msra.mxu0 %v1827
    %2215 = vmatpush.bf16.msra.mxu0 %v1823
    %2216 = vmatmul.bf16.gmra.mxu0 %v1366
    %v2217 = vpop.f32.mrf.mxu0
    %v2218 = vadd.f32 %v2204, %v2217
    %v2219 = vpop.f32.mrf.mxu0
    %v2220 = vadd.f32 %v2206, %v2219
    %2221 = vdwg.mxu0
    %2222 = vmatpush.bf16.msra.mxu0 %v1883
    %2223 = vmatpush.bf16.msra.mxu0 %v1879
    %2224 = vmatpush.bf16.msra.mxu0 %v1875
    %2225 = vmatpush.bf16.msra.mxu0 %v1871
    %2226 = vmatpush.bf16.msra.mxu0 %v1867
    %2227 = vmatpush.bf16.msra.mxu0 %v1863
    %2228 = vmatpush.bf16.msra.mxu0 %v1859
    %2229 = vmatpush.bf16.msra.mxu0 %v1855
    %2230 = vmatmul.bf16.gmra.mxu0 %v1367
    %v2231 = vpop.f32.mrf.mxu0
    %v2232 = vadd.f32 %v2218, %v2231
    %v2233 = vpop.f32.mrf.mxu0
    %v2234 = vadd.f32 %v2220, %v2233
    %2235 = vdwg.mxu0
    %2236 = vst [vmem:[#allocation3] sm:$0xff] %v2064
    %2237 = vst [vmem:[#allocation3 + $0x8] sm:$0xff] %v2120
    %2238 = vst [vmem:[#allocation3 + $0x10] sm:$0xff] %v2176
    %2239 = vst [vmem:[#allocation3 + $0x18] sm:$0xff] %v2232
    %2240 = vst [vmem:[#allocation3 + $0x20] sm:$0xff] %v2066
    %2241 = vst [vmem:[#allocation3 + $0x28] sm:$0xff] %v2122
    %2242 = vst [vmem:[#allocation3 + $0x30] sm:$0xff] %v2178
    %2243 = vst [vmem:[#allocation3 + $0x38] sm:$0xff] %v2234
    %v2244 = vld [vmem:[#allocation11] sm:$0xff]
    %v2245 = vld [vmem:[#allocation11 + $0x8] sm:$0xff]
    %v2246 = vld [vmem:[#allocation11 + $0x10] sm:$0xff]
    %v2247 = vld [vmem:[#allocation11 + $0x18] sm:$0xff]
    %v2248 = vld [vmem:[#allocation17] sm:$0xff]
    %v2249 = vld [vmem:[#allocation17 + $0x8] sm:$0xff]
    %v2250 = vld [vmem:[#allocation17 + $0x10] sm:$0xff]
    %v2251 = vld [vmem:[#allocation17 + $0x18] sm:$0xff]
    %v2252 = vld [vmem:[#allocation17 + $0x20] sm:$0xff]
    %v2253 = vld [vmem:[#allocation17 + $0x28] sm:$0xff]
    %v2254 = vld [vmem:[#allocation17 + $0x30] sm:$0xff]
    %v2255 = vld [vmem:[#allocation17 + $0x38] sm:$0xff]
    %v2256 = vld [vmem:[#allocation17 + $0x40] sm:$0xff]
    %v2257 = vld [vmem:[#allocation17 + $0x48] sm:$0xff]
    %v2258 = vld [vmem:[#allocation17 + $0x50] sm:$0xff]
    %v2259 = vld [vmem:[#allocation17 + $0x58] sm:$0xff]
    %v2260 = vld [vmem:[#allocation17 + $0x60] sm:$0xff]
    %v2261 = vld [vmem:[#allocation17 + $0x68] sm:$0xff]
    %v2262 = vld [vmem:[#allocation17 + $0x70] sm:$0xff]
    %v2263 = vld [vmem:[#allocation17 + $0x78] sm:$0xff]
    %v2264 = vld [vmem:[#allocation17 + $0x80] sm:$0xff]
    %v2265 = vld [vmem:[#allocation17 + $0x88] sm:$0xff]
    %v2266 = vld [vmem:[#allocation17 + $0x90] sm:$0xff]
    %v2267 = vld [vmem:[#allocation17 + $0x98] sm:$0xff]
    %v2268 = vld [vmem:[#allocation17 + $0xa0] sm:$0xff]
    %v2269 = vld [vmem:[#allocation17 + $0xa8] sm:$0xff]
    %v2270 = vld [vmem:[#allocation17 + $0xb0] sm:$0xff]
    %v2271 = vld [vmem:[#allocation17 + $0xb8] sm:$0xff]
    %v2272 = vld [vmem:[#allocation17 + $0xc0] sm:$0xff]
    %v2273 = vld [vmem:[#allocation17 + $0xc8] sm:$0xff]
    %v2274 = vld [vmem:[#allocation17 + $0xd0] sm:$0xff]
    %v2275 = vld [vmem:[#allocation17 + $0xd8] sm:$0xff]
    %v2276 = vld [vmem:[#allocation17 + $0xe0] sm:$0xff]
    %v2277 = vld [vmem:[#allocation17 + $0xe8] sm:$0xff]
    %v2278 = vld [vmem:[#allocation17 + $0xf0] sm:$0xff]
    %v2279 = vld [vmem:[#allocation17 + $0xf8] sm:$0xff]
    %v2280 = vld [vmem:[#allocation17 + $0x100] sm:$0xff]
    %v2281 = vld [vmem:[#allocation17 + $0x108] sm:$0xff]
    %v2282 = vld [vmem:[#allocation17 + $0x110] sm:$0xff]
    %v2283 = vld [vmem:[#allocation17 + $0x118] sm:$0xff]
    %v2284 = vld [vmem:[#allocation17 + $0x120] sm:$0xff]
    %v2285 = vld [vmem:[#allocation17 + $0x128] sm:$0xff]
    %v2286 = vld [vmem:[#allocation17 + $0x130] sm:$0xff]
    %v2287 = vld [vmem:[#allocation17 + $0x138] sm:$0xff]
    %v2288 = vld [vmem:[#allocation17 + $0x140] sm:$0xff]
    %v2289 = vld [vmem:[#allocation17 + $0x148] sm:$0xff]
    %v2290 = vld [vmem:[#allocation17 + $0x150] sm:$0xff]
    %v2291 = vld [vmem:[#allocation17 + $0x158] sm:$0xff]
    %v2292 = vld [vmem:[#allocation17 + $0x160] sm:$0xff]
    %v2293 = vld [vmem:[#allocation17 + $0x168] sm:$0xff]
    %v2294 = vld [vmem:[#allocation17 + $0x170] sm:$0xff]
    %v2295 = vld [vmem:[#allocation17 + $0x178] sm:$0xff]
    %v2296 = vld [vmem:[#allocation17 + $0x180] sm:$0xff]
    %v2297 = vld [vmem:[#allocation17 + $0x188] sm:$0xff]
    %v2298 = vld [vmem:[#allocation17 + $0x190] sm:$0xff]
    %v2299 = vld [vmem:[#allocation17 + $0x198] sm:$0xff]
    %v2300 = vld [vmem:[#allocation17 + $0x1a0] sm:$0xff]
    %v2301 = vld [vmem:[#allocation17 + $0x1a8] sm:$0xff]
    %v2302 = vld [vmem:[#allocation17 + $0x1b0] sm:$0xff]
    %v2303 = vld [vmem:[#allocation17 + $0x1b8] sm:$0xff]
    %v2304 = vld [vmem:[#allocation17 + $0x1c0] sm:$0xff]
    %v2305 = vld [vmem:[#allocation17 + $0x1c8] sm:$0xff]
    %v2306 = vld [vmem:[#allocation17 + $0x1d0] sm:$0xff]
    %v2307 = vld [vmem:[#allocation17 + $0x1d8] sm:$0xff]
    %v2308 = vld [vmem:[#allocation17 + $0x1e0] sm:$0xff]
    %v2309 = vld [vmem:[#allocation17 + $0x1e8] sm:$0xff]
    %v2310 = vld [vmem:[#allocation17 + $0x1f0] sm:$0xff]
    %v2311 = vld [vmem:[#allocation17 + $0x1f8] sm:$0xff]
    %v2312 = vld [vmem:[#allocation17 + $0x200] sm:$0xff]
    %v2313 = vld [vmem:[#allocation17 + $0x208] sm:$0xff]
    %v2314 = vld [vmem:[#allocation17 + $0x210] sm:$0xff]
    %v2315 = vld [vmem:[#allocation17 + $0x218] sm:$0xff]
    %v2316 = vld [vmem:[#allocation17 + $0x220] sm:$0xff]
    %v2317 = vld [vmem:[#allocation17 + $0x228] sm:$0xff]
    %v2318 = vld [vmem:[#allocation17 + $0x230] sm:$0xff]
    %v2319 = vld [vmem:[#allocation17 + $0x238] sm:$0xff]
    %v2320 = vld [vmem:[#allocation17 + $0x240] sm:$0xff]
    %v2321 = vld [vmem:[#allocation17 + $0x248] sm:$0xff]
    %v2322 = vld [vmem:[#allocation17 + $0x250] sm:$0xff]
    %v2323 = vld [vmem:[#allocation17 + $0x258] sm:$0xff]
    %v2324 = vld [vmem:[#allocation17 + $0x260] sm:$0xff]
    %v2325 = vld [vmem:[#allocation17 + $0x268] sm:$0xff]
    %v2326 = vld [vmem:[#allocation17 + $0x270] sm:$0xff]
    %v2327 = vld [vmem:[#allocation17 + $0x278] sm:$0xff]
    %v2328 = vld [vmem:[#allocation17 + $0x280] sm:$0xff]
    %v2329 = vld [vmem:[#allocation17 + $0x288] sm:$0xff]
    %v2330 = vld [vmem:[#allocation17 + $0x290] sm:$0xff]
    %v2331 = vld [vmem:[#allocation17 + $0x298] sm:$0xff]
    %v2332 = vld [vmem:[#allocation17 + $0x2a0] sm:$0xff]
    %v2333 = vld [vmem:[#allocation17 + $0x2a8] sm:$0xff]
    %v2334 = vld [vmem:[#allocation17 + $0x2b0] sm:$0xff]
    %v2335 = vld [vmem:[#allocation17 + $0x2b8] sm:$0xff]
    %v2336 = vld [vmem:[#allocation17 + $0x2c0] sm:$0xff]
    %v2337 = vld [vmem:[#allocation17 + $0x2c8] sm:$0xff]
    %v2338 = vld [vmem:[#allocation17 + $0x2d0] sm:$0xff]
    %v2339 = vld [vmem:[#allocation17 + $0x2d8] sm:$0xff]
    %v2340 = vld [vmem:[#allocation17 + $0x2e0] sm:$0xff]
    %v2341 = vld [vmem:[#allocation17 + $0x2e8] sm:$0xff]
    %v2342 = vld [vmem:[#allocation17 + $0x2f0] sm:$0xff]
    %v2343 = vld [vmem:[#allocation17 + $0x2f8] sm:$0xff]
    %v2344 = vld [vmem:[#allocation17 + $0x300] sm:$0xff]
    %v2345 = vld [vmem:[#allocation17 + $0x308] sm:$0xff]
    %v2346 = vld [vmem:[#allocation17 + $0x310] sm:$0xff]
    %v2347 = vld [vmem:[#allocation17 + $0x318] sm:$0xff]
    %v2348 = vld [vmem:[#allocation17 + $0x320] sm:$0xff]
    %v2349 = vld [vmem:[#allocation17 + $0x328] sm:$0xff]
    %v2350 = vld [vmem:[#allocation17 + $0x330] sm:$0xff]
    %v2351 = vld [vmem:[#allocation17 + $0x338] sm:$0xff]
    %v2352 = vld [vmem:[#allocation17 + $0x340] sm:$0xff]
    %v2353 = vld [vmem:[#allocation17 + $0x348] sm:$0xff]
    %v2354 = vld [vmem:[#allocation17 + $0x350] sm:$0xff]
    %v2355 = vld [vmem:[#allocation17 + $0x358] sm:$0xff]
    %v2356 = vld [vmem:[#allocation17 + $0x360] sm:$0xff]
    %v2357 = vld [vmem:[#allocation17 + $0x368] sm:$0xff]
    %v2358 = vld [vmem:[#allocation17 + $0x370] sm:$0xff]
    %v2359 = vld [vmem:[#allocation17 + $0x378] sm:$0xff]
    %v2360 = vld [vmem:[#allocation17 + $0x380] sm:$0xff]
    %v2361 = vld [vmem:[#allocation17 + $0x388] sm:$0xff]
    %v2362 = vld [vmem:[#allocation17 + $0x390] sm:$0xff]
    %v2363 = vld [vmem:[#allocation17 + $0x398] sm:$0xff]
    %v2364 = vld [vmem:[#allocation17 + $0x3a0] sm:$0xff]
    %v2365 = vld [vmem:[#allocation17 + $0x3a8] sm:$0xff]
    %v2366 = vld [vmem:[#allocation17 + $0x3b0] sm:$0xff]
    %v2367 = vld [vmem:[#allocation17 + $0x3b8] sm:$0xff]
    %v2368 = vld [vmem:[#allocation17 + $0x3c0] sm:$0xff]
    %v2369 = vld [vmem:[#allocation17 + $0x3c8] sm:$0xff]
    %v2370 = vld [vmem:[#allocation17 + $0x3d0] sm:$0xff]
    %v2371 = vld [vmem:[#allocation17 + $0x3d8] sm:$0xff]
    %v2372 = vld [vmem:[#allocation17 + $0x3e0] sm:$0xff]
    %v2373 = vld [vmem:[#allocation17 + $0x3e8] sm:$0xff]
    %v2374 = vld [vmem:[#allocation17 + $0x3f0] sm:$0xff]
    %v2375 = vld [vmem:[#allocation17 + $0x3f8] sm:$0xff]
    %v2376 = vld [vmem:[#allocation18] sm:$0xf]
    %v2378 = vperm.slane %v2376, 0
    %v2379 = vperm.slane %v2376, 1
    %v2380 = vperm.slane %v2376, 2
    %v2381 = vperm.slane %v2376, 3
    %v2390 = vunpack.c.l.b16 %v2244
    %v2391 = vunpack.c.h.b16 %v2244
    %v2392 = vunpack.c.l.b16 %v2245
    %v2393 = vunpack.c.h.b16 %v2245
    %v2394 = vunpack.c.l.b16 %v2246
    %v2395 = vunpack.c.h.b16 %v2246
    %v2396 = vunpack.c.l.b16 %v2247
    %v2397 = vunpack.c.h.b16 %v2247
    %v2398 = vpack.c.b16 %v2394, %v2390
    %v2399 = vpack.c.b16 %v2395, %v2391
    %v2400 = vpack.c.b16 %v2396, %v2392
    %v2401 = vpack.c.b16 %v2397, %v2393
    %v2534 = vunpack.c.l.b16 %v2248
    %v2535 = vunpack.c.h.b16 %v2248
    %v2536 = vunpack.c.l.b16 %v2249
    %v2537 = vunpack.c.h.b16 %v2249
    %v2538 = vunpack.c.l.b16 %v2250
    %v2539 = vunpack.c.h.b16 %v2250
    %v2540 = vunpack.c.l.b16 %v2251
    %v2541 = vunpack.c.h.b16 %v2251
    %v2542 = vunpack.c.l.b16 %v2252
    %v2543 = vunpack.c.h.b16 %v2252
    %v2544 = vunpack.c.l.b16 %v2253
    %v2545 = vunpack.c.h.b16 %v2253
    %v2546 = vunpack.c.l.b16 %v2254
    %v2547 = vunpack.c.h.b16 %v2254
    %v2548 = vunpack.c.l.b16 %v2255
    %v2549 = vunpack.c.h.b16 %v2255
    %v2550 = vunpack.c.l.b16 %v2256
    %v2551 = vunpack.c.h.b16 %v2256
    %v2552 = vunpack.c.l.b16 %v2257
    %v2553 = vunpack.c.h.b16 %v2257
    %v2554 = vunpack.c.l.b16 %v2258
    %v2555 = vunpack.c.h.b16 %v2258
    %v2556 = vunpack.c.l.b16 %v2259
    %v2557 = vunpack.c.h.b16 %v2259
    %v2558 = vunpack.c.l.b16 %v2260
    %v2559 = vunpack.c.h.b16 %v2260
    %v2560 = vunpack.c.l.b16 %v2261
    %v2561 = vunpack.c.h.b16 %v2261
    %v2562 = vunpack.c.l.b16 %v2262
    %v2563 = vunpack.c.h.b16 %v2262
    %v2564 = vunpack.c.l.b16 %v2263
    %v2565 = vunpack.c.h.b16 %v2263
    %v2566 = vunpack.c.l.b16 %v2264
    %v2567 = vunpack.c.h.b16 %v2264
    %v2568 = vunpack.c.l.b16 %v2265
    %v2569 = vunpack.c.h.b16 %v2265
    %v2570 = vunpack.c.l.b16 %v2266
    %v2571 = vunpack.c.h.b16 %v2266
    %v2572 = vunpack.c.l.b16 %v2267
    %v2573 = vunpack.c.h.b16 %v2267
    %v2574 = vunpack.c.l.b16 %v2268
    %v2575 = vunpack.c.h.b16 %v2268
    %v2576 = vunpack.c.l.b16 %v2269
    %v2577 = vunpack.c.h.b16 %v2269
    %v2578 = vunpack.c.l.b16 %v2270
    %v2579 = vunpack.c.h.b16 %v2270
    %v2580 = vunpack.c.l.b16 %v2271
    %v2581 = vunpack.c.h.b16 %v2271
    %v2582 = vunpack.c.l.b16 %v2272
    %v2583 = vunpack.c.h.b16 %v2272
    %v2584 = vunpack.c.l.b16 %v2273
    %v2585 = vunpack.c.h.b16 %v2273
    %v2586 = vunpack.c.l.b16 %v2274
    %v2587 = vunpack.c.h.b16 %v2274
    %v2588 = vunpack.c.l.b16 %v2275
    %v2589 = vunpack.c.h.b16 %v2275
    %v2590 = vunpack.c.l.b16 %v2276
    %v2591 = vunpack.c.h.b16 %v2276
    %v2592 = vunpack.c.l.b16 %v2277
    %v2593 = vunpack.c.h.b16 %v2277
    %v2594 = vunpack.c.l.b16 %v2278
    %v2595 = vunpack.c.h.b16 %v2278
    %v2596 = vunpack.c.l.b16 %v2279
    %v2597 = vunpack.c.h.b16 %v2279
    %v2598 = vunpack.c.l.b16 %v2280
    %v2599 = vunpack.c.h.b16 %v2280
    %v2600 = vunpack.c.l.b16 %v2281
    %v2601 = vunpack.c.h.b16 %v2281
    %v2602 = vunpack.c.l.b16 %v2282
    %v2603 = vunpack.c.h.b16 %v2282
    %v2604 = vunpack.c.l.b16 %v2283
    %v2605 = vunpack.c.h.b16 %v2283
    %v2606 = vunpack.c.l.b16 %v2284
    %v2607 = vunpack.c.h.b16 %v2284
    %v2608 = vunpack.c.l.b16 %v2285
    %v2609 = vunpack.c.h.b16 %v2285
    %v2610 = vunpack.c.l.b16 %v2286
    %v2611 = vunpack.c.h.b16 %v2286
    %v2612 = vunpack.c.l.b16 %v2287
    %v2613 = vunpack.c.h.b16 %v2287
    %v2614 = vunpack.c.l.b16 %v2288
    %v2615 = vunpack.c.h.b16 %v2288
    %v2616 = vunpack.c.l.b16 %v2289
    %v2617 = vunpack.c.h.b16 %v2289
    %v2618 = vunpack.c.l.b16 %v2290
    %v2619 = vunpack.c.h.b16 %v2290
    %v2620 = vunpack.c.l.b16 %v2291
    %v2621 = vunpack.c.h.b16 %v2291
    %v2622 = vunpack.c.l.b16 %v2292
    %v2623 = vunpack.c.h.b16 %v2292
    %v2624 = vunpack.c.l.b16 %v2293
    %v2625 = vunpack.c.h.b16 %v2293
    %v2626 = vunpack.c.l.b16 %v2294
    %v2627 = vunpack.c.h.b16 %v2294
    %v2628 = vunpack.c.l.b16 %v2295
    %v2629 = vunpack.c.h.b16 %v2295
    %v2630 = vunpack.c.l.b16 %v2296
    %v2631 = vunpack.c.h.b16 %v2296
    %v2632 = vunpack.c.l.b16 %v2297
    %v2633 = vunpack.c.h.b16 %v2297
    %v2634 = vunpack.c.l.b16 %v2298
    %v2635 = vunpack.c.h.b16 %v2298
    %v2636 = vunpack.c.l.b16 %v2299
    %v2637 = vunpack.c.h.b16 %v2299
    %v2638 = vunpack.c.l.b16 %v2300
    %v2639 = vunpack.c.h.b16 %v2300
    %v2640 = vunpack.c.l.b16 %v2301
    %v2641 = vunpack.c.h.b16 %v2301
    %v2642 = vunpack.c.l.b16 %v2302
    %v2643 = vunpack.c.h.b16 %v2302
    %v2644 = vunpack.c.l.b16 %v2303
    %v2645 = vunpack.c.h.b16 %v2303
    %v2646 = vunpack.c.l.b16 %v2304
    %v2647 = vunpack.c.h.b16 %v2304
    %v2648 = vunpack.c.l.b16 %v2305
    %v2649 = vunpack.c.h.b16 %v2305
    %v2650 = vunpack.c.l.b16 %v2306
    %v2651 = vunpack.c.h.b16 %v2306
    %v2652 = vunpack.c.l.b16 %v2307
    %v2653 = vunpack.c.h.b16 %v2307
    %v2654 = vunpack.c.l.b16 %v2308
    %v2655 = vunpack.c.h.b16 %v2308
    %v2656 = vunpack.c.l.b16 %v2309
    %v2657 = vunpack.c.h.b16 %v2309
    %v2658 = vunpack.c.l.b16 %v2310
    %v2659 = vunpack.c.h.b16 %v2310
    %v2660 = vunpack.c.l.b16 %v2311
    %v2661 = vunpack.c.h.b16 %v2311
    %v2662 = vunpack.c.l.b16 %v2312
    %v2663 = vunpack.c.h.b16 %v2312
    %v2664 = vunpack.c.l.b16 %v2313
    %v2665 = vunpack.c.h.b16 %v2313
    %v2666 = vunpack.c.l.b16 %v2314
    %v2667 = vunpack.c.h.b16 %v2314
    %v2668 = vunpack.c.l.b16 %v2315
    %v2669 = vunpack.c.h.b16 %v2315
    %v2670 = vunpack.c.l.b16 %v2316
    %v2671 = vunpack.c.h.b16 %v2316
    %v2672 = vunpack.c.l.b16 %v2317
    %v2673 = vunpack.c.h.b16 %v2317
    %v2674 = vunpack.c.l.b16 %v2318
    %v2675 = vunpack.c.h.b16 %v2318
    %v2676 = vunpack.c.l.b16 %v2319
    %v2677 = vunpack.c.h.b16 %v2319
    %v2678 = vunpack.c.l.b16 %v2320
    %v2679 = vunpack.c.h.b16 %v2320
    %v2680 = vunpack.c.l.b16 %v2321
    %v2681 = vunpack.c.h.b16 %v2321
    %v2682 = vunpack.c.l.b16 %v2322
    %v2683 = vunpack.c.h.b16 %v2322
    %v2684 = vunpack.c.l.b16 %v2323
    %v2685 = vunpack.c.h.b16 %v2323
    %v2686 = vunpack.c.l.b16 %v2324
    %v2687 = vunpack.c.h.b16 %v2324
    %v2688 = vunpack.c.l.b16 %v2325
    %v2689 = vunpack.c.h.b16 %v2325
    %v2690 = vunpack.c.l.b16 %v2326
    %v2691 = vunpack.c.h.b16 %v2326
    %v2692 = vunpack.c.l.b16 %v2327
    %v2693 = vunpack.c.h.b16 %v2327
    %v2694 = vunpack.c.l.b16 %v2328
    %v2695 = vunpack.c.h.b16 %v2328
    %v2696 = vunpack.c.l.b16 %v2329
    %v2697 = vunpack.c.h.b16 %v2329
    %v2698 = vunpack.c.l.b16 %v2330
    %v2699 = vunpack.c.h.b16 %v2330
    %v2700 = vunpack.c.l.b16 %v2331
    %v2701 = vunpack.c.h.b16 %v2331
    %v2702 = vunpack.c.l.b16 %v2332
    %v2703 = vunpack.c.h.b16 %v2332
    %v2704 = vunpack.c.l.b16 %v2333
    %v2705 = vunpack.c.h.b16 %v2333
    %v2706 = vunpack.c.l.b16 %v2334
    %v2707 = vunpack.c.h.b16 %v2334
    %v2708 = vunpack.c.l.b16 %v2335
    %v2709 = vunpack.c.h.b16 %v2335
    %v2710 = vunpack.c.l.b16 %v2336
    %v2711 = vunpack.c.h.b16 %v2336
    %v2712 = vunpack.c.l.b16 %v2337
    %v2713 = vunpack.c.h.b16 %v2337
    %v2714 = vunpack.c.l.b16 %v2338
    %v2715 = vunpack.c.h.b16 %v2338
    %v2716 = vunpack.c.l.b16 %v2339
    %v2717 = vunpack.c.h.b16 %v2339
    %v2718 = vunpack.c.l.b16 %v2340
    %v2719 = vunpack.c.h.b16 %v2340
    %v2720 = vunpack.c.l.b16 %v2341
    %v2721 = vunpack.c.h.b16 %v2341
    %v2722 = vunpack.c.l.b16 %v2342
    %v2723 = vunpack.c.h.b16 %v2342
    %v2724 = vunpack.c.l.b16 %v2343
    %v2725 = vunpack.c.h.b16 %v2343
    %v2726 = vunpack.c.l.b16 %v2344
    %v2727 = vunpack.c.h.b16 %v2344
    %v2728 = vunpack.c.l.b16 %v2345
    %v2729 = vunpack.c.h.b16 %v2345
    %v2730 = vunpack.c.l.b16 %v2346
    %v2731 = vunpack.c.h.b16 %v2346
    %v2732 = vunpack.c.l.b16 %v2347
    %v2733 = vunpack.c.h.b16 %v2347
    %v2734 = vunpack.c.l.b16 %v2348
    %v2735 = vunpack.c.h.b16 %v2348
    %v2736 = vunpack.c.l.b16 %v2349
    %v2737 = vunpack.c.h.b16 %v2349
    %v2738 = vunpack.c.l.b16 %v2350
    %v2739 = vunpack.c.h.b16 %v2350
    %v2740 = vunpack.c.l.b16 %v2351
    %v2741 = vunpack.c.h.b16 %v2351
    %v2742 = vunpack.c.l.b16 %v2352
    %v2743 = vunpack.c.h.b16 %v2352
    %v2744 = vunpack.c.l.b16 %v2353
    %v2745 = vunpack.c.h.b16 %v2353
    %v2746 = vunpack.c.l.b16 %v2354
    %v2747 = vunpack.c.h.b16 %v2354
    %v2748 = vunpack.c.l.b16 %v2355
    %v2749 = vunpack.c.h.b16 %v2355
    %v2750 = vunpack.c.l.b16 %v2356
    %v2751 = vunpack.c.h.b16 %v2356
    %v2752 = vunpack.c.l.b16 %v2357
    %v2753 = vunpack.c.h.b16 %v2357
    %v2754 = vunpack.c.l.b16 %v2358
    %v2755 = vunpack.c.h.b16 %v2358
    %v2756 = vunpack.c.l.b16 %v2359
    %v2757 = vunpack.c.h.b16 %v2359
    %v2758 = vunpack.c.l.b16 %v2360
    %v2759 = vunpack.c.h.b16 %v2360
    %v2760 = vunpack.c.l.b16 %v2361
    %v2761 = vunpack.c.h.b16 %v2361
    %v2762 = vunpack.c.l.b16 %v2362
    %v2763 = vunpack.c.h.b16 %v2362
    %v2764 = vunpack.c.l.b16 %v2363
    %v2765 = vunpack.c.h.b16 %v2363
    %v2766 = vunpack.c.l.b16 %v2364
    %v2767 = vunpack.c.h.b16 %v2364
    %v2768 = vunpack.c.l.b16 %v2365
    %v2769 = vunpack.c.h.b16 %v2365
    %v2770 = vunpack.c.l.b16 %v2366
    %v2771 = vunpack.c.h.b16 %v2366
    %v2772 = vunpack.c.l.b16 %v2367
    %v2773 = vunpack.c.h.b16 %v2367
    %v2774 = vunpack.c.l.b16 %v2368
    %v2775 = vunpack.c.h.b16 %v2368
    %v2776 = vunpack.c.l.b16 %v2369
    %v2777 = vunpack.c.h.b16 %v2369
    %v2778 = vunpack.c.l.b16 %v2370
    %v2779 = vunpack.c.h.b16 %v2370
    %v2780 = vunpack.c.l.b16 %v2371
    %v2781 = vunpack.c.h.b16 %v2371
    %v2782 = vunpack.c.l.b16 %v2372
    %v2783 = vunpack.c.h.b16 %v2372
    %v2784 = vunpack.c.l.b16 %v2373
    %v2785 = vunpack.c.h.b16 %v2373
    %v2786 = vunpack.c.l.b16 %v2374
    %v2787 = vunpack.c.h.b16 %v2374
    %v2788 = vunpack.c.l.b16 %v2375
    %v2789 = vunpack.c.h.b16 %v2375
    %v2790 = vpack.c.b16 %v2538, %v2534
    %v2791 = vpack.c.b16 %v2539, %v2535
    %v2792 = vpack.c.b16 %v2540, %v2536
    %v2793 = vpack.c.b16 %v2541, %v2537
    %v2794 = vpack.c.b16 %v2546, %v2542
    %v2795 = vpack.c.b16 %v2547, %v2543
    %v2796 = vpack.c.b16 %v2548, %v2544
    %v2797 = vpack.c.b16 %v2549, %v2545
    %v2798 = vpack.c.b16 %v2554, %v2550
    %v2799 = vpack.c.b16 %v2555, %v2551
    %v2800 = vpack.c.b16 %v2556, %v2552
    %v2801 = vpack.c.b16 %v2557, %v2553
    %v2802 = vpack.c.b16 %v2562, %v2558
    %v2803 = vpack.c.b16 %v2563, %v2559
    %v2804 = vpack.c.b16 %v2564, %v2560
    %v2805 = vpack.c.b16 %v2565, %v2561
    %v2806 = vpack.c.b16 %v2570, %v2566
    %v2807 = vpack.c.b16 %v2571, %v2567
    %v2808 = vpack.c.b16 %v2572, %v2568
    %v2809 = vpack.c.b16 %v2573, %v2569
    %v2810 = vpack.c.b16 %v2578, %v2574
    %v2811 = vpack.c.b16 %v2579, %v2575
    %v2812 = vpack.c.b16 %v2580, %v2576
    %v2813 = vpack.c.b16 %v2581, %v2577
    %v2814 = vpack.c.b16 %v2586, %v2582
    %v2815 = vpack.c.b16 %v2587, %v2583
    %v2816 = vpack.c.b16 %v2588, %v2584
    %v2817 = vpack.c.b16 %v2589, %v2585
    %v2818 = vpack.c.b16 %v2594, %v2590
    %v2819 = vpack.c.b16 %v2595, %v2591
    %v2820 = vpack.c.b16 %v2596, %v2592
    %v2821 = vpack.c.b16 %v2597, %v2593
    %v2822 = vpack.c.b16 %v2602, %v2598
    %v2823 = vpack.c.b16 %v2603, %v2599
    %v2824 = vpack.c.b16 %v2604, %v2600
    %v2825 = vpack.c.b16 %v2605, %v2601
    %v2826 = vpack.c.b16 %v2610, %v2606
    %v2827 = vpack.c.b16 %v2611, %v2607
    %v2828 = vpack.c.b16 %v2612, %v2608
    %v2829 = vpack.c.b16 %v2613, %v2609
    %v2830 = vpack.c.b16 %v2618, %v2614
    %v2831 = vpack.c.b16 %v2619, %v2615
    %v2832 = vpack.c.b16 %v2620, %v2616
    %v2833 = vpack.c.b16 %v2621, %v2617
    %v2834 = vpack.c.b16 %v2626, %v2622
    %v2835 = vpack.c.b16 %v2627, %v2623
    %v2836 = vpack.c.b16 %v2628, %v2624
    %v2837 = vpack.c.b16 %v2629, %v2625
    %v2838 = vpack.c.b16 %v2634, %v2630
    %v2839 = vpack.c.b16 %v2635, %v2631
    %v2840 = vpack.c.b16 %v2636, %v2632
    %v2841 = vpack.c.b16 %v2637, %v2633
    %v2842 = vpack.c.b16 %v2642, %v2638
    %v2843 = vpack.c.b16 %v2643, %v2639
    %v2844 = vpack.c.b16 %v2644, %v2640
    %v2845 = vpack.c.b16 %v2645, %v2641
    %v2846 = vpack.c.b16 %v2650, %v2646
    %v2847 = vpack.c.b16 %v2651, %v2647
    %v2848 = vpack.c.b16 %v2652, %v2648
    %v2849 = vpack.c.b16 %v2653, %v2649
    %v2850 = vpack.c.b16 %v2658, %v2654
    %v2851 = vpack.c.b16 %v2659, %v2655
    %v2852 = vpack.c.b16 %v2660, %v2656
    %v2853 = vpack.c.b16 %v2661, %v2657
    %v2854 = vpack.c.b16 %v2666, %v2662
    %v2855 = vpack.c.b16 %v2667, %v2663
    %v2856 = vpack.c.b16 %v2668, %v2664
    %v2857 = vpack.c.b16 %v2669, %v2665
    %v2858 = vpack.c.b16 %v2674, %v2670
    %v2859 = vpack.c.b16 %v2675, %v2671
    %v2860 = vpack.c.b16 %v2676, %v2672
    %v2861 = vpack.c.b16 %v2677, %v2673
    %v2862 = vpack.c.b16 %v2682, %v2678
    %v2863 = vpack.c.b16 %v2683, %v2679
    %v2864 = vpack.c.b16 %v2684, %v2680
    %v2865 = vpack.c.b16 %v2685, %v2681
    %v2866 = vpack.c.b16 %v2690, %v2686
    %v2867 = vpack.c.b16 %v2691, %v2687
    %v2868 = vpack.c.b16 %v2692, %v2688
    %v2869 = vpack.c.b16 %v2693, %v2689
    %v2870 = vpack.c.b16 %v2698, %v2694
    %v2871 = vpack.c.b16 %v2699, %v2695
    %v2872 = vpack.c.b16 %v2700, %v2696
    %v2873 = vpack.c.b16 %v2701, %v2697
    %v2874 = vpack.c.b16 %v2706, %v2702
    %v2875 = vpack.c.b16 %v2707, %v2703
    %v2876 = vpack.c.b16 %v2708, %v2704
    %v2877 = vpack.c.b16 %v2709, %v2705
    %v2878 = vpack.c.b16 %v2714, %v2710
    %v2879 = vpack.c.b16 %v2715, %v2711
    %v2880 = vpack.c.b16 %v2716, %v2712
    %v2881 = vpack.c.b16 %v2717, %v2713
    %v2882 = vpack.c.b16 %v2722, %v2718
    %v2883 = vpack.c.b16 %v2723, %v2719
    %v2884 = vpack.c.b16 %v2724, %v2720
    %v2885 = vpack.c.b16 %v2725, %v2721
    %v2886 = vpack.c.b16 %v2730, %v2726
    %v2887 = vpack.c.b16 %v2731, %v2727
    %v2888 = vpack.c.b16 %v2732, %v2728
    %v2889 = vpack.c.b16 %v2733, %v2729
    %v2890 = vpack.c.b16 %v2738, %v2734
    %v2891 = vpack.c.b16 %v2739, %v2735
    %v2892 = vpack.c.b16 %v2740, %v2736
    %v2893 = vpack.c.b16 %v2741, %v2737
    %v2894 = vpack.c.b16 %v2746, %v2742
    %v2895 = vpack.c.b16 %v2747, %v2743
    %v2896 = vpack.c.b16 %v2748, %v2744
    %v2897 = vpack.c.b16 %v2749, %v2745
    %v2898 = vpack.c.b16 %v2754, %v2750
    %v2899 = vpack.c.b16 %v2755, %v2751
    %v2900 = vpack.c.b16 %v2756, %v2752
    %v2901 = vpack.c.b16 %v2757, %v2753
    %v2902 = vpack.c.b16 %v2762, %v2758
    %v2903 = vpack.c.b16 %v2763, %v2759
    %v2904 = vpack.c.b16 %v2764, %v2760
    %v2905 = vpack.c.b16 %v2765, %v2761
    %v2906 = vpack.c.b16 %v2770, %v2766
    %v2907 = vpack.c.b16 %v2771, %v2767
    %v2908 = vpack.c.b16 %v2772, %v2768
    %v2909 = vpack.c.b16 %v2773, %v2769
    %v2910 = vpack.c.b16 %v2778, %v2774
    %v2911 = vpack.c.b16 %v2779, %v2775
    %v2912 = vpack.c.b16 %v2780, %v2776
    %v2913 = vpack.c.b16 %v2781, %v2777
    %v2914 = vpack.c.b16 %v2786, %v2782
    %v2915 = vpack.c.b16 %v2787, %v2783
    %v2916 = vpack.c.b16 %v2788, %v2784
    %v2917 = vpack.c.b16 %v2789, %v2785
    %3046 = vmatpush.bf16.msra.mxu0 %v2818
    %3047 = vmatpush.bf16.msra.mxu0 %v2814
    %3048 = vmatpush.bf16.msra.mxu0 %v2810
    %3049 = vmatpush.bf16.msra.mxu0 %v2806
    %3050 = vmatpush.bf16.msra.mxu0 %v2802
    %3051 = vmatpush.bf16.msra.mxu0 %v2798
    %3052 = vmatpush.bf16.msra.mxu0 %v2794
    %3053 = vmatpush.bf16.msra.mxu0 %v2790
    %3054 = vmatmul.bf16.gmra.mxu0 %v2398
    %v3055 = vpop.f32.mrf.mxu0
    %v3056 = vadd.f32 %v2378, %v3055
    %v3057 = vpop.f32.mrf.mxu0
    %v3058 = vadd.f32 %v2378, %v3057
    %3059 = vdwg.mxu0
    %3060 = vmatpush.bf16.msra.mxu0 %v2850
    %3061 = vmatpush.bf16.msra.mxu0 %v2846
    %3062 = vmatpush.bf16.msra.mxu0 %v2842
    %3063 = vmatpush.bf16.msra.mxu0 %v2838
    %3064 = vmatpush.bf16.msra.mxu0 %v2834
    %3065 = vmatpush.bf16.msra.mxu0 %v2830
    %3066 = vmatpush.bf16.msra.mxu0 %v2826
    %3067 = vmatpush.bf16.msra.mxu0 %v2822
    %3068 = vmatmul.bf16.gmra.mxu0 %v2399
    %v3069 = vpop.f32.mrf.mxu0
    %v3070 = vadd.f32 %v3056, %v3069
    %v3071 = vpop.f32.mrf.mxu0
    %v3072 = vadd.f32 %v3058, %v3071
    %3073 = vdwg.mxu0
    %3074 = vmatpush.bf16.msra.mxu0 %v2882
    %3075 = vmatpush.bf16.msra.mxu0 %v2878
    %3076 = vmatpush.bf16.msra.mxu0 %v2874
    %3077 = vmatpush.bf16.msra.mxu0 %v2870
    %3078 = vmatpush.bf16.msra.mxu0 %v2866
    %3079 = vmatpush.bf16.msra.mxu0 %v2862
    %3080 = vmatpush.bf16.msra.mxu0 %v2858
    %3081 = vmatpush.bf16.msra.mxu0 %v2854
    %3082 = vmatmul.bf16.gmra.mxu0 %v2400
    %v3083 = vpop.f32.mrf.mxu0
    %v3084 = vadd.f32 %v3070, %v3083
    %v3085 = vpop.f32.mrf.mxu0
    %v3086 = vadd.f32 %v3072, %v3085
    %3087 = vdwg.mxu0
    %3088 = vmatpush.bf16.msra.mxu0 %v2914
    %3089 = vmatpush.bf16.msra.mxu0 %v2910
    %3090 = vmatpush.bf16.msra.mxu0 %v2906
    %3091 = vmatpush.bf16.msra.mxu0 %v2902
    %3092 = vmatpush.bf16.msra.mxu0 %v2898
    %3093 = vmatpush.bf16.msra.mxu0 %v2894
    %3094 = vmatpush.bf16.msra.mxu0 %v2890
    %3095 = vmatpush.bf16.msra.mxu0 %v2886
    %3096 = vmatmul.bf16.gmra.mxu0 %v2401
    %v3097 = vpop.f32.mrf.mxu0
    %v3098 = vadd.f32 %v3084, %v3097
    %v3099 = vpop.f32.mrf.mxu0
    %v3100 = vadd.f32 %v3086, %v3099
    %3101 = vdwg.mxu0
    %3102 = vmatpush.bf16.msra.mxu0 %v2819
    %3103 = vmatpush.bf16.msra.mxu0 %v2815
    %3104 = vmatpush.bf16.msra.mxu0 %v2811
    %3105 = vmatpush.bf16.msra.mxu0 %v2807
    %3106 = vmatpush.bf16.msra.mxu0 %v2803
    %3107 = vmatpush.bf16.msra.mxu0 %v2799
    %3108 = vmatpush.bf16.msra.mxu0 %v2795
    %3109 = vmatpush.bf16.msra.mxu0 %v2791
    %3110 = vmatmul.bf16.gmra.mxu0 %v2398
    %v3111 = vpop.f32.mrf.mxu0
    %v3112 = vadd.f32 %v2379, %v3111
    %v3113 = vpop.f32.mrf.mxu0
    %v3114 = vadd.f32 %v2379, %v3113
    %3115 = vdwg.mxu0
    %3116 = vmatpush.bf16.msra.mxu0 %v2851
    %3117 = vmatpush.bf16.msra.mxu0 %v2847
    %3118 = vmatpush.bf16.msra.mxu0 %v2843
    %3119 = vmatpush.bf16.msra.mxu0 %v2839
    %3120 = vmatpush.bf16.msra.mxu0 %v2835
    %3121 = vmatpush.bf16.msra.mxu0 %v2831
    %3122 = vmatpush.bf16.msra.mxu0 %v2827
    %3123 = vmatpush.bf16.msra.mxu0 %v2823
    %3124 = vmatmul.bf16.gmra.mxu0 %v2399
    %v3125 = vpop.f32.mrf.mxu0
    %v3126 = vadd.f32 %v3112, %v3125
    %v3127 = vpop.f32.mrf.mxu0
    %v3128 = vadd.f32 %v3114, %v3127
    %3129 = vdwg.mxu0
    %3130 = vmatpush.bf16.msra.mxu0 %v2883
    %3131 = vmatpush.bf16.msra.mxu0 %v2879
    %3132 = vmatpush.bf16.msra.mxu0 %v2875
    %3133 = vmatpush.bf16.msra.mxu0 %v2871
    %3134 = vmatpush.bf16.msra.mxu0 %v2867
    %3135 = vmatpush.bf16.msra.mxu0 %v2863
    %3136 = vmatpush.bf16.msra.mxu0 %v2859
    %3137 = vmatpush.bf16.msra.mxu0 %v2855
    %3138 = vmatmul.bf16.gmra.mxu0 %v2400
    %v3139 = vpop.f32.mrf.mxu0
    %v3140 = vadd.f32 %v3126, %v3139
    %v3141 = vpop.f32.mrf.mxu0
    %v3142 = vadd.f32 %v3128, %v3141
    %3143 = vdwg.mxu0
    %3144 = vmatpush.bf16.msra.mxu0 %v2915
    %3145 = vmatpush.bf16.msra.mxu0 %v2911
    %3146 = vmatpush.bf16.msra.mxu0 %v2907
    %3147 = vmatpush.bf16.msra.mxu0 %v2903
    %3148 = vmatpush.bf16.msra.mxu0 %v2899
    %3149 = vmatpush.bf16.msra.mxu0 %v2895
    %3150 = vmatpush.bf16.msra.mxu0 %v2891
    %3151 = vmatpush.bf16.msra.mxu0 %v2887
    %3152 = vmatmul.bf16.gmra.mxu0 %v2401
    %v3153 = vpop.f32.mrf.mxu0
    %v3154 = vadd.f32 %v3140, %v3153
    %v3155 = vpop.f32.mrf.mxu0
    %v3156 = vadd.f32 %v3142, %v3155
    %3157 = vdwg.mxu0
    %3158 = vmatpush.bf16.msra.mxu0 %v2820
    %3159 = vmatpush.bf16.msra.mxu0 %v2816
    %3160 = vmatpush.bf16.msra.mxu0 %v2812
    %3161 = vmatpush.bf16.msra.mxu0 %v2808
    %3162 = vmatpush.bf16.msra.mxu0 %v2804
    %3163 = vmatpush.bf16.msra.mxu0 %v2800
    %3164 = vmatpush.bf16.msra.mxu0 %v2796
    %3165 = vmatpush.bf16.msra.mxu0 %v2792
    %3166 = vmatmul.bf16.gmra.mxu0 %v2398
    %v3167 = vpop.f32.mrf.mxu0
    %v3168 = vadd.f32 %v2380, %v3167
    %v3169 = vpop.f32.mrf.mxu0
    %v3170 = vadd.f32 %v2380, %v3169
    %3171 = vdwg.mxu0
    %3172 = vmatpush.bf16.msra.mxu0 %v2852
    %3173 = vmatpush.bf16.msra.mxu0 %v2848
    %3174 = vmatpush.bf16.msra.mxu0 %v2844
    %3175 = vmatpush.bf16.msra.mxu0 %v2840
    %3176 = vmatpush.bf16.msra.mxu0 %v2836
    %3177 = vmatpush.bf16.msra.mxu0 %v2832
    %3178 = vmatpush.bf16.msra.mxu0 %v2828
    %3179 = vmatpush.bf16.msra.mxu0 %v2824
    %3180 = vmatmul.bf16.gmra.mxu0 %v2399
    %v3181 = vpop.f32.mrf.mxu0
    %v3182 = vadd.f32 %v3168, %v3181
    %v3183 = vpop.f32.mrf.mxu0
    %v3184 = vadd.f32 %v3170, %v3183
    %3185 = vdwg.mxu0
    %3186 = vmatpush.bf16.msra.mxu0 %v2884
    %3187 = vmatpush.bf16.msra.mxu0 %v2880
    %3188 = vmatpush.bf16.msra.mxu0 %v2876
    %3189 = vmatpush.bf16.msra.mxu0 %v2872
    %3190 = vmatpush.bf16.msra.mxu0 %v2868
    %3191 = vmatpush.bf16.msra.mxu0 %v2864
    %3192 = vmatpush.bf16.msra.mxu0 %v2860
    %3193 = vmatpush.bf16.msra.mxu0 %v2856
    %3194 = vmatmul.bf16.gmra.mxu0 %v2400
    %v3195 = vpop.f32.mrf.mxu0
    %v3196 = vadd.f32 %v3182, %v3195
    %v3197 = vpop.f32.mrf.mxu0
    %v3198 = vadd.f32 %v3184, %v3197
    %3199 = vdwg.mxu0
    %3200 = vmatpush.bf16.msra.mxu0 %v2916
    %3201 = vmatpush.bf16.msra.mxu0 %v2912
    %3202 = vmatpush.bf16.msra.mxu0 %v2908
    %3203 = vmatpush.bf16.msra.mxu0 %v2904
    %3204 = vmatpush.bf16.msra.mxu0 %v2900
    %3205 = vmatpush.bf16.msra.mxu0 %v2896
    %3206 = vmatpush.bf16.msra.mxu0 %v2892
    %3207 = vmatpush.bf16.msra.mxu0 %v2888
    %3208 = vmatmul.bf16.gmra.mxu0 %v2401
    %v3209 = vpop.f32.mrf.mxu0
    %v3210 = vadd.f32 %v3196, %v3209
    %v3211 = vpop.f32.mrf.mxu0
    %v3212 = vadd.f32 %v3198, %v3211
    %3213 = vdwg.mxu0
    %3214 = vmatpush.bf16.msra.mxu0 %v2821
    %3215 = vmatpush.bf16.msra.mxu0 %v2817
    %3216 = vmatpush.bf16.msra.mxu0 %v2813
    %3217 = vmatpush.bf16.msra.mxu0 %v2809
    %3218 = vmatpush.bf16.msra.mxu0 %v2805
    %3219 = vmatpush.bf16.msra.mxu0 %v2801
    %3220 = vmatpush.bf16.msra.mxu0 %v2797
    %3221 = vmatpush.bf16.msra.mxu0 %v2793
    %3222 = vmatmul.bf16.gmra.mxu0 %v2398
    %v3223 = vpop.f32.mrf.mxu0
    %v3224 = vadd.f32 %v2381, %v3223
    %v3225 = vpop.f32.mrf.mxu0
    %v3226 = vadd.f32 %v2381, %v3225
    %3227 = vdwg.mxu0
    %3228 = vmatpush.bf16.msra.mxu0 %v2853
    %3229 = vmatpush.bf16.msra.mxu0 %v2849
    %3230 = vmatpush.bf16.msra.mxu0 %v2845
    %3231 = vmatpush.bf16.msra.mxu0 %v2841
    %3232 = vmatpush.bf16.msra.mxu0 %v2837
    %3233 = vmatpush.bf16.msra.mxu0 %v2833
    %3234 = vmatpush.bf16.msra.mxu0 %v2829
    %3235 = vmatpush.bf16.msra.mxu0 %v2825
    %3236 = vmatmul.bf16.gmra.mxu0 %v2399
    %v3237 = vpop.f32.mrf.mxu0
    %v3238 = vadd.f32 %v3224, %v3237
    %v3239 = vpop.f32.mrf.mxu0
    %v3240 = vadd.f32 %v3226, %v3239
    %3241 = vdwg.mxu0
    %3242 = vmatpush.bf16.msra.mxu0 %v2885
    %3243 = vmatpush.bf16.msra.mxu0 %v2881
    %3244 = vmatpush.bf16.msra.mxu0 %v2877
    %3245 = vmatpush.bf16.msra.mxu0 %v2873
    %3246 = vmatpush.bf16.msra.mxu0 %v2869
    %3247 = vmatpush.bf16.msra.mxu0 %v2865
    %3248 = vmatpush.bf16.msra.mxu0 %v2861
    %3249 = vmatpush.bf16.msra.mxu0 %v2857
    %3250 = vmatmul.bf16.gmra.mxu0 %v2400
    %v3251 = vpop.f32.mrf.mxu0
    %v3252 = vadd.f32 %v3238, %v3251
    %v3253 = vpop.f32.mrf.mxu0
    %v3254 = vadd.f32 %v3240, %v3253
    %3255 = vdwg.mxu0
    %3256 = vmatpush.bf16.msra.mxu0 %v2917
    %3257 = vmatpush.bf16.msra.mxu0 %v2913
    %3258 = vmatpush.bf16.msra.mxu0 %v2909
    %3259 = vmatpush.bf16.msra.mxu0 %v2905
    %3260 = vmatpush.bf16.msra.mxu0 %v2901
    %3261 = vmatpush.bf16.msra.mxu0 %v2897
    %3262 = vmatpush.bf16.msra.mxu0 %v2893
    %3263 = vmatpush.bf16.msra.mxu0 %v2889
    %3264 = vmatmul.bf16.gmra.mxu0 %v2401
    %v3265 = vpop.f32.mrf.mxu0
    %v3266 = vadd.f32 %v3252, %v3265
    %v3267 = vpop.f32.mrf.mxu0
    %v3268 = vadd.f32 %v3254, %v3267
    %3269 = vdwg.mxu0
    %3270 = vst [vmem:[#allocation4] sm:$0xff] %v3098
    %3271 = vst [vmem:[#allocation4 + $0x8] sm:$0xff] %v3154
    %3272 = vst [vmem:[#allocation4 + $0x10] sm:$0xff] %v3210
    %3273 = vst [vmem:[#allocation4 + $0x18] sm:$0xff] %v3266
    %3274 = vst [vmem:[#allocation4 + $0x20] sm:$0xff] %v3100
    %3275 = vst [vmem:[#allocation4 + $0x28] sm:$0xff] %v3156
    %3276 = vst [vmem:[#allocation4 + $0x30] sm:$0xff] %v3212
    %3277 = vst [vmem:[#allocation4 + $0x38] sm:$0xff] %v3268
    %v3278 = vld [vmem:[#allocation2] sm:$0xff]
    %v3279 = vpack.c.bf16 %v3278, %v3278
    %v3280 = vld [vmem:[#allocation3] sm:$0xff]
    %v3281 = vpack.c.bf16 %v3280, %v3280
    %v3282 = vld [vmem:[#allocation4] sm:$0xff]
    %v3283 = vpack.c.bf16 %v3282, %v3282
    %vm3284 = vcmask 523264
    %v3286 = vsel %vm3284, %v3279, 0
    %v3289 = vsel %vm3284, %v3281, 0
    %3291 = vmatpush.bf16.xpose.msra.mxu0 0
    %3292 = vmatpush.bf16.xpose.msra.mxu0 0
    %3293 = vmatpush.bf16.xpose.msra.mxu0 0
    %3294 = vmatpush.bf16.xpose.msra.mxu0 0
    %3295 = vmatpush.bf16.xpose.msra.mxu0 0
    %3296 = vmatpush.bf16.xpose.msra.mxu0 0
    %3297 = vmatpush.bf16.xpose.msra.mxu0 0
    %3298 = vmatpush.bf16.xpose.msra.mxu0 %v3289
    %3299 = vmatmul.bf16.gmra.mxu0 %v3286
    %v3300 = vpop.f32.mrf.mxu0
    %v3301 = vadd.f32 0.0, %v3300
    %v3302 = vpop.f32.mrf.mxu0
    %3303 = vdwg.mxu0
    %vm3304 = vcmask 64512
    %v3305 = vsel %vm3304, %v3301, -inf
    %3306 = vmax.xlane.f32.xlu0 %v3305
    %v3307 = vpop.xlane.xlu0 %3306
    %v3308 = vsub.f32 %v3301, %v3307
    %v3309 = vmul.f32 %v3308, 1.442695
    %v3310 = vpow.pop %v3309
    %v3311 = vsel %vm3304, %v3310, 0.0
    %3312 = vadd.xlane.f32.xlu0 %v3311
    %v3313 = vpop.xlane.xlu0 %3312
    %v3314 = vrcp.pop %v3313
    %v3315 = vmul.f32 %v3310, %v3314
    %v3316 = vpack.c.bf16 %v3315, %v3315
    %v3318 = vsel %vm3304, %v3316, 0
    %vm3320 = vcmask 1043456
    %v3322 = vsel %vm3320, %v3283, 0
    %3324 = vmatpush.bf16.msra.mxu0 0
    %3325 = vmatpush.bf16.msra.mxu0 0
    %3326 = vmatpush.bf16.msra.mxu0 0
    %3327 = vmatpush.bf16.msra.mxu0 0
    %3328 = vmatpush.bf16.msra.mxu0 0
    %3329 = vmatpush.bf16.msra.mxu0 0
    %3330 = vmatpush.bf16.msra.mxu0 0
    %3331 = vmatpush.bf16.msra.mxu0 %v3322
    %3332 = vmatmul.bf16.gmra.mxu0 %v3318
    %v3333 = vpop.f32.mrf.mxu0
    %v3334 = vadd.f32 0.0, %v3333
    %v3335 = vpop.f32.mrf.mxu0
    %3336 = vdwg.mxu0
    %3337 = vst.msk [vmem:[#allocation5] sm:$0xff] %vm3284, %v3334
    %v3338 = vld [vmem:[#allocation2] sm:$0xff]
    %v3339 = vpack.c.bf16 %v3338, %v3338
    %v3340 = vld [vmem:[#allocation3] sm:$0xff]
    %v3341 = vpack.c.bf16 %v3340, %v3340
    %v3342 = vld [vmem:[#allocation4] sm:$0xff]
    %v3343 = vpack.c.bf16 %v3342, %v3342
    %3345 = vrot.lane.b32.xlu0 %v3339, 64
    %v3346 = vpop.permute.xlu0 %3345
    %3348 = vrot.lane.b32.xlu0 %v3341, 64
    %v3349 = vpop.permute.xlu0 %3348
    %v3351 = vsel %vm3284, %v3346, 0
    %v3354 = vsel %vm3284, %v3349, 0
    %3356 = vmatpush.bf16.xpose.msra.mxu0 0
    %3357 = vmatpush.bf16.xpose.msra.mxu0 0
    %3358 = vmatpush.bf16.xpose.msra.mxu0 0
    %3359 = vmatpush.bf16.xpose.msra.mxu0 0
    %3360 = vmatpush.bf16.xpose.msra.mxu0 0
    %3361 = vmatpush.bf16.xpose.msra.mxu0 0
    %3362 = vmatpush.bf16.xpose.msra.mxu0 0
    %3363 = vmatpush.bf16.xpose.msra.mxu0 %v3354
    %3364 = vmatmul.bf16.gmra.mxu0 %v3351
    %v3365 = vpop.f32.mrf.mxu0
    %v3366 = vadd.f32 0.0, %v3365
    %v3367 = vpop.f32.mrf.mxu0
    %3368 = vdwg.mxu0
    %v3369 = vsel %vm3304, %v3366, -inf
    %3370 = vmax.xlane.f32.xlu0 %v3369
    %v3371 = vpop.xlane.xlu0 %3370
    %v3372 = vsub.f32 %v3366, %v3371
    %v3373 = vmul.f32 %v3372, 1.442695
    %v3374 = vpow.pop %v3373
    %v3375 = vsel %vm3304, %v3374, 0.0
    %3376 = vadd.xlane.f32.xlu0 %v3375
    %v3377 = vpop.xlane.xlu0 %3376
    %v3378 = vrcp.pop %v3377
    %v3379 = vmul.f32 %v3374, %v3378
    %v3380 = vpack.c.bf16 %v3379, %v3379
    %3382 = vrot.lane.b32.xlu0 %v3343, 64
    %v3383 = vpop.permute.xlu0 %3382
    %v3385 = vsel %vm3304, %v3380, 0
    %v3388 = vsel %vm3320, %v3383, 0
    %3390 = vmatpush.bf16.msra.mxu0 0
    %3391 = vmatpush.bf16.msra.mxu0 0
    %3392 = vmatpush.bf16.msra.mxu0 0
    %3393 = vmatpush.bf16.msra.mxu0 0
    %3394 = vmatpush.bf16.msra.mxu0 0
    %3395 = vmatpush.bf16.msra.mxu0 0
    %3396 = vmatpush.bf16.msra.mxu0 0
    %3397 = vmatpush.bf16.msra.mxu0 %v3388
    %3398 = vmatmul.bf16.gmra.mxu0 %v3385
    %v3399 = vpop.f32.mrf.mxu0
    %v3400 = vadd.f32 0.0, %v3399
    %v3401 = vpop.f32.mrf.mxu0
    %3402 = vdwg.mxu0
    %3404 = vrot.lane.b32.xlu0 %v3400, 64
    %v3405 = vpop.permute.xlu0 %3404
    %vm3407 = vcmask 1048064
    %3408 = vst.msk [vmem:[#allocation5] sm:$0xff] %vm3407, %v3405
    %v3409 = vld [vmem:[#allocation2 + $0x8] sm:$0xff]
    %v3410 = vpack.c.bf16 %v3409, %v3409
    %v3411 = vld [vmem:[#allocation3 + $0x8] sm:$0xff]
    %v3412 = vpack.c.bf16 %v3411, %v3411
    %v3413 = vld [vmem:[#allocation4 + $0x8] sm:$0xff]
    %v3414 = vpack.c.bf16 %v3413, %v3413
    %v3416 = vsel %vm3284, %v3410, 0
    %v3419 = vsel %vm3284, %v3412, 0
    %3421 = vmatpush.bf16.xpose.msra.mxu0 0
    %3422 = vmatpush.bf16.xpose.msra.mxu0 0
    %3423 = vmatpush.bf16.xpose.msra.mxu0 0
    %3424 = vmatpush.bf16.xpose.msra.mxu0 0
    %3425 = vmatpush.bf16.xpose.msra.mxu0 0
    %3426 = vmatpush.bf16.xpose.msra.mxu0 0
    %3427 = vmatpush.bf16.xpose.msra.mxu0 0
    %3428 = vmatpush.bf16.xpose.msra.mxu0 %v3419
    %3429 = vmatmul.bf16.gmra.mxu0 %v3416
    %v3430 = vpop.f32.mrf.mxu0
    %v3431 = vadd.f32 0.0, %v3430
    %v3432 = vpop.f32.mrf.mxu0
    %3433 = vdwg.mxu0
    %v3434 = vsel %vm3304, %v3431, -inf
    %3435 = vmax.xlane.f32.xlu0 %v3434
    %v3436 = vpop.xlane.xlu0 %3435
    %v3437 = vsub.f32 %v3431, %v3436
    %v3438 = vmul.f32 %v3437, 1.442695
    %v3439 = vpow.pop %v3438
    %v3440 = vsel %vm3304, %v3439, 0.0
    %3441 = vadd.xlane.f32.xlu0 %v3440
    %v3442 = vpop.xlane.xlu0 %3441
    %v3443 = vrcp.pop %v3442
    %v3444 = vmul.f32 %v3439, %v3443
    %v3445 = vpack.c.bf16 %v3444, %v3444
    %v3447 = vsel %vm3304, %v3445, 0
    %v3450 = vsel %vm3320, %v3414, 0
    %3452 = vmatpush.bf16.msra.mxu0 0
    %3453 = vmatpush.bf16.msra.mxu0 0
    %3454 = vmatpush.bf16.msra.mxu0 0
    %3455 = vmatpush.bf16.msra.mxu0 0
    %3456 = vmatpush.bf16.msra.mxu0 0
    %3457 = vmatpush.bf16.msra.mxu0 0
    %3458 = vmatpush.bf16.msra.mxu0 0
    %3459 = vmatpush.bf16.msra.mxu0 %v3450
    %3460 = vmatmul.bf16.gmra.mxu0 %v3447
    %v3461 = vpop.f32.mrf.mxu0
    %v3462 = vadd.f32 0.0, %v3461
    %v3463 = vpop.f32.mrf.mxu0
    %3464 = vdwg.mxu0
    %3465 = vst.msk [vmem:[#allocation5 + $0x8] sm:$0xff] %vm3284, %v3462
    %v3466 = vld [vmem:[#allocation2 + $0x8] sm:$0xff]
    %v3467 = vpack.c.bf16 %v3466, %v3466
    %v3468 = vld [vmem:[#allocation3 + $0x8] sm:$0xff]
    %v3469 = vpack.c.bf16 %v3468, %v3468
    %v3470 = vld [vmem:[#allocation4 + $0x8] sm:$0xff]
    %v3471 = vpack.c.bf16 %v3470, %v3470
    %3473 = vrot.lane.b32.xlu0 %v3467, 64
    %v3474 = vpop.permute.xlu0 %3473
    %3476 = vrot.lane.b32.xlu0 %v3469, 64
    %v3477 = vpop.permute.xlu0 %3476
    %v3479 = vsel %vm3284, %v3474, 0
    %v3482 = vsel %vm3284, %v3477, 0
    %3484 = vmatpush.bf16.xpose.msra.mxu0 0
    %3485 = vmatpush.bf16.xpose.msra.mxu0 0
    %3486 = vmatpush.bf16.xpose.msra.mxu0 0
    %3487 = vmatpush.bf16.xpose.msra.mxu0 0
    %3488 = vmatpush.bf16.xpose.msra.mxu0 0
    %3489 = vmatpush.bf16.xpose.msra.mxu0 0
    %3490 = vmatpush.bf16.xpose.msra.mxu0 0
    %3491 = vmatpush.bf16.xpose.msra.mxu0 %v3482
    %3492 = vmatmul.bf16.gmra.mxu0 %v3479
    %v3493 = vpop.f32.mrf.mxu0
    %v3494 = vadd.f32 0.0, %v3493
    %v3495 = vpop.f32.mrf.mxu0
    %3496 = vdwg.mxu0
    %v3497 = vsel %vm3304, %v3494, -inf
    %3498 = vmax.xlane.f32.xlu0 %v3497
    %v3499 = vpop.xlane.xlu0 %3498
    %v3500 = vsub.f32 %v3494, %v3499
    %v3501 = vmul.f32 %v3500, 1.442695
    %v3502 = vpow.pop %v3501
    %v3503 = vsel %vm3304, %v3502, 0.0
    %3504 = vadd.xlane.f32.xlu0 %v3503
    %v3505 = vpop.xlane.xlu0 %3504
    %v3506 = vrcp.pop %v3505
    %v3507 = vmul.f32 %v3502, %v3506
    %v3508 = vpack.c.bf16 %v3507, %v3507
    %3510 = vrot.lane.b32.xlu0 %v3471, 64
    %v3511 = vpop.permute.xlu0 %3510
    %v3513 = vsel %vm3304, %v3508, 0
    %v3516 = vsel %vm3320, %v3511, 0
    %3518 = vmatpush.bf16.msra.mxu0 0
    %3519 = vmatpush.bf16.msra.mxu0 0
    %3520 = vmatpush.bf16.msra.mxu0 0
    %3521 = vmatpush.bf16.msra.mxu0 0
    %3522 = vmatpush.bf16.msra.mxu0 0
    %3523 = vmatpush.bf16.msra.mxu0 0
    %3524 = vmatpush.bf16.msra.mxu0 0
    %3525 = vmatpush.bf16.msra.mxu0 %v3516
    %3526 = vmatmul.bf16.gmra.mxu0 %v3513
    %v3527 = vpop.f32.mrf.mxu0
    %v3528 = vadd.f32 0.0, %v3527
    %v3529 = vpop.f32.mrf.mxu0
    %3530 = vdwg.mxu0
    %3532 = vrot.lane.b32.xlu0 %v3528, 64
    %v3533 = vpop.permute.xlu0 %3532
    %3535 = vst.msk [vmem:[#allocation5 + $0x8] sm:$0xff] %vm3407, %v3533
    %v3536 = vld [vmem:[#allocation2 + $0x10] sm:$0xff]
    %v3537 = vpack.c.bf16 %v3536, %v3536
    %v3538 = vld [vmem:[#allocation3 + $0x10] sm:$0xff]
    %v3539 = vpack.c.bf16 %v3538, %v3538
    %v3540 = vld [vmem:[#allocation4 + $0x10] sm:$0xff]
    %v3541 = vpack.c.bf16 %v3540, %v3540
    %v3543 = vsel %vm3284, %v3537, 0
    %v3546 = vsel %vm3284, %v3539, 0
    %3548 = vmatpush.bf16.xpose.msra.mxu0 0
    %3549 = vmatpush.bf16.xpose.msra.mxu0 0
    %3550 = vmatpush.bf16.xpose.msra.mxu0 0
    %3551 = vmatpush.bf16.xpose.msra.mxu0 0
    %3552 = vmatpush.bf16.xpose.msra.mxu0 0
    %3553 = vmatpush.bf16.xpose.msra.mxu0 0
    %3554 = vmatpush.bf16.xpose.msra.mxu0 0
    %3555 = vmatpush.bf16.xpose.msra.mxu0 %v3546
    %3556 = vmatmul.bf16.gmra.mxu0 %v3543
    %v3557 = vpop.f32.mrf.mxu0
    %v3558 = vadd.f32 0.0, %v3557
    %v3559 = vpop.f32.mrf.mxu0
    %3560 = vdwg.mxu0
    %v3561 = vsel %vm3304, %v3558, -inf
    %3562 = vmax.xlane.f32.xlu0 %v3561
    %v3563 = vpop.xlane.xlu0 %3562
    %v3564 = vsub.f32 %v3558, %v3563
    %v3565 = vmul.f32 %v3564, 1.442695
    %v3566 = vpow.pop %v3565
    %v3567 = vsel %vm3304, %v3566, 0.0
    %3568 = vadd.xlane.f32.xlu0 %v3567
    %v3569 = vpop.xlane.xlu0 %3568
    %v3570 = vrcp.pop %v3569
    %v3571 = vmul.f32 %v3566, %v3570
    %v3572 = vpack.c.bf16 %v3571, %v3571
    %v3574 = vsel %vm3304, %v3572, 0
    %v3577 = vsel %vm3320, %v3541, 0
    %3579 = vmatpush.bf16.msra.mxu0 0
    %3580 = vmatpush.bf16.msra.mxu0 0
    %3581 = vmatpush.bf16.msra.mxu0 0
    %3582 = vmatpush.bf16.msra.mxu0 0
    %3583 = vmatpush.bf16.msra.mxu0 0
    %3584 = vmatpush.bf16.msra.mxu0 0
    %3585 = vmatpush.bf16.msra.mxu0 0
    %3586 = vmatpush.bf16.msra.mxu0 %v3577
    %3587 = vmatmul.bf16.gmra.mxu0 %v3574
    %v3588 = vpop.f32.mrf.mxu0
    %v3589 = vadd.f32 0.0, %v3588
    %v3590 = vpop.f32.mrf.mxu0
    %3591 = vdwg.mxu0
    %3592 = vst.msk [vmem:[#allocation5 + $0x10] sm:$0xff] %vm3284, %v3589
    %v3593 = vld [vmem:[#allocation2 + $0x10] sm:$0xff]
    %v3594 = vpack.c.bf16 %v3593, %v3593
    %v3595 = vld [vmem:[#allocation3 + $0x10] sm:$0xff]
    %v3596 = vpack.c.bf16 %v3595, %v3595
    %v3597 = vld [vmem:[#allocation4 + $0x10] sm:$0xff]
    %v3598 = vpack.c.bf16 %v3597, %v3597
    %3600 = vrot.lane.b32.xlu0 %v3594, 64
    %v3601 = vpop.permute.xlu0 %3600
    %3603 = vrot.lane.b32.xlu0 %v3596, 64
    %v3604 = vpop.permute.xlu0 %3603
    %v3606 = vsel %vm3284, %v3601, 0
    %v3609 = vsel %vm3284, %v3604, 0
    %3611 = vmatpush.bf16.xpose.msra.mxu0 0
    %3612 = vmatpush.bf16.xpose.msra.mxu0 0
    %3613 = vmatpush.bf16.xpose.msra.mxu0 0
    %3614 = vmatpush.bf16.xpose.msra.mxu0 0
    %3615 = vmatpush.bf16.xpose.msra.mxu0 0
    %3616 = vmatpush.bf16.xpose.msra.mxu0 0
    %3617 = vmatpush.bf16.xpose.msra.mxu0 0
    %3618 = vmatpush.bf16.xpose.msra.mxu0 %v3609
    %3619 = vmatmul.bf16.gmra.mxu0 %v3606
    %v3620 = vpop.f32.mrf.mxu0
    %v3621 = vadd.f32 0.0, %v3620
    %v3622 = vpop.f32.mrf.mxu0
    %3623 = vdwg.mxu0
    %v3624 = vsel %vm3304, %v3621, -inf
    %3625 = vmax.xlane.f32.xlu0 %v3624
    %v3626 = vpop.xlane.xlu0 %3625
    %v3627 = vsub.f32 %v3621, %v3626
    %v3628 = vmul.f32 %v3627, 1.442695
    %v3629 = vpow.pop %v3628
    %v3630 = vsel %vm3304, %v3629, 0.0
    %3631 = vadd.xlane.f32.xlu0 %v3630
    %v3632 = vpop.xlane.xlu0 %3631
    %v3633 = vrcp.pop %v3632
    %v3634 = vmul.f32 %v3629, %v3633
    %v3635 = vpack.c.bf16 %v3634, %v3634
    %3637 = vrot.lane.b32.xlu0 %v3598, 64
    %v3638 = vpop.permute.xlu0 %3637
    %v3640 = vsel %vm3304, %v3635, 0
    %v3643 = vsel %vm3320, %v3638, 0
    %3645 = vmatpush.bf16.msra.mxu0 0
    %3646 = vmatpush.bf16.msra.mxu0 0
    %3647 = vmatpush.bf16.msra.mxu0 0
    %3648 = vmatpush.bf16.msra.mxu0 0
    %3649 = vmatpush.bf16.msra.mxu0 0
    %3650 = vmatpush.bf16.msra.mxu0 0
    %3651 = vmatpush.bf16.msra.mxu0 0
    %3652 = vmatpush.bf16.msra.mxu0 %v3643
    %3653 = vmatmul.bf16.gmra.mxu0 %v3640
    %v3654 = vpop.f32.mrf.mxu0
    %v3655 = vadd.f32 0.0, %v3654
    %v3656 = vpop.f32.mrf.mxu0
    %3657 = vdwg.mxu0
    %3659 = vrot.lane.b32.xlu0 %v3655, 64
    %v3660 = vpop.permute.xlu0 %3659
    %3662 = vst.msk [vmem:[#allocation5 + $0x10] sm:$0xff] %vm3407, %v3660
    %v3663 = vld [vmem:[#allocation2 + $0x18] sm:$0xff]
    %v3664 = vpack.c.bf16 %v3663, %v3663
    %v3665 = vld [vmem:[#allocation3 + $0x18] sm:$0xff]
    %v3666 = vpack.c.bf16 %v3665, %v3665
    %v3667 = vld [vmem:[#allocation4 + $0x18] sm:$0xff]
    %v3668 = vpack.c.bf16 %v3667, %v3667
    %v3670 = vsel %vm3284, %v3664, 0
    %v3673 = vsel %vm3284, %v3666, 0
    %3675 = vmatpush.bf16.xpose.msra.mxu0 0
    %3676 = vmatpush.bf16.xpose.msra.mxu0 0
    %3677 = vmatpush.bf16.xpose.msra.mxu0 0
    %3678 = vmatpush.bf16.xpose.msra.mxu0 0
    %3679 = vmatpush.bf16.xpose.msra.mxu0 0
    %3680 = vmatpush.bf16.xpose.msra.mxu0 0
    %3681 = vmatpush.bf16.xpose.msra.mxu0 0
    %3682 = vmatpush.bf16.xpose.msra.mxu0 %v3673
    %3683 = vmatmul.bf16.gmra.mxu0 %v3670
    %v3684 = vpop.f32.mrf.mxu0
    %v3685 = vadd.f32 0.0, %v3684
    %v3686 = vpop.f32.mrf.mxu0
    %3687 = vdwg.mxu0
    %v3688 = vsel %vm3304, %v3685, -inf
    %3689 = vmax.xlane.f32.xlu0 %v3688
    %v3690 = vpop.xlane.xlu0 %3689
    %v3691 = vsub.f32 %v3685, %v3690
    %v3692 = vmul.f32 %v3691, 1.442695
    %v3693 = vpow.pop %v3692
    %v3694 = vsel %vm3304, %v3693, 0.0
    %3695 = vadd.xlane.f32.xlu0 %v3694
    %v3696 = vpop.xlane.xlu0 %3695
    %v3697 = vrcp.pop %v3696
    %v3698 = vmul.f32 %v3693, %v3697
    %v3699 = vpack.c.bf16 %v3698, %v3698
    %v3701 = vsel %vm3304, %v3699, 0
    %v3704 = vsel %vm3320, %v3668, 0
    %3706 = vmatpush.bf16.msra.mxu0 0
    %3707 = vmatpush.bf16.msra.mxu0 0
    %3708 = vmatpush.bf16.msra.mxu0 0
    %3709 = vmatpush.bf16.msra.mxu0 0
    %3710 = vmatpush.bf16.msra.mxu0 0
    %3711 = vmatpush.bf16.msra.mxu0 0
    %3712 = vmatpush.bf16.msra.mxu0 0
    %3713 = vmatpush.bf16.msra.mxu0 %v3704
    %3714 = vmatmul.bf16.gmra.mxu0 %v3701
    %v3715 = vpop.f32.mrf.mxu0
    %v3716 = vadd.f32 0.0, %v3715
    %v3717 = vpop.f32.mrf.mxu0
    %3718 = vdwg.mxu0
    %3719 = vst.msk [vmem:[#allocation5 + $0x18] sm:$0xff] %vm3284, %v3716
    %v3720 = vld [vmem:[#allocation2 + $0x18] sm:$0xff]
    %v3721 = vpack.c.bf16 %v3720, %v3720
    %v3722 = vld [vmem:[#allocation3 + $0x18] sm:$0xff]
    %v3723 = vpack.c.bf16 %v3722, %v3722
    %v3724 = vld [vmem:[#allocation4 + $0x18] sm:$0xff]
    %v3725 = vpack.c.bf16 %v3724, %v3724
    %3727 = vrot.lane.b32.xlu0 %v3721, 64
    %v3728 = vpop.permute.xlu0 %3727
    %3730 = vrot.lane.b32.xlu0 %v3723, 64
    %v3731 = vpop.permute.xlu0 %3730
    %v3733 = vsel %vm3284, %v3728, 0
    %v3736 = vsel %vm3284, %v3731, 0
    %3738 = vmatpush.bf16.xpose.msra.mxu0 0
    %3739 = vmatpush.bf16.xpose.msra.mxu0 0
    %3740 = vmatpush.bf16.xpose.msra.mxu0 0
    %3741 = vmatpush.bf16.xpose.msra.mxu0 0
    %3742 = vmatpush.bf16.xpose.msra.mxu0 0
    %3743 = vmatpush.bf16.xpose.msra.mxu0 0
    %3744 = vmatpush.bf16.xpose.msra.mxu0 0
    %3745 = vmatpush.bf16.xpose.msra.mxu0 %v3736
    %3746 = vmatmul.bf16.gmra.mxu0 %v3733
    %v3747 = vpop.f32.mrf.mxu0
    %v3748 = vadd.f32 0.0, %v3747
    %v3749 = vpop.f32.mrf.mxu0
    %3750 = vdwg.mxu0
    %v3751 = vsel %vm3304, %v3748, -inf
    %3752 = vmax.xlane.f32.xlu0 %v3751
    %v3753 = vpop.xlane.xlu0 %3752
    %v3754 = vsub.f32 %v3748, %v3753
    %v3755 = vmul.f32 %v3754, 1.442695
    %v3756 = vpow.pop %v3755
    %v3757 = vsel %vm3304, %v3756, 0.0
    %3758 = vadd.xlane.f32.xlu0 %v3757
    %v3759 = vpop.xlane.xlu0 %3758
    %v3760 = vrcp.pop %v3759
    %v3761 = vmul.f32 %v3756, %v3760
    %v3762 = vpack.c.bf16 %v3761, %v3761
    %3764 = vrot.lane.b32.xlu0 %v3725, 64
    %v3765 = vpop.permute.xlu0 %3764
    %v3767 = vsel %vm3304, %v3762, 0
    %v3770 = vsel %vm3320, %v3765, 0
    %3772 = vmatpush.bf16.msra.mxu0 0
    %3773 = vmatpush.bf16.msra.mxu0 0
    %3774 = vmatpush.bf16.msra.mxu0 0
    %3775 = vmatpush.bf16.msra.mxu0 0
    %3776 = vmatpush.bf16.msra.mxu0 0
    %3777 = vmatpush.bf16.msra.mxu0 0
    %3778 = vmatpush.bf16.msra.mxu0 0
    %3779 = vmatpush.bf16.msra.mxu0 %v3770
    %3780 = vmatmul.bf16.gmra.mxu0 %v3767
    %v3781 = vpop.f32.mrf.mxu0
    %v3782 = vadd.f32 0.0, %v3781
    %v3783 = vpop.f32.mrf.mxu0
    %3784 = vdwg.mxu0
    %3786 = vrot.lane.b32.xlu0 %v3782, 64
    %v3787 = vpop.permute.xlu0 %3786
    %3789 = vst.msk [vmem:[#allocation5 + $0x18] sm:$0xff] %vm3407, %v3787
    %v3790 = vld [vmem:[#allocation2 + $0x20] sm:$0xff]
    %v3791 = vpack.c.bf16 %v3790, %v3790
    %v3792 = vld [vmem:[#allocation3 + $0x20] sm:$0xff]
    %v3793 = vpack.c.bf16 %v3792, %v3792
    %v3794 = vld [vmem:[#allocation4 + $0x20] sm:$0xff]
    %v3795 = vpack.c.bf16 %v3794, %v3794
    %v3797 = vsel %vm3284, %v3791, 0
    %v3800 = vsel %vm3284, %v3793, 0
    %3802 = vmatpush.bf16.xpose.msra.mxu0 0
    %3803 = vmatpush.bf16.xpose.msra.mxu0 0
    %3804 = vmatpush.bf16.xpose.msra.mxu0 0
    %3805 = vmatpush.bf16.xpose.msra.mxu0 0
    %3806 = vmatpush.bf16.xpose.msra.mxu0 0
    %3807 = vmatpush.bf16.xpose.msra.mxu0 0
    %3808 = vmatpush.bf16.xpose.msra.mxu0 0
    %3809 = vmatpush.bf16.xpose.msra.mxu0 %v3800
    %3810 = vmatmul.bf16.gmra.mxu0 %v3797
    %v3811 = vpop.f32.mrf.mxu0
    %v3812 = vadd.f32 0.0, %v3811
    %v3813 = vpop.f32.mrf.mxu0
    %3814 = vdwg.mxu0
    %v3815 = vsel %vm3304, %v3812, -inf
    %3816 = vmax.xlane.f32.xlu0 %v3815
    %v3817 = vpop.xlane.xlu0 %3816
    %v3818 = vsub.f32 %v3812, %v3817
    %v3819 = vmul.f32 %v3818, 1.442695
    %v3820 = vpow.pop %v3819
    %v3821 = vsel %vm3304, %v3820, 0.0
    %3822 = vadd.xlane.f32.xlu0 %v3821
    %v3823 = vpop.xlane.xlu0 %3822
    %v3824 = vrcp.pop %v3823
    %v3825 = vmul.f32 %v3820, %v3824
    %v3826 = vpack.c.bf16 %v3825, %v3825
    %v3828 = vsel %vm3304, %v3826, 0
    %v3831 = vsel %vm3320, %v3795, 0
    %3833 = vmatpush.bf16.msra.mxu0 0
    %3834 = vmatpush.bf16.msra.mxu0 0
    %3835 = vmatpush.bf16.msra.mxu0 0
    %3836 = vmatpush.bf16.msra.mxu0 0
    %3837 = vmatpush.bf16.msra.mxu0 0
    %3838 = vmatpush.bf16.msra.mxu0 0
    %3839 = vmatpush.bf16.msra.mxu0 0
    %3840 = vmatpush.bf16.msra.mxu0 %v3831
    %3841 = vmatmul.bf16.gmra.mxu0 %v3828
    %v3842 = vpop.f32.mrf.mxu0
    %v3843 = vadd.f32 0.0, %v3842
    %v3844 = vpop.f32.mrf.mxu0
    %3845 = vdwg.mxu0
    %3846 = vst.msk [vmem:[#allocation5 + $0x20] sm:$0xff] %vm3284, %v3843
    %v3847 = vld [vmem:[#allocation2 + $0x20] sm:$0xff]
    %v3848 = vpack.c.bf16 %v3847, %v3847
    %v3849 = vld [vmem:[#allocation3 + $0x20] sm:$0xff]
    %v3850 = vpack.c.bf16 %v3849, %v3849
    %v3851 = vld [vmem:[#allocation4 + $0x20] sm:$0xff]
    %v3852 = vpack.c.bf16 %v3851, %v3851
    %3854 = vrot.lane.b32.xlu0 %v3848, 64
    %v3855 = vpop.permute.xlu0 %3854
    %3857 = vrot.lane.b32.xlu0 %v3850, 64
    %v3858 = vpop.permute.xlu0 %3857
    %v3860 = vsel %vm3284, %v3855, 0
    %v3863 = vsel %vm3284, %v3858, 0
    %3865 = vmatpush.bf16.xpose.msra.mxu0 0
    %3866 = vmatpush.bf16.xpose.msra.mxu0 0
    %3867 = vmatpush.bf16.xpose.msra.mxu0 0
    %3868 = vmatpush.bf16.xpose.msra.mxu0 0
    %3869 = vmatpush.bf16.xpose.msra.mxu0 0
    %3870 = vmatpush.bf16.xpose.msra.mxu0 0
    %3871 = vmatpush.bf16.xpose.msra.mxu0 0
    %3872 = vmatpush.bf16.xpose.msra.mxu0 %v3863
    %3873 = vmatmul.bf16.gmra.mxu0 %v3860
    %v3874 = vpop.f32.mrf.mxu0
    %v3875 = vadd.f32 0.0, %v3874
    %v3876 = vpop.f32.mrf.mxu0
    %3877 = vdwg.mxu0
    %v3878 = vsel %vm3304, %v3875, -inf
    %3879 = vmax.xlane.f32.xlu0 %v3878
    %v3880 = vpop.xlane.xlu0 %3879
    %v3881 = vsub.f32 %v3875, %v3880
    %v3882 = vmul.f32 %v3881, 1.442695
    %v3883 = vpow.pop %v3882
    %v3884 = vsel %vm3304, %v3883, 0.0
    %3885 = vadd.xlane.f32.xlu0 %v3884
    %v3886 = vpop.xlane.xlu0 %3885
    %v3887 = vrcp.pop %v3886
    %v3888 = vmul.f32 %v3883, %v3887
    %v3889 = vpack.c.bf16 %v3888, %v3888
    %3891 = vrot.lane.b32.xlu0 %v3852, 64
    %v3892 = vpop.permute.xlu0 %3891
    %v3894 = vsel %vm3304, %v3889, 0
    %v3897 = vsel %vm3320, %v3892, 0
    %3899 = vmatpush.bf16.msra.mxu0 0
    %3900 = vmatpush.bf16.msra.mxu0 0
    %3901 = vmatpush.bf16.msra.mxu0 0
    %3902 = vmatpush.bf16.msra.mxu0 0
    %3903 = vmatpush.bf16.msra.mxu0 0
    %3904 = vmatpush.bf16.msra.mxu0 0
    %3905 = vmatpush.bf16.msra.mxu0 0
    %3906 = vmatpush.bf16.msra.mxu0 %v3897
    %3907 = vmatmul.bf16.gmra.mxu0 %v3894
    %v3908 = vpop.f32.mrf.mxu0
    %v3909 = vadd.f32 0.0, %v3908
    %v3910 = vpop.f32.mrf.mxu0
    %3911 = vdwg.mxu0
    %3913 = vrot.lane.b32.xlu0 %v3909, 64
    %v3914 = vpop.permute.xlu0 %3913
    %3916 = vst.msk [vmem:[#allocation5 + $0x20] sm:$0xff] %vm3407, %v3914
    %v3917 = vld [vmem:[#allocation2 + $0x28] sm:$0xff]
    %v3918 = vpack.c.bf16 %v3917, %v3917
    %v3919 = vld [vmem:[#allocation3 + $0x28] sm:$0xff]
    %v3920 = vpack.c.bf16 %v3919, %v3919
    %v3921 = vld [vmem:[#allocation4 + $0x28] sm:$0xff]
    %v3922 = vpack.c.bf16 %v3921, %v3921
    %v3924 = vsel %vm3284, %v3918, 0
    %v3927 = vsel %vm3284, %v3920, 0
    %3929 = vmatpush.bf16.xpose.msra.mxu0 0
    %3930 = vmatpush.bf16.xpose.msra.mxu0 0
    %3931 = vmatpush.bf16.xpose.msra.mxu0 0
    %3932 = vmatpush.bf16.xpose.msra.mxu0 0
    %3933 = vmatpush.bf16.xpose.msra.mxu0 0
    %3934 = vmatpush.bf16.xpose.msra.mxu0 0
    %3935 = vmatpush.bf16.xpose.msra.mxu0 0
    %3936 = vmatpush.bf16.xpose.msra.mxu0 %v3927
    %3937 = vmatmul.bf16.gmra.mxu0 %v3924
    %v3938 = vpop.f32.mrf.mxu0
    %v3939 = vadd.f32 0.0, %v3938
    %v3940 = vpop.f32.mrf.mxu0
    %3941 = vdwg.mxu0
    %v3942 = vsel %vm3304, %v3939, -inf
    %3943 = vmax.xlane.f32.xlu0 %v3942
    %v3944 = vpop.xlane.xlu0 %3943
    %v3945 = vsub.f32 %v3939, %v3944
    %v3946 = vmul.f32 %v3945, 1.442695
    %v3947 = vpow.pop %v3946
    %v3948 = vsel %vm3304, %v3947, 0.0
    %3949 = vadd.xlane.f32.xlu0 %v3948
    %v3950 = vpop.xlane.xlu0 %3949
    %v3951 = vrcp.pop %v3950
    %v3952 = vmul.f32 %v3947, %v3951
    %v3953 = vpack.c.bf16 %v3952, %v3952
    %v3955 = vsel %vm3304, %v3953, 0
    %v3958 = vsel %vm3320, %v3922, 0
    %3960 = vmatpush.bf16.msra.mxu0 0
    %3961 = vmatpush.bf16.msra.mxu0 0
    %3962 = vmatpush.bf16.msra.mxu0 0
    %3963 = vmatpush.bf16.msra.mxu0 0
    %3964 = vmatpush.bf16.msra.mxu0 0
    %3965 = vmatpush.bf16.msra.mxu0 0
    %3966 = vmatpush.bf16.msra.mxu0 0
    %3967 = vmatpush.bf16.msra.mxu0 %v3958
    %3968 = vmatmul.bf16.gmra.mxu0 %v3955
    %v3969 = vpop.f32.mrf.mxu0
    %v3970 = vadd.f32 0.0, %v3969
    %v3971 = vpop.f32.mrf.mxu0
    %3972 = vdwg.mxu0
    %3973 = vst.msk [vmem:[#allocation5 + $0x28] sm:$0xff] %vm3284, %v3970
    %v3974 = vld [vmem:[#allocation2 + $0x28] sm:$0xff]
    %v3975 = vpack.c.bf16 %v3974, %v3974
    %v3976 = vld [vmem:[#allocation3 + $0x28] sm:$0xff]
    %v3977 = vpack.c.bf16 %v3976, %v3976
    %v3978 = vld [vmem:[#allocation4 + $0x28] sm:$0xff]
    %v3979 = vpack.c.bf16 %v3978, %v3978
    %3981 = vrot.lane.b32.xlu0 %v3975, 64
    %v3982 = vpop.permute.xlu0 %3981
    %3984 = vrot.lane.b32.xlu0 %v3977, 64
    %v3985 = vpop.permute.xlu0 %3984
    %v3987 = vsel %vm3284, %v3982, 0
    %v3990 = vsel %vm3284, %v3985, 0
    %3992 = vmatpush.bf16.xpose.msra.mxu0 0
    %3993 = vmatpush.bf16.xpose.msra.mxu0 0
    %3994 = vmatpush.bf16.xpose.msra.mxu0 0
    %3995 = vmatpush.bf16.xpose.msra.mxu0 0
    %3996 = vmatpush.bf16.xpose.msra.mxu0 0
    %3997 = vmatpush.bf16.xpose.msra.mxu0 0
    %3998 = vmatpush.bf16.xpose.msra.mxu0 0
    %3999 = vmatpush.bf16.xpose.msra.mxu0 %v3990
    %4000 = vmatmul.bf16.gmra.mxu0 %v3987
    %v4001 = vpop.f32.mrf.mxu0
    %v4002 = vadd.f32 0.0, %v4001
    %v4003 = vpop.f32.mrf.mxu0
    %4004 = vdwg.mxu0
    %v4005 = vsel %vm3304, %v4002, -inf
    %4006 = vmax.xlane.f32.xlu0 %v4005
    %v4007 = vpop.xlane.xlu0 %4006
    %v4008 = vsub.f32 %v4002, %v4007
    %v4009 = vmul.f32 %v4008, 1.442695
    %v4010 = vpow.pop %v4009
    %v4011 = vsel %vm3304, %v4010, 0.0
    %4012 = vadd.xlane.f32.xlu0 %v4011
    %v4013 = vpop.xlane.xlu0 %4012
    %v4014 = vrcp.pop %v4013
    %v4015 = vmul.f32 %v4010, %v4014
    %v4016 = vpack.c.bf16 %v4015, %v4015
    %4018 = vrot.lane.b32.xlu0 %v3979, 64
    %v4019 = vpop.permute.xlu0 %4018
    %v4021 = vsel %vm3304, %v4016, 0
    %v4024 = vsel %vm3320, %v4019, 0
    %4026 = vmatpush.bf16.msra.mxu0 0
    %4027 = vmatpush.bf16.msra.mxu0 0
    %4028 = vmatpush.bf16.msra.mxu0 0
    %4029 = vmatpush.bf16.msra.mxu0 0
    %4030 = vmatpush.bf16.msra.mxu0 0
    %4031 = vmatpush.bf16.msra.mxu0 0
    %4032 = vmatpush.bf16.msra.mxu0 0
    %4033 = vmatpush.bf16.msra.mxu0 %v4024
    %4034 = vmatmul.bf16.gmra.mxu0 %v4021
    %v4035 = vpop.f32.mrf.mxu0
    %v4036 = vadd.f32 0.0, %v4035
    %v4037 = vpop.f32.mrf.mxu0
    %4038 = vdwg.mxu0
    %4040 = vrot.lane.b32.xlu0 %v4036, 64
    %v4041 = vpop.permute.xlu0 %4040
    %4043 = vst.msk [vmem:[#allocation5 + $0x28] sm:$0xff] %vm3407, %v4041
    %v4044 = vld [vmem:[#allocation2 + $0x30] sm:$0xff]
    %v4045 = vpack.c.bf16 %v4044, %v4044
    %v4046 = vld [vmem:[#allocation3 + $0x30] sm:$0xff]
    %v4047 = vpack.c.bf16 %v4046, %v4046
    %v4048 = vld [vmem:[#allocation4 + $0x30] sm:$0xff]
    %v4049 = vpack.c.bf16 %v4048, %v4048
    %v4051 = vsel %vm3284, %v4045, 0
    %v4054 = vsel %vm3284, %v4047, 0
    %4056 = vmatpush.bf16.xpose.msra.mxu0 0
    %4057 = vmatpush.bf16.xpose.msra.mxu0 0
    %4058 = vmatpush.bf16.xpose.msra.mxu0 0
    %4059 = vmatpush.bf16.xpose.msra.mxu0 0
    %4060 = vmatpush.bf16.xpose.msra.mxu0 0
    %4061 = vmatpush.bf16.xpose.msra.mxu0 0
    %4062 = vmatpush.bf16.xpose.msra.mxu0 0
    %4063 = vmatpush.bf16.xpose.msra.mxu0 %v4054
    %4064 = vmatmul.bf16.gmra.mxu0 %v4051
    %v4065 = vpop.f32.mrf.mxu0
    %v4066 = vadd.f32 0.0, %v4065
    %v4067 = vpop.f32.mrf.mxu0
    %4068 = vdwg.mxu0
    %v4069 = vsel %vm3304, %v4066, -inf
    %4070 = vmax.xlane.f32.xlu0 %v4069
    %v4071 = vpop.xlane.xlu0 %4070
    %v4072 = vsub.f32 %v4066, %v4071
    %v4073 = vmul.f32 %v4072, 1.442695
    %v4074 = vpow.pop %v4073
    %v4075 = vsel %vm3304, %v4074, 0.0
    %4076 = vadd.xlane.f32.xlu0 %v4075
    %v4077 = vpop.xlane.xlu0 %4076
    %v4078 = vrcp.pop %v4077
    %v4079 = vmul.f32 %v4074, %v4078
    %v4080 = vpack.c.bf16 %v4079, %v4079
    %v4082 = vsel %vm3304, %v4080, 0
    %v4085 = vsel %vm3320, %v4049, 0
    %4087 = vmatpush.bf16.msra.mxu0 0
    %4088 = vmatpush.bf16.msra.mxu0 0
    %4089 = vmatpush.bf16.msra.mxu0 0
    %4090 = vmatpush.bf16.msra.mxu0 0
    %4091 = vmatpush.bf16.msra.mxu0 0
    %4092 = vmatpush.bf16.msra.mxu0 0
    %4093 = vmatpush.bf16.msra.mxu0 0
    %4094 = vmatpush.bf16.msra.mxu0 %v4085
    %4095 = vmatmul.bf16.gmra.mxu0 %v4082
    %v4096 = vpop.f32.mrf.mxu0
    %v4097 = vadd.f32 0.0, %v4096
    %v4098 = vpop.f32.mrf.mxu0
    %4099 = vdwg.mxu0
    %4100 = vst.msk [vmem:[#allocation5 + $0x30] sm:$0xff] %vm3284, %v4097
    %v4101 = vld [vmem:[#allocation2 + $0x30] sm:$0xff]
    %v4102 = vpack.c.bf16 %v4101, %v4101
    %v4103 = vld [vmem:[#allocation3 + $0x30] sm:$0xff]
    %v4104 = vpack.c.bf16 %v4103, %v4103
    %v4105 = vld [vmem:[#allocation4 + $0x30] sm:$0xff]
    %v4106 = vpack.c.bf16 %v4105, %v4105
    %4108 = vrot.lane.b32.xlu0 %v4102, 64
    %v4109 = vpop.permute.xlu0 %4108
    %4111 = vrot.lane.b32.xlu0 %v4104, 64
    %v4112 = vpop.permute.xlu0 %4111
    %v4114 = vsel %vm3284, %v4109, 0
    %v4117 = vsel %vm3284, %v4112, 0
    %4119 = vmatpush.bf16.xpose.msra.mxu0 0
    %4120 = vmatpush.bf16.xpose.msra.mxu0 0
    %4121 = vmatpush.bf16.xpose.msra.mxu0 0
    %4122 = vmatpush.bf16.xpose.msra.mxu0 0
    %4123 = vmatpush.bf16.xpose.msra.mxu0 0
    %4124 = vmatpush.bf16.xpose.msra.mxu0 0
    %4125 = vmatpush.bf16.xpose.msra.mxu0 0
    %4126 = vmatpush.bf16.xpose.msra.mxu0 %v4117
    %4127 = vmatmul.bf16.gmra.mxu0 %v4114
    %v4128 = vpop.f32.mrf.mxu0
    %v4129 = vadd.f32 0.0, %v4128
    %v4130 = vpop.f32.mrf.mxu0
    %4131 = vdwg.mxu0
    %v4132 = vsel %vm3304, %v4129, -inf
    %4133 = vmax.xlane.f32.xlu0 %v4132
    %v4134 = vpop.xlane.xlu0 %4133
    %v4135 = vsub.f32 %v4129, %v4134
    %v4136 = vmul.f32 %v4135, 1.442695
    %v4137 = vpow.pop %v4136
    %v4138 = vsel %vm3304, %v4137, 0.0
    %4139 = vadd.xlane.f32.xlu0 %v4138
    %v4140 = vpop.xlane.xlu0 %4139
    %v4141 = vrcp.pop %v4140
    %v4142 = vmul.f32 %v4137, %v4141
    %v4143 = vpack.c.bf16 %v4142, %v4142
    %4145 = vrot.lane.b32.xlu0 %v4106, 64
    %v4146 = vpop.permute.xlu0 %4145
    %v4148 = vsel %vm3304, %v4143, 0
    %v4151 = vsel %vm3320, %v4146, 0
    %4153 = vmatpush.bf16.msra.mxu0 0
    %4154 = vmatpush.bf16.msra.mxu0 0
    %4155 = vmatpush.bf16.msra.mxu0 0
    %4156 = vmatpush.bf16.msra.mxu0 0
    %4157 = vmatpush.bf16.msra.mxu0 0
    %4158 = vmatpush.bf16.msra.mxu0 0
    %4159 = vmatpush.bf16.msra.mxu0 0
    %4160 = vmatpush.bf16.msra.mxu0 %v4151
    %4161 = vmatmul.bf16.gmra.mxu0 %v4148
    %v4162 = vpop.f32.mrf.mxu0
    %v4163 = vadd.f32 0.0, %v4162
    %v4164 = vpop.f32.mrf.mxu0
    %4165 = vdwg.mxu0
    %4167 = vrot.lane.b32.xlu0 %v4163, 64
    %v4168 = vpop.permute.xlu0 %4167
    %4170 = vst.msk [vmem:[#allocation5 + $0x30] sm:$0xff] %vm3407, %v4168
    %v4171 = vld [vmem:[#allocation2 + $0x38] sm:$0xff]
    %v4172 = vpack.c.bf16 %v4171, %v4171
    %v4173 = vld [vmem:[#allocation3 + $0x38] sm:$0xff]
    %v4174 = vpack.c.bf16 %v4173, %v4173
    %v4175 = vld [vmem:[#allocation4 + $0x38] sm:$0xff]
    %v4176 = vpack.c.bf16 %v4175, %v4175
    %v4178 = vsel %vm3284, %v4172, 0
    %v4181 = vsel %vm3284, %v4174, 0
    %4183 = vmatpush.bf16.xpose.msra.mxu0 0
    %4184 = vmatpush.bf16.xpose.msra.mxu0 0
    %4185 = vmatpush.bf16.xpose.msra.mxu0 0
    %4186 = vmatpush.bf16.xpose.msra.mxu0 0
    %4187 = vmatpush.bf16.xpose.msra.mxu0 0
    %4188 = vmatpush.bf16.xpose.msra.mxu0 0
    %4189 = vmatpush.bf16.xpose.msra.mxu0 0
    %4190 = vmatpush.bf16.xpose.msra.mxu0 %v4181
    %4191 = vmatmul.bf16.gmra.mxu0 %v4178
    %v4192 = vpop.f32.mrf.mxu0
    %v4193 = vadd.f32 0.0, %v4192
    %v4194 = vpop.f32.mrf.mxu0
    %4195 = vdwg.mxu0
    %v4196 = vsel %vm3304, %v4193, -inf
    %4197 = vmax.xlane.f32.xlu0 %v4196
    %v4198 = vpop.xlane.xlu0 %4197
    %v4199 = vsub.f32 %v4193, %v4198
    %v4200 = vmul.f32 %v4199, 1.442695
    %v4201 = vpow.pop %v4200
    %v4202 = vsel %vm3304, %v4201, 0.0
    %4203 = vadd.xlane.f32.xlu0 %v4202
    %v4204 = vpop.xlane.xlu0 %4203
    %v4205 = vrcp.pop %v4204
    %v4206 = vmul.f32 %v4201, %v4205
    %v4207 = vpack.c.bf16 %v4206, %v4206
    %v4209 = vsel %vm3304, %v4207, 0
    %v4212 = vsel %vm3320, %v4176, 0
    %4214 = vmatpush.bf16.msra.mxu0 0
    %4215 = vmatpush.bf16.msra.mxu0 0
    %4216 = vmatpush.bf16.msra.mxu0 0
    %4217 = vmatpush.bf16.msra.mxu0 0
    %4218 = vmatpush.bf16.msra.mxu0 0
    %4219 = vmatpush.bf16.msra.mxu0 0
    %4220 = vmatpush.bf16.msra.mxu0 0
    %4221 = vmatpush.bf16.msra.mxu0 %v4212
    %4222 = vmatmul.bf16.gmra.mxu0 %v4209
    %v4223 = vpop.f32.mrf.mxu0
    %v4224 = vadd.f32 0.0, %v4223
    %v4225 = vpop.f32.mrf.mxu0
    %4226 = vdwg.mxu0
    %4227 = vst.msk [vmem:[#allocation5 + $0x38] sm:$0xff] %vm3284, %v4224
    %v4228 = vld [vmem:[#allocation2 + $0x38] sm:$0xff]
    %v4229 = vpack.c.bf16 %v4228, %v4228
    %v4230 = vld [vmem:[#allocation3 + $0x38] sm:$0xff]
    %v4231 = vpack.c.bf16 %v4230, %v4230
    %v4232 = vld [vmem:[#allocation4 + $0x38] sm:$0xff]
    %v4233 = vpack.c.bf16 %v4232, %v4232
    %4235 = vrot.lane.b32.xlu0 %v4229, 64
    %v4236 = vpop.permute.xlu0 %4235
    %4238 = vrot.lane.b32.xlu0 %v4231, 64
    %v4239 = vpop.permute.xlu0 %4238
    %v4241 = vsel %vm3284, %v4236, 0
    %v4244 = vsel %vm3284, %v4239, 0
    %4246 = vmatpush.bf16.xpose.msra.mxu0 0
    %4247 = vmatpush.bf16.xpose.msra.mxu0 0
    %4248 = vmatpush.bf16.xpose.msra.mxu0 0
    %4249 = vmatpush.bf16.xpose.msra.mxu0 0
    %4250 = vmatpush.bf16.xpose.msra.mxu0 0
    %4251 = vmatpush.bf16.xpose.msra.mxu0 0
    %4252 = vmatpush.bf16.xpose.msra.mxu0 0
    %4253 = vmatpush.bf16.xpose.msra.mxu0 %v4244
    %4254 = vmatmul.bf16.gmra.mxu0 %v4241
    %v4255 = vpop.f32.mrf.mxu0
    %v4256 = vadd.f32 0.0, %v4255
    %v4257 = vpop.f32.mrf.mxu0
    %4258 = vdwg.mxu0
    %v4259 = vsel %vm3304, %v4256, -inf
    %4260 = vmax.xlane.f32.xlu0 %v4259
    %v4261 = vpop.xlane.xlu0 %4260
    %v4262 = vsub.f32 %v4256, %v4261
    %v4263 = vmul.f32 %v4262, 1.442695
    %v4264 = vpow.pop %v4263
    %v4265 = vsel %vm3304, %v4264, 0.0
    %4266 = vadd.xlane.f32.xlu0 %v4265
    %v4267 = vpop.xlane.xlu0 %4266
    %v4268 = vrcp.pop %v4267
    %v4269 = vmul.f32 %v4264, %v4268
    %v4270 = vpack.c.bf16 %v4269, %v4269
    %4272 = vrot.lane.b32.xlu0 %v4233, 64
    %v4273 = vpop.permute.xlu0 %4272
    %v4275 = vsel %vm3304, %v4270, 0
    %v4278 = vsel %vm3320, %v4273, 0
    %4280 = vmatpush.bf16.msra.mxu0 0
    %4281 = vmatpush.bf16.msra.mxu0 0
    %4282 = vmatpush.bf16.msra.mxu0 0
    %4283 = vmatpush.bf16.msra.mxu0 0
    %4284 = vmatpush.bf16.msra.mxu0 0
    %4285 = vmatpush.bf16.msra.mxu0 0
    %4286 = vmatpush.bf16.msra.mxu0 0
    %4287 = vmatpush.bf16.msra.mxu0 %v4278
    %4288 = vmatmul.bf16.gmra.mxu0 %v4275
    %v4289 = vpop.f32.mrf.mxu0
    %v4290 = vadd.f32 0.0, %v4289
    %v4291 = vpop.f32.mrf.mxu0
    %4292 = vdwg.mxu0
    %4294 = vrot.lane.b32.xlu0 %v4290, 64
    %v4295 = vpop.permute.xlu0 %4294
    %4297 = vst.msk [vmem:[#allocation5 + $0x38] sm:$0xff] %vm3407, %v4295
    %v4298 = vld [vmem:[#allocation5] sm:$0xff]
    %v4299 = vld [vmem:[#allocation5 + $0x8] sm:$0xff]
    %v4300 = vld [vmem:[#allocation5 + $0x10] sm:$0xff]
    %v4301 = vld [vmem:[#allocation5 + $0x18] sm:$0xff]
    %v4302 = vld [vmem:[#allocation5 + $0x20] sm:$0xff]
    %v4303 = vld [vmem:[#allocation5 + $0x28] sm:$0xff]
    %v4304 = vld [vmem:[#allocation5 + $0x30] sm:$0xff]
    %v4305 = vld [vmem:[#allocation5 + $0x38] sm:$0xff]
    %v4306 = vpack.c.bf16 %v4302, %v4298
    %v4307 = vpack.c.bf16 %v4303, %v4299
    %v4308 = vpack.c.bf16 %v4304, %v4300
    %v4309 = vpack.c.bf16 %v4305, %v4301
    %v4310 = vld [vmem:[#allocation20] sm:$0xff]
    %v4311 = vld [vmem:[#allocation20 + $0x8] sm:$0xff]
    %v4312 = vld [vmem:[#allocation20 + $0x10] sm:$0xff]
    %v4313 = vld [vmem:[#allocation20 + $0x18] sm:$0xff]
    %v4314 = vld [vmem:[#allocation20 + $0x20] sm:$0xff]
    %v4315 = vld [vmem:[#allocation20 + $0x28] sm:$0xff]
    %v4316 = vld [vmem:[#allocation20 + $0x30] sm:$0xff]
    %v4317 = vld [vmem:[#allocation20 + $0x38] sm:$0xff]
    %v4318 = vld [vmem:[#allocation20 + $0x40] sm:$0xff]
    %v4319 = vld [vmem:[#allocation20 + $0x48] sm:$0xff]
    %v4320 = vld [vmem:[#allocation20 + $0x50] sm:$0xff]
    %v4321 = vld [vmem:[#allocation20 + $0x58] sm:$0xff]
    %v4322 = vld [vmem:[#allocation20 + $0x60] sm:$0xff]
    %v4323 = vld [vmem:[#allocation20 + $0x68] sm:$0xff]
    %v4324 = vld [vmem:[#allocation20 + $0x70] sm:$0xff]
    %v4325 = vld [vmem:[#allocation20 + $0x78] sm:$0xff]
    %v4326 = vld [vmem:[#allocation20 + $0x80] sm:$0xff]
    %v4327 = vld [vmem:[#allocation20 + $0x88] sm:$0xff]
    %v4328 = vld [vmem:[#allocation20 + $0x90] sm:$0xff]
    %v4329 = vld [vmem:[#allocation20 + $0x98] sm:$0xff]
    %v4330 = vld [vmem:[#allocation20 + $0xa0] sm:$0xff]
    %v4331 = vld [vmem:[#allocation20 + $0xa8] sm:$0xff]
    %v4332 = vld [vmem:[#allocation20 + $0xb0] sm:$0xff]
    %v4333 = vld [vmem:[#allocation20 + $0xb8] sm:$0xff]
    %v4334 = vld [vmem:[#allocation20 + $0xc0] sm:$0xff]
    %v4335 = vld [vmem:[#allocation20 + $0xc8] sm:$0xff]
    %v4336 = vld [vmem:[#allocation20 + $0xd0] sm:$0xff]
    %v4337 = vld [vmem:[#allocation20 + $0xd8] sm:$0xff]
    %v4338 = vld [vmem:[#allocation20 + $0xe0] sm:$0xff]
    %v4339 = vld [vmem:[#allocation20 + $0xe8] sm:$0xff]
    %v4340 = vld [vmem:[#allocation20 + $0xf0] sm:$0xff]
    %v4341 = vld [vmem:[#allocation20 + $0xf8] sm:$0xff]
    %v4342 = vld [vmem:[#allocation20 + $0x100] sm:$0xff]
    %v4343 = vld [vmem:[#allocation20 + $0x108] sm:$0xff]
    %v4344 = vld [vmem:[#allocation20 + $0x110] sm:$0xff]
    %v4345 = vld [vmem:[#allocation20 + $0x118] sm:$0xff]
    %v4346 = vld [vmem:[#allocation20 + $0x120] sm:$0xff]
    %v4347 = vld [vmem:[#allocation20 + $0x128] sm:$0xff]
    %v4348 = vld [vmem:[#allocation20 + $0x130] sm:$0xff]
    %v4349 = vld [vmem:[#allocation20 + $0x138] sm:$0xff]
    %v4350 = vld [vmem:[#allocation20 + $0x140] sm:$0xff]
    %v4351 = vld [vmem:[#allocation20 + $0x148] sm:$0xff]
    %v4352 = vld [vmem:[#allocation20 + $0x150] sm:$0xff]
    %v4353 = vld [vmem:[#allocation20 + $0x158] sm:$0xff]
    %v4354 = vld [vmem:[#allocation20 + $0x160] sm:$0xff]
    %v4355 = vld [vmem:[#allocation20 + $0x168] sm:$0xff]
    %v4356 = vld [vmem:[#allocation20 + $0x170] sm:$0xff]
    %v4357 = vld [vmem:[#allocation20 + $0x178] sm:$0xff]
    %v4358 = vld [vmem:[#allocation20 + $0x180] sm:$0xff]
    %v4359 = vld [vmem:[#allocation20 + $0x188] sm:$0xff]
    %v4360 = vld [vmem:[#allocation20 + $0x190] sm:$0xff]
    %v4361 = vld [vmem:[#allocation20 + $0x198] sm:$0xff]
    %v4362 = vld [vmem:[#allocation20 + $0x1a0] sm:$0xff]
    %v4363 = vld [vmem:[#allocation20 + $0x1a8] sm:$0xff]
    %v4364 = vld [vmem:[#allocation20 + $0x1b0] sm:$0xff]
    %v4365 = vld [vmem:[#allocation20 + $0x1b8] sm:$0xff]
    %v4366 = vld [vmem:[#allocation20 + $0x1c0] sm:$0xff]
    %v4367 = vld [vmem:[#allocation20 + $0x1c8] sm:$0xff]
    %v4368 = vld [vmem:[#allocation20 + $0x1d0] sm:$0xff]
    %v4369 = vld [vmem:[#allocation20 + $0x1d8] sm:$0xff]
    %v4370 = vld [vmem:[#allocation20 + $0x1e0] sm:$0xff]
    %v4371 = vld [vmem:[#allocation20 + $0x1e8] sm:$0xff]
    %v4372 = vld [vmem:[#allocation20 + $0x1f0] sm:$0xff]
    %v4373 = vld [vmem:[#allocation20 + $0x1f8] sm:$0xff]
    %v4374 = vld [vmem:[#allocation20 + $0x200] sm:$0xff]
    %v4375 = vld [vmem:[#allocation20 + $0x208] sm:$0xff]
    %v4376 = vld [vmem:[#allocation20 + $0x210] sm:$0xff]
    %v4377 = vld [vmem:[#allocation20 + $0x218] sm:$0xff]
    %v4378 = vld [vmem:[#allocation20 + $0x220] sm:$0xff]
    %v4379 = vld [vmem:[#allocation20 + $0x228] sm:$0xff]
    %v4380 = vld [vmem:[#allocation20 + $0x230] sm:$0xff]
    %v4381 = vld [vmem:[#allocation20 + $0x238] sm:$0xff]
    %v4382 = vld [vmem:[#allocation20 + $0x240] sm:$0xff]
    %v4383 = vld [vmem:[#allocation20 + $0x248] sm:$0xff]
    %v4384 = vld [vmem:[#allocation20 + $0x250] sm:$0xff]
    %v4385 = vld [vmem:[#allocation20 + $0x258] sm:$0xff]
    %v4386 = vld [vmem:[#allocation20 + $0x260] sm:$0xff]
    %v4387 = vld [vmem:[#allocation20 + $0x268] sm:$0xff]
    %v4388 = vld [vmem:[#allocation20 + $0x270] sm:$0xff]
    %v4389 = vld [vmem:[#allocation20 + $0x278] sm:$0xff]
    %v4390 = vld [vmem:[#allocation20 + $0x280] sm:$0xff]
    %v4391 = vld [vmem:[#allocation20 + $0x288] sm:$0xff]
    %v4392 = vld [vmem:[#allocation20 + $0x290] sm:$0xff]
    %v4393 = vld [vmem:[#allocation20 + $0x298] sm:$0xff]
    %v4394 = vld [vmem:[#allocation20 + $0x2a0] sm:$0xff]
    %v4395 = vld [vmem:[#allocation20 + $0x2a8] sm:$0xff]
    %v4396 = vld [vmem:[#allocation20 + $0x2b0] sm:$0xff]
    %v4397 = vld [vmem:[#allocation20 + $0x2b8] sm:$0xff]
    %v4398 = vld [vmem:[#allocation20 + $0x2c0] sm:$0xff]
    %v4399 = vld [vmem:[#allocation20 + $0x2c8] sm:$0xff]
    %v4400 = vld [vmem:[#allocation20 + $0x2d0] sm:$0xff]
    %v4401 = vld [vmem:[#allocation20 + $0x2d8] sm:$0xff]
    %v4402 = vld [vmem:[#allocation20 + $0x2e0] sm:$0xff]
    %v4403 = vld [vmem:[#allocation20 + $0x2e8] sm:$0xff]
    %v4404 = vld [vmem:[#allocation20 + $0x2f0] sm:$0xff]
    %v4405 = vld [vmem:[#allocation20 + $0x2f8] sm:$0xff]
    %v4406 = vld [vmem:[#allocation20 + $0x300] sm:$0xff]
    %v4407 = vld [vmem:[#allocation20 + $0x308] sm:$0xff]
    %v4408 = vld [vmem:[#allocation20 + $0x310] sm:$0xff]
    %v4409 = vld [vmem:[#allocation20 + $0x318] sm:$0xff]
    %v4410 = vld [vmem:[#allocation20 + $0x320] sm:$0xff]
    %v4411 = vld [vmem:[#allocation20 + $0x328] sm:$0xff]
    %v4412 = vld [vmem:[#allocation20 + $0x330] sm:$0xff]
    %v4413 = vld [vmem:[#allocation20 + $0x338] sm:$0xff]
    %v4414 = vld [vmem:[#allocation20 + $0x340] sm:$0xff]
    %v4415 = vld [vmem:[#allocation20 + $0x348] sm:$0xff]
    %v4416 = vld [vmem:[#allocation20 + $0x350] sm:$0xff]
    %v4417 = vld [vmem:[#allocation20 + $0x358] sm:$0xff]
    %v4418 = vld [vmem:[#allocation20 + $0x360] sm:$0xff]
    %v4419 = vld [vmem:[#allocation20 + $0x368] sm:$0xff]
    %v4420 = vld [vmem:[#allocation20 + $0x370] sm:$0xff]
    %v4421 = vld [vmem:[#allocation20 + $0x378] sm:$0xff]
    %v4422 = vld [vmem:[#allocation20 + $0x380] sm:$0xff]
    %v4423 = vld [vmem:[#allocation20 + $0x388] sm:$0xff]
    %v4424 = vld [vmem:[#allocation20 + $0x390] sm:$0xff]
    %v4425 = vld [vmem:[#allocation20 + $0x398] sm:$0xff]
    %v4426 = vld [vmem:[#allocation20 + $0x3a0] sm:$0xff]
    %v4427 = vld [vmem:[#allocation20 + $0x3a8] sm:$0xff]
    %v4428 = vld [vmem:[#allocation20 + $0x3b0] sm:$0xff]
    %v4429 = vld [vmem:[#allocation20 + $0x3b8] sm:$0xff]
    %v4430 = vld [vmem:[#allocation20 + $0x3c0] sm:$0xff]
    %v4431 = vld [vmem:[#allocation20 + $0x3c8] sm:$0xff]
    %v4432 = vld [vmem:[#allocation20 + $0x3d0] sm:$0xff]
    %v4433 = vld [vmem:[#allocation20 + $0x3d8] sm:$0xff]
    %v4434 = vld [vmem:[#allocation20 + $0x3e0] sm:$0xff]
    %v4435 = vld [vmem:[#allocation20 + $0x3e8] sm:$0xff]
    %v4436 = vld [vmem:[#allocation20 + $0x3f0] sm:$0xff]
    %v4437 = vld [vmem:[#allocation20 + $0x3f8] sm:$0xff]
    %v4438 = vld [vmem:[%s10] sm:$0xf]
    %v4440 = vperm.slane %v4438, 0
    %v4441 = vperm.slane %v4438, 1
    %v4442 = vperm.slane %v4438, 2
    %v4443 = vperm.slane %v4438, 3
    %v4576 = vunpack.c.l.b16 %v4310
    %v4577 = vunpack.c.h.b16 %v4310
    %v4578 = vunpack.c.l.b16 %v4311
    %v4579 = vunpack.c.h.b16 %v4311
    %v4580 = vunpack.c.l.b16 %v4312
    %v4581 = vunpack.c.h.b16 %v4312
    %v4582 = vunpack.c.l.b16 %v4313
    %v4583 = vunpack.c.h.b16 %v4313
    %v4584 = vunpack.c.l.b16 %v4314
    %v4585 = vunpack.c.h.b16 %v4314
    %v4586 = vunpack.c.l.b16 %v4315
    %v4587 = vunpack.c.h.b16 %v4315
    %v4588 = vunpack.c.l.b16 %v4316
    %v4589 = vunpack.c.h.b16 %v4316
    %v4590 = vunpack.c.l.b16 %v4317
    %v4591 = vunpack.c.h.b16 %v4317
    %v4592 = vunpack.c.l.b16 %v4318
    %v4593 = vunpack.c.h.b16 %v4318
    %v4594 = vunpack.c.l.b16 %v4319
    %v4595 = vunpack.c.h.b16 %v4319
    %v4596 = vunpack.c.l.b16 %v4320
    %v4597 = vunpack.c.h.b16 %v4320
    %v4598 = vunpack.c.l.b16 %v4321
    %v4599 = vunpack.c.h.b16 %v4321
    %v4600 = vunpack.c.l.b16 %v4322
    %v4601 = vunpack.c.h.b16 %v4322
    %v4602 = vunpack.c.l.b16 %v4323
    %v4603 = vunpack.c.h.b16 %v4323
    %v4604 = vunpack.c.l.b16 %v4324
    %v4605 = vunpack.c.h.b16 %v4324
    %v4606 = vunpack.c.l.b16 %v4325
    %v4607 = vunpack.c.h.b16 %v4325
    %v4608 = vunpack.c.l.b16 %v4326
    %v4609 = vunpack.c.h.b16 %v4326
    %v4610 = vunpack.c.l.b16 %v4327
    %v4611 = vunpack.c.h.b16 %v4327
    %v4612 = vunpack.c.l.b16 %v4328
    %v4613 = vunpack.c.h.b16 %v4328
    %v4614 = vunpack.c.l.b16 %v4329
    %v4615 = vunpack.c.h.b16 %v4329
    %v4616 = vunpack.c.l.b16 %v4330
    %v4617 = vunpack.c.h.b16 %v4330
    %v4618 = vunpack.c.l.b16 %v4331
    %v4619 = vunpack.c.h.b16 %v4331
    %v4620 = vunpack.c.l.b16 %v4332
    %v4621 = vunpack.c.h.b16 %v4332
    %v4622 = vunpack.c.l.b16 %v4333
    %v4623 = vunpack.c.h.b16 %v4333
    %v4624 = vunpack.c.l.b16 %v4334
    %v4625 = vunpack.c.h.b16 %v4334
    %v4626 = vunpack.c.l.b16 %v4335
    %v4627 = vunpack.c.h.b16 %v4335
    %v4628 = vunpack.c.l.b16 %v4336
    %v4629 = vunpack.c.h.b16 %v4336
    %v4630 = vunpack.c.l.b16 %v4337
    %v4631 = vunpack.c.h.b16 %v4337
    %v4632 = vunpack.c.l.b16 %v4338
    %v4633 = vunpack.c.h.b16 %v4338
    %v4634 = vunpack.c.l.b16 %v4339
    %v4635 = vunpack.c.h.b16 %v4339
    %v4636 = vunpack.c.l.b16 %v4340
    %v4637 = vunpack.c.h.b16 %v4340
    %v4638 = vunpack.c.l.b16 %v4341
    %v4639 = vunpack.c.h.b16 %v4341
    %v4640 = vunpack.c.l.b16 %v4342
    %v4641 = vunpack.c.h.b16 %v4342
    %v4642 = vunpack.c.l.b16 %v4343
    %v4643 = vunpack.c.h.b16 %v4343
    %v4644 = vunpack.c.l.b16 %v4344
    %v4645 = vunpack.c.h.b16 %v4344
    %v4646 = vunpack.c.l.b16 %v4345
    %v4647 = vunpack.c.h.b16 %v4345
    %v4648 = vunpack.c.l.b16 %v4346
    %v4649 = vunpack.c.h.b16 %v4346
    %v4650 = vunpack.c.l.b16 %v4347
    %v4651 = vunpack.c.h.b16 %v4347
    %v4652 = vunpack.c.l.b16 %v4348
    %v4653 = vunpack.c.h.b16 %v4348
    %v4654 = vunpack.c.l.b16 %v4349
    %v4655 = vunpack.c.h.b16 %v4349
    %v4656 = vunpack.c.l.b16 %v4350
    %v4657 = vunpack.c.h.b16 %v4350
    %v4658 = vunpack.c.l.b16 %v4351
    %v4659 = vunpack.c.h.b16 %v4351
    %v4660 = vunpack.c.l.b16 %v4352
    %v4661 = vunpack.c.h.b16 %v4352
    %v4662 = vunpack.c.l.b16 %v4353
    %v4663 = vunpack.c.h.b16 %v4353
    %v4664 = vunpack.c.l.b16 %v4354
    %v4665 = vunpack.c.h.b16 %v4354
    %v4666 = vunpack.c.l.b16 %v4355
    %v4667 = vunpack.c.h.b16 %v4355
    %v4668 = vunpack.c.l.b16 %v4356
    %v4669 = vunpack.c.h.b16 %v4356
    %v4670 = vunpack.c.l.b16 %v4357
    %v4671 = vunpack.c.h.b16 %v4357
    %v4672 = vunpack.c.l.b16 %v4358
    %v4673 = vunpack.c.h.b16 %v4358
    %v4674 = vunpack.c.l.b16 %v4359
    %v4675 = vunpack.c.h.b16 %v4359
    %v4676 = vunpack.c.l.b16 %v4360
    %v4677 = vunpack.c.h.b16 %v4360
    %v4678 = vunpack.c.l.b16 %v4361
    %v4679 = vunpack.c.h.b16 %v4361
    %v4680 = vunpack.c.l.b16 %v4362
    %v4681 = vunpack.c.h.b16 %v4362
    %v4682 = vunpack.c.l.b16 %v4363
    %v4683 = vunpack.c.h.b16 %v4363
    %v4684 = vunpack.c.l.b16 %v4364
    %v4685 = vunpack.c.h.b16 %v4364
    %v4686 = vunpack.c.l.b16 %v4365
    %v4687 = vunpack.c.h.b16 %v4365
    %v4688 = vunpack.c.l.b16 %v4366
    %v4689 = vunpack.c.h.b16 %v4366
    %v4690 = vunpack.c.l.b16 %v4367
    %v4691 = vunpack.c.h.b16 %v4367
    %v4692 = vunpack.c.l.b16 %v4368
    %v4693 = vunpack.c.h.b16 %v4368
    %v4694 = vunpack.c.l.b16 %v4369
    %v4695 = vunpack.c.h.b16 %v4369
    %v4696 = vunpack.c.l.b16 %v4370
    %v4697 = vunpack.c.h.b16 %v4370
    %v4698 = vunpack.c.l.b16 %v4371
    %v4699 = vunpack.c.h.b16 %v4371
    %v4700 = vunpack.c.l.b16 %v4372
    %v4701 = vunpack.c.h.b16 %v4372
    %v4702 = vunpack.c.l.b16 %v4373
    %v4703 = vunpack.c.h.b16 %v4373
    %v4704 = vunpack.c.l.b16 %v4374
    %v4705 = vunpack.c.h.b16 %v4374
    %v4706 = vunpack.c.l.b16 %v4375
    %v4707 = vunpack.c.h.b16 %v4375
    %v4708 = vunpack.c.l.b16 %v4376
    %v4709 = vunpack.c.h.b16 %v4376
    %v4710 = vunpack.c.l.b16 %v4377
    %v4711 = vunpack.c.h.b16 %v4377
    %v4712 = vunpack.c.l.b16 %v4378
    %v4713 = vunpack.c.h.b16 %v4378
    %v4714 = vunpack.c.l.b16 %v4379
    %v4715 = vunpack.c.h.b16 %v4379
    %v4716 = vunpack.c.l.b16 %v4380
    %v4717 = vunpack.c.h.b16 %v4380
    %v4718 = vunpack.c.l.b16 %v4381
    %v4719 = vunpack.c.h.b16 %v4381
    %v4720 = vunpack.c.l.b16 %v4382
    %v4721 = vunpack.c.h.b16 %v4382
    %v4722 = vunpack.c.l.b16 %v4383
    %v4723 = vunpack.c.h.b16 %v4383
    %v4724 = vunpack.c.l.b16 %v4384
    %v4725 = vunpack.c.h.b16 %v4384
    %v4726 = vunpack.c.l.b16 %v4385
    %v4727 = vunpack.c.h.b16 %v4385
    %v4728 = vunpack.c.l.b16 %v4386
    %v4729 = vunpack.c.h.b16 %v4386
    %v4730 = vunpack.c.l.b16 %v4387
    %v4731 = vunpack.c.h.b16 %v4387
    %v4732 = vunpack.c.l.b16 %v4388
    %v4733 = vunpack.c.h.b16 %v4388
    %v4734 = vunpack.c.l.b16 %v4389
    %v4735 = vunpack.c.h.b16 %v4389
    %v4736 = vunpack.c.l.b16 %v4390
    %v4737 = vunpack.c.h.b16 %v4390
    %v4738 = vunpack.c.l.b16 %v4391
    %v4739 = vunpack.c.h.b16 %v4391
    %v4740 = vunpack.c.l.b16 %v4392
    %v4741 = vunpack.c.h.b16 %v4392
    %v4742 = vunpack.c.l.b16 %v4393
    %v4743 = vunpack.c.h.b16 %v4393
    %v4744 = vunpack.c.l.b16 %v4394
    %v4745 = vunpack.c.h.b16 %v4394
    %v4746 = vunpack.c.l.b16 %v4395
    %v4747 = vunpack.c.h.b16 %v4395
    %v4748 = vunpack.c.l.b16 %v4396
    %v4749 = vunpack.c.h.b16 %v4396
    %v4750 = vunpack.c.l.b16 %v4397
    %v4751 = vunpack.c.h.b16 %v4397
    %v4752 = vunpack.c.l.b16 %v4398
    %v4753 = vunpack.c.h.b16 %v4398
    %v4754 = vunpack.c.l.b16 %v4399
    %v4755 = vunpack.c.h.b16 %v4399
    %v4756 = vunpack.c.l.b16 %v4400
    %v4757 = vunpack.c.h.b16 %v4400
    %v4758 = vunpack.c.l.b16 %v4401
    %v4759 = vunpack.c.h.b16 %v4401
    %v4760 = vunpack.c.l.b16 %v4402
    %v4761 = vunpack.c.h.b16 %v4402
    %v4762 = vunpack.c.l.b16 %v4403
    %v4763 = vunpack.c.h.b16 %v4403
    %v4764 = vunpack.c.l.b16 %v4404
    %v4765 = vunpack.c.h.b16 %v4404
    %v4766 = vunpack.c.l.b16 %v4405
    %v4767 = vunpack.c.h.b16 %v4405
    %v4768 = vunpack.c.l.b16 %v4406
    %v4769 = vunpack.c.h.b16 %v4406
    %v4770 = vunpack.c.l.b16 %v4407
    %v4771 = vunpack.c.h.b16 %v4407
    %v4772 = vunpack.c.l.b16 %v4408
    %v4773 = vunpack.c.h.b16 %v4408
    %v4774 = vunpack.c.l.b16 %v4409
    %v4775 = vunpack.c.h.b16 %v4409
    %v4776 = vunpack.c.l.b16 %v4410
    %v4777 = vunpack.c.h.b16 %v4410
    %v4778 = vunpack.c.l.b16 %v4411
    %v4779 = vunpack.c.h.b16 %v4411
    %v4780 = vunpack.c.l.b16 %v4412
    %v4781 = vunpack.c.h.b16 %v4412
    %v4782 = vunpack.c.l.b16 %v4413
    %v4783 = vunpack.c.h.b16 %v4413
    %v4784 = vunpack.c.l.b16 %v4414
    %v4785 = vunpack.c.h.b16 %v4414
    %v4786 = vunpack.c.l.b16 %v4415
    %v4787 = vunpack.c.h.b16 %v4415
    %v4788 = vunpack.c.l.b16 %v4416
    %v4789 = vunpack.c.h.b16 %v4416
    %v4790 = vunpack.c.l.b16 %v4417
    %v4791 = vunpack.c.h.b16 %v4417
    %v4792 = vunpack.c.l.b16 %v4418
    %v4793 = vunpack.c.h.b16 %v4418
    %v4794 = vunpack.c.l.b16 %v4419
    %v4795 = vunpack.c.h.b16 %v4419
    %v4796 = vunpack.c.l.b16 %v4420
    %v4797 = vunpack.c.h.b16 %v4420
    %v4798 = vunpack.c.l.b16 %v4421
    %v4799 = vunpack.c.h.b16 %v4421
    %v4800 = vunpack.c.l.b16 %v4422
    %v4801 = vunpack.c.h.b16 %v4422
    %v4802 = vunpack.c.l.b16 %v4423
    %v4803 = vunpack.c.h.b16 %v4423
    %v4804 = vunpack.c.l.b16 %v4424
    %v4805 = vunpack.c.h.b16 %v4424
    %v4806 = vunpack.c.l.b16 %v4425
    %v4807 = vunpack.c.h.b16 %v4425
    %v4808 = vunpack.c.l.b16 %v4426
    %v4809 = vunpack.c.h.b16 %v4426
    %v4810 = vunpack.c.l.b16 %v4427
    %v4811 = vunpack.c.h.b16 %v4427
    %v4812 = vunpack.c.l.b16 %v4428
    %v4813 = vunpack.c.h.b16 %v4428
    %v4814 = vunpack.c.l.b16 %v4429
    %v4815 = vunpack.c.h.b16 %v4429
    %v4816 = vunpack.c.l.b16 %v4430
    %v4817 = vunpack.c.h.b16 %v4430
    %v4818 = vunpack.c.l.b16 %v4431
    %v4819 = vunpack.c.h.b16 %v4431
    %v4820 = vunpack.c.l.b16 %v4432
    %v4821 = vunpack.c.h.b16 %v4432
    %v4822 = vunpack.c.l.b16 %v4433
    %v4823 = vunpack.c.h.b16 %v4433
    %v4824 = vunpack.c.l.b16 %v4434
    %v4825 = vunpack.c.h.b16 %v4434
    %v4826 = vunpack.c.l.b16 %v4435
    %v4827 = vunpack.c.h.b16 %v4435
    %v4828 = vunpack.c.l.b16 %v4436
    %v4829 = vunpack.c.h.b16 %v4436
    %v4830 = vunpack.c.l.b16 %v4437
    %v4831 = vunpack.c.h.b16 %v4437
    %v4832 = vpack.c.b16 %v4580, %v4576
    %v4833 = vpack.c.b16 %v4581, %v4577
    %v4834 = vpack.c.b16 %v4582, %v4578
    %v4835 = vpack.c.b16 %v4583, %v4579
    %v4836 = vpack.c.b16 %v4588, %v4584
    %v4837 = vpack.c.b16 %v4589, %v4585
    %v4838 = vpack.c.b16 %v4590, %v4586
    %v4839 = vpack.c.b16 %v4591, %v4587
    %v4840 = vpack.c.b16 %v4596, %v4592
    %v4841 = vpack.c.b16 %v4597, %v4593
    %v4842 = vpack.c.b16 %v4598, %v4594
    %v4843 = vpack.c.b16 %v4599, %v4595
    %v4844 = vpack.c.b16 %v4604, %v4600
    %v4845 = vpack.c.b16 %v4605, %v4601
    %v4846 = vpack.c.b16 %v4606, %v4602
    %v4847 = vpack.c.b16 %v4607, %v4603
    %v4848 = vpack.c.b16 %v4612, %v4608
    %v4849 = vpack.c.b16 %v4613, %v4609
    %v4850 = vpack.c.b16 %v4614, %v4610
    %v4851 = vpack.c.b16 %v4615, %v4611
    %v4852 = vpack.c.b16 %v4620, %v4616
    %v4853 = vpack.c.b16 %v4621, %v4617
    %v4854 = vpack.c.b16 %v4622, %v4618
    %v4855 = vpack.c.b16 %v4623, %v4619
    %v4856 = vpack.c.b16 %v4628, %v4624
    %v4857 = vpack.c.b16 %v4629, %v4625
    %v4858 = vpack.c.b16 %v4630, %v4626
    %v4859 = vpack.c.b16 %v4631, %v4627
    %v4860 = vpack.c.b16 %v4636, %v4632
    %v4861 = vpack.c.b16 %v4637, %v4633
    %v4862 = vpack.c.b16 %v4638, %v4634
    %v4863 = vpack.c.b16 %v4639, %v4635
    %v4864 = vpack.c.b16 %v4644, %v4640
    %v4865 = vpack.c.b16 %v4645, %v4641
    %v4866 = vpack.c.b16 %v4646, %v4642
    %v4867 = vpack.c.b16 %v4647, %v4643
    %v4868 = vpack.c.b16 %v4652, %v4648
    %v4869 = vpack.c.b16 %v4653, %v4649
    %v4870 = vpack.c.b16 %v4654, %v4650
    %v4871 = vpack.c.b16 %v4655, %v4651
    %v4872 = vpack.c.b16 %v4660, %v4656
    %v4873 = vpack.c.b16 %v4661, %v4657
    %v4874 = vpack.c.b16 %v4662, %v4658
    %v4875 = vpack.c.b16 %v4663, %v4659
    %v4876 = vpack.c.b16 %v4668, %v4664
    %v4877 = vpack.c.b16 %v4669, %v4665
    %v4878 = vpack.c.b16 %v4670, %v4666
    %v4879 = vpack.c.b16 %v4671, %v4667
    %v4880 = vpack.c.b16 %v4676, %v4672
    %v4881 = vpack.c.b16 %v4677, %v4673
    %v4882 = vpack.c.b16 %v4678, %v4674
    %v4883 = vpack.c.b16 %v4679, %v4675
    %v4884 = vpack.c.b16 %v4684, %v4680
    %v4885 = vpack.c.b16 %v4685, %v4681
    %v4886 = vpack.c.b16 %v4686, %v4682
    %v4887 = vpack.c.b16 %v4687, %v4683
    %v4888 = vpack.c.b16 %v4692, %v4688
    %v4889 = vpack.c.b16 %v4693, %v4689
    %v4890 = vpack.c.b16 %v4694, %v4690
    %v4891 = vpack.c.b16 %v4695, %v4691
    %v4892 = vpack.c.b16 %v4700, %v4696
    %v4893 = vpack.c.b16 %v4701, %v4697
    %v4894 = vpack.c.b16 %v4702, %v4698
    %v4895 = vpack.c.b16 %v4703, %v4699
    %v4896 = vpack.c.b16 %v4708, %v4704
    %v4897 = vpack.c.b16 %v4709, %v4705
    %v4898 = vpack.c.b16 %v4710, %v4706
    %v4899 = vpack.c.b16 %v4711, %v4707
    %v4900 = vpack.c.b16 %v4716, %v4712
    %v4901 = vpack.c.b16 %v4717, %v4713
    %v4902 = vpack.c.b16 %v4718, %v4714
    %v4903 = vpack.c.b16 %v4719, %v4715
    %v4904 = vpack.c.b16 %v4724, %v4720
    %v4905 = vpack.c.b16 %v4725, %v4721
    %v4906 = vpack.c.b16 %v4726, %v4722
    %v4907 = vpack.c.b16 %v4727, %v4723
    %v4908 = vpack.c.b16 %v4732, %v4728
    %v4909 = vpack.c.b16 %v4733, %v4729
    %v4910 = vpack.c.b16 %v4734, %v4730
    %v4911 = vpack.c.b16 %v4735, %v4731
    %v4912 = vpack.c.b16 %v4740, %v4736
    %v4913 = vpack.c.b16 %v4741, %v4737
    %v4914 = vpack.c.b16 %v4742, %v4738
    %v4915 = vpack.c.b16 %v4743, %v4739
    %v4916 = vpack.c.b16 %v4748, %v4744
    %v4917 = vpack.c.b16 %v4749, %v4745
    %v4918 = vpack.c.b16 %v4750, %v4746
    %v4919 = vpack.c.b16 %v4751, %v4747
    %v4920 = vpack.c.b16 %v4756, %v4752
    %v4921 = vpack.c.b16 %v4757, %v4753
    %v4922 = vpack.c.b16 %v4758, %v4754
    %v4923 = vpack.c.b16 %v4759, %v4755
    %v4924 = vpack.c.b16 %v4764, %v4760
    %v4925 = vpack.c.b16 %v4765, %v4761
    %v4926 = vpack.c.b16 %v4766, %v4762
    %v4927 = vpack.c.b16 %v4767, %v4763
    %v4928 = vpack.c.b16 %v4772, %v4768
    %v4929 = vpack.c.b16 %v4773, %v4769
    %v4930 = vpack.c.b16 %v4774, %v4770
    %v4931 = vpack.c.b16 %v4775, %v4771
    %v4932 = vpack.c.b16 %v4780, %v4776
    %v4933 = vpack.c.b16 %v4781, %v4777
    %v4934 = vpack.c.b16 %v4782, %v4778
    %v4935 = vpack.c.b16 %v4783, %v4779
    %v4936 = vpack.c.b16 %v4788, %v4784
    %v4937 = vpack.c.b16 %v4789, %v4785
    %v4938 = vpack.c.b16 %v4790, %v4786
    %v4939 = vpack.c.b16 %v4791, %v4787
    %v4940 = vpack.c.b16 %v4796, %v4792
    %v4941 = vpack.c.b16 %v4797, %v4793
    %v4942 = vpack.c.b16 %v4798, %v4794
    %v4943 = vpack.c.b16 %v4799, %v4795
    %v4944 = vpack.c.b16 %v4804, %v4800
    %v4945 = vpack.c.b16 %v4805, %v4801
    %v4946 = vpack.c.b16 %v4806, %v4802
    %v4947 = vpack.c.b16 %v4807, %v4803
    %v4948 = vpack.c.b16 %v4812, %v4808
    %v4949 = vpack.c.b16 %v4813, %v4809
    %v4950 = vpack.c.b16 %v4814, %v4810
    %v4951 = vpack.c.b16 %v4815, %v4811
    %v4952 = vpack.c.b16 %v4820, %v4816
    %v4953 = vpack.c.b16 %v4821, %v4817
    %v4954 = vpack.c.b16 %v4822, %v4818
    %v4955 = vpack.c.b16 %v4823, %v4819
    %v4956 = vpack.c.b16 %v4828, %v4824
    %v4957 = vpack.c.b16 %v4829, %v4825
    %v4958 = vpack.c.b16 %v4830, %v4826
    %v4959 = vpack.c.b16 %v4831, %v4827
    %5088 = vmatpush.bf16.msra.mxu0 %v4860
    %5089 = vmatpush.bf16.msra.mxu0 %v4856
    %5090 = vmatpush.bf16.msra.mxu0 %v4852
    %5091 = vmatpush.bf16.msra.mxu0 %v4848
    %5092 = vmatpush.bf16.msra.mxu0 %v4844
    %5093 = vmatpush.bf16.msra.mxu0 %v4840
    %5094 = vmatpush.bf16.msra.mxu0 %v4836
    %5095 = vmatpush.bf16.msra.mxu0 %v4832
    %5096 = vmatmul.bf16.gmra.mxu0 %v4306
    %v5097 = vpop.f32.mrf.mxu0
    %v5098 = vadd.f32 %v4440, %v5097
    %v5099 = vpop.f32.mrf.mxu0
    %v5100 = vadd.f32 %v4440, %v5099
    %5101 = vdwg.mxu0
    %5102 = vmatpush.bf16.msra.mxu0 %v4892
    %5103 = vmatpush.bf16.msra.mxu0 %v4888
    %5104 = vmatpush.bf16.msra.mxu0 %v4884
    %5105 = vmatpush.bf16.msra.mxu0 %v4880
    %5106 = vmatpush.bf16.msra.mxu0 %v4876
    %5107 = vmatpush.bf16.msra.mxu0 %v4872
    %5108 = vmatpush.bf16.msra.mxu0 %v4868
    %5109 = vmatpush.bf16.msra.mxu0 %v4864
    %5110 = vmatmul.bf16.gmra.mxu0 %v4307
    %v5111 = vpop.f32.mrf.mxu0
    %v5112 = vadd.f32 %v5098, %v5111
    %v5113 = vpop.f32.mrf.mxu0
    %v5114 = vadd.f32 %v5100, %v5113
    %5115 = vdwg.mxu0
    %5116 = vmatpush.bf16.msra.mxu0 %v4924
    %5117 = vmatpush.bf16.msra.mxu0 %v4920
    %5118 = vmatpush.bf16.msra.mxu0 %v4916
    %5119 = vmatpush.bf16.msra.mxu0 %v4912
    %5120 = vmatpush.bf16.msra.mxu0 %v4908
    %5121 = vmatpush.bf16.msra.mxu0 %v4904
    %5122 = vmatpush.bf16.msra.mxu0 %v4900
    %5123 = vmatpush.bf16.msra.mxu0 %v4896
    %5124 = vmatmul.bf16.gmra.mxu0 %v4308
    %v5125 = vpop.f32.mrf.mxu0
    %v5126 = vadd.f32 %v5112, %v5125
    %v5127 = vpop.f32.mrf.mxu0
    %v5128 = vadd.f32 %v5114, %v5127
    %5129 = vdwg.mxu0
    %5130 = vmatpush.bf16.msra.mxu0 %v4956
    %5131 = vmatpush.bf16.msra.mxu0 %v4952
    %5132 = vmatpush.bf16.msra.mxu0 %v4948
    %5133 = vmatpush.bf16.msra.mxu0 %v4944
    %5134 = vmatpush.bf16.msra.mxu0 %v4940
    %5135 = vmatpush.bf16.msra.mxu0 %v4936
    %5136 = vmatpush.bf16.msra.mxu0 %v4932
    %5137 = vmatpush.bf16.msra.mxu0 %v4928
    %5138 = vmatmul.bf16.gmra.mxu0 %v4309
    %v5139 = vpop.f32.mrf.mxu0
    %v5140 = vadd.f32 %v5126, %v5139
    %v5141 = vpop.f32.mrf.mxu0
    %v5142 = vadd.f32 %v5128, %v5141
    %5143 = vdwg.mxu0
    %5144 = vmatpush.bf16.msra.mxu0 %v4861
    %5145 = vmatpush.bf16.msra.mxu0 %v4857
    %5146 = vmatpush.bf16.msra.mxu0 %v4853
    %5147 = vmatpush.bf16.msra.mxu0 %v4849
    %5148 = vmatpush.bf16.msra.mxu0 %v4845
    %5149 = vmatpush.bf16.msra.mxu0 %v4841
    %5150 = vmatpush.bf16.msra.mxu0 %v4837
    %5151 = vmatpush.bf16.msra.mxu0 %v4833
    %5152 = vmatmul.bf16.gmra.mxu0 %v4306
    %v5153 = vpop.f32.mrf.mxu0
    %v5154 = vadd.f32 %v4441, %v5153
    %v5155 = vpop.f32.mrf.mxu0
    %v5156 = vadd.f32 %v4441, %v5155
    %5157 = vdwg.mxu0
    %5158 = vmatpush.bf16.msra.mxu0 %v4893
    %5159 = vmatpush.bf16.msra.mxu0 %v4889
    %5160 = vmatpush.bf16.msra.mxu0 %v4885
    %5161 = vmatpush.bf16.msra.mxu0 %v4881
    %5162 = vmatpush.bf16.msra.mxu0 %v4877
    %5163 = vmatpush.bf16.msra.mxu0 %v4873
    %5164 = vmatpush.bf16.msra.mxu0 %v4869
    %5165 = vmatpush.bf16.msra.mxu0 %v4865
    %5166 = vmatmul.bf16.gmra.mxu0 %v4307
    %v5167 = vpop.f32.mrf.mxu0
    %v5168 = vadd.f32 %v5154, %v5167
    %v5169 = vpop.f32.mrf.mxu0
    %v5170 = vadd.f32 %v5156, %v5169
    %5171 = vdwg.mxu0
    %5172 = vmatpush.bf16.msra.mxu0 %v4925
    %5173 = vmatpush.bf16.msra.mxu0 %v4921
    %5174 = vmatpush.bf16.msra.mxu0 %v4917
    %5175 = vmatpush.bf16.msra.mxu0 %v4913
    %5176 = vmatpush.bf16.msra.mxu0 %v4909
    %5177 = vmatpush.bf16.msra.mxu0 %v4905
    %5178 = vmatpush.bf16.msra.mxu0 %v4901
    %5179 = vmatpush.bf16.msra.mxu0 %v4897
    %5180 = vmatmul.bf16.gmra.mxu0 %v4308
    %v5181 = vpop.f32.mrf.mxu0
    %v5182 = vadd.f32 %v5168, %v5181
    %v5183 = vpop.f32.mrf.mxu0
    %v5184 = vadd.f32 %v5170, %v5183
    %5185 = vdwg.mxu0
    %5186 = vmatpush.bf16.msra.mxu0 %v4957
    %5187 = vmatpush.bf16.msra.mxu0 %v4953
    %5188 = vmatpush.bf16.msra.mxu0 %v4949
    %5189 = vmatpush.bf16.msra.mxu0 %v4945
    %5190 = vmatpush.bf16.msra.mxu0 %v4941
    %5191 = vmatpush.bf16.msra.mxu0 %v4937
    %5192 = vmatpush.bf16.msra.mxu0 %v4933
    %5193 = vmatpush.bf16.msra.mxu0 %v4929
    %5194 = vmatmul.bf16.gmra.mxu0 %v4309
    %v5195 = vpop.f32.mrf.mxu0
    %v5196 = vadd.f32 %v5182, %v5195
    %v5197 = vpop.f32.mrf.mxu0
    %v5198 = vadd.f32 %v5184, %v5197
    %5199 = vdwg.mxu0
    %5200 = vmatpush.bf16.msra.mxu0 %v4862
    %5201 = vmatpush.bf16.msra.mxu0 %v4858
    %5202 = vmatpush.bf16.msra.mxu0 %v4854
    %5203 = vmatpush.bf16.msra.mxu0 %v4850
    %5204 = vmatpush.bf16.msra.mxu0 %v4846
    %5205 = vmatpush.bf16.msra.mxu0 %v4842
    %5206 = vmatpush.bf16.msra.mxu0 %v4838
    %5207 = vmatpush.bf16.msra.mxu0 %v4834
    %5208 = vmatmul.bf16.gmra.mxu0 %v4306
    %v5209 = vpop.f32.mrf.mxu0
    %v5210 = vadd.f32 %v4442, %v5209
    %v5211 = vpop.f32.mrf.mxu0
    %v5212 = vadd.f32 %v4442, %v5211
    %5213 = vdwg.mxu0
    %5214 = vmatpush.bf16.msra.mxu0 %v4894
    %5215 = vmatpush.bf16.msra.mxu0 %v4890
    %5216 = vmatpush.bf16.msra.mxu0 %v4886
    %5217 = vmatpush.bf16.msra.mxu0 %v4882
    %5218 = vmatpush.bf16.msra.mxu0 %v4878
    %5219 = vmatpush.bf16.msra.mxu0 %v4874
    %5220 = vmatpush.bf16.msra.mxu0 %v4870
    %5221 = vmatpush.bf16.msra.mxu0 %v4866
    %5222 = vmatmul.bf16.gmra.mxu0 %v4307
    %v5223 = vpop.f32.mrf.mxu0
    %v5224 = vadd.f32 %v5210, %v5223
    %v5225 = vpop.f32.mrf.mxu0
    %v5226 = vadd.f32 %v5212, %v5225
    %5227 = vdwg.mxu0
    %5228 = vmatpush.bf16.msra.mxu0 %v4926
    %5229 = vmatpush.bf16.msra.mxu0 %v4922
    %5230 = vmatpush.bf16.msra.mxu0 %v4918
    %5231 = vmatpush.bf16.msra.mxu0 %v4914
    %5232 = vmatpush.bf16.msra.mxu0 %v4910
    %5233 = vmatpush.bf16.msra.mxu0 %v4906
    %5234 = vmatpush.bf16.msra.mxu0 %v4902
    %5235 = vmatpush.bf16.msra.mxu0 %v4898
    %5236 = vmatmul.bf16.gmra.mxu0 %v4308
    %v5237 = vpop.f32.mrf.mxu0
    %v5238 = vadd.f32 %v5224, %v5237
    %v5239 = vpop.f32.mrf.mxu0
    %v5240 = vadd.f32 %v5226, %v5239
    %5241 = vdwg.mxu0
    %5242 = vmatpush.bf16.msra.mxu0 %v4958
    %5243 = vmatpush.bf16.msra.mxu0 %v4954
    %5244 = vmatpush.bf16.msra.mxu0 %v4950
    %5245 = vmatpush.bf16.msra.mxu0 %v4946
    %5246 = vmatpush.bf16.msra.mxu0 %v4942
    %5247 = vmatpush.bf16.msra.mxu0 %v4938
    %5248 = vmatpush.bf16.msra.mxu0 %v4934
    %5249 = vmatpush.bf16.msra.mxu0 %v4930
    %5250 = vmatmul.bf16.gmra.mxu0 %v4309
    %v5251 = vpop.f32.mrf.mxu0
    %v5252 = vadd.f32 %v5238, %v5251
    %v5253 = vpop.f32.mrf.mxu0
    %v5254 = vadd.f32 %v5240, %v5253
    %5255 = vdwg.mxu0
    %5256 = vmatpush.bf16.msra.mxu0 %v4863
    %5257 = vmatpush.bf16.msra.mxu0 %v4859
    %5258 = vmatpush.bf16.msra.mxu0 %v4855
    %5259 = vmatpush.bf16.msra.mxu0 %v4851
    %5260 = vmatpush.bf16.msra.mxu0 %v4847
    %5261 = vmatpush.bf16.msra.mxu0 %v4843
    %5262 = vmatpush.bf16.msra.mxu0 %v4839
    %5263 = vmatpush.bf16.msra.mxu0 %v4835
    %5264 = vmatmul.bf16.gmra.mxu0 %v4306
    %v5265 = vpop.f32.mrf.mxu0
    %v5266 = vadd.f32 %v4443, %v5265
    %v5267 = vpop.f32.mrf.mxu0
    %v5268 = vadd.f32 %v4443, %v5267
    %5269 = vdwg.mxu0
    %5270 = vmatpush.bf16.msra.mxu0 %v4895
    %5271 = vmatpush.bf16.msra.mxu0 %v4891
    %5272 = vmatpush.bf16.msra.mxu0 %v4887
    %5273 = vmatpush.bf16.msra.mxu0 %v4883
    %5274 = vmatpush.bf16.msra.mxu0 %v4879
    %5275 = vmatpush.bf16.msra.mxu0 %v4875
    %5276 = vmatpush.bf16.msra.mxu0 %v4871
    %5277 = vmatpush.bf16.msra.mxu0 %v4867
    %5278 = vmatmul.bf16.gmra.mxu0 %v4307
    %v5279 = vpop.f32.mrf.mxu0
    %v5280 = vadd.f32 %v5266, %v5279
    %v5281 = vpop.f32.mrf.mxu0
    %v5282 = vadd.f32 %v5268, %v5281
    %5283 = vdwg.mxu0
    %5284 = vmatpush.bf16.msra.mxu0 %v4927
    %5285 = vmatpush.bf16.msra.mxu0 %v4923
    %5286 = vmatpush.bf16.msra.mxu0 %v4919
    %5287 = vmatpush.bf16.msra.mxu0 %v4915
    %5288 = vmatpush.bf16.msra.mxu0 %v4911
    %5289 = vmatpush.bf16.msra.mxu0 %v4907
    %5290 = vmatpush.bf16.msra.mxu0 %v4903
    %5291 = vmatpush.bf16.msra.mxu0 %v4899
    %5292 = vmatmul.bf16.gmra.mxu0 %v4308
    %v5293 = vpop.f32.mrf.mxu0
    %v5294 = vadd.f32 %v5280, %v5293
    %v5295 = vpop.f32.mrf.mxu0
    %v5296 = vadd.f32 %v5282, %v5295
    %5297 = vdwg.mxu0
    %5298 = vmatpush.bf16.msra.mxu0 %v4959
    %5299 = vmatpush.bf16.msra.mxu0 %v4955
    %5300 = vmatpush.bf16.msra.mxu0 %v4951
    %5301 = vmatpush.bf16.msra.mxu0 %v4947
    %5302 = vmatpush.bf16.msra.mxu0 %v4943
    %5303 = vmatpush.bf16.msra.mxu0 %v4939
    %5304 = vmatpush.bf16.msra.mxu0 %v4935
    %5305 = vmatpush.bf16.msra.mxu0 %v4931
    %5306 = vmatmul.bf16.gmra.mxu0 %v4309
    %v5307 = vpop.f32.mrf.mxu0
    %v5308 = vadd.f32 %v5294, %v5307
    %v5309 = vpop.f32.mrf.mxu0
    %v5310 = vadd.f32 %v5296, %v5309
    %5311 = vdwg.mxu0
    %5312 = vst [vmem:[#allocation21] sm:$0xff] %v5140
    %5313 = vst [vmem:[#allocation21 + $0x8] sm:$0xff] %v5196
    %5314 = vst [vmem:[#allocation21 + $0x10] sm:$0xff] %v5252
    %5315 = vst [vmem:[#allocation21 + $0x18] sm:$0xff] %v5308
    %5316 = vst [vmem:[#allocation21 + $0x20] sm:$0xff] %v5142
    %5317 = vst [vmem:[#allocation21 + $0x28] sm:$0xff] %v5198
    %5318 = vst [vmem:[#allocation21 + $0x30] sm:$0xff] %v5254
    %5319 = vst [vmem:[#allocation21 + $0x38] sm:$0xff] %v5310
    // Predicated region
    $region82: #{tpu_custom_call.1} parent=1 // pred_check
      _
    $region83: #{tpu_custom_call.1} parent=1 // pred_check_branch
      %5321 = sbr.rel (0) target = $region85
    $region84: #{tpu_custom_call.1} parent=1 // pred_region
      %5323 = vsyncadd [#allocation8], 0
      %s5324 = sshll.u32 [#allocation21], 4
      %s5325 = int_to_ptr.vmem [resolvable:$true] %s5324
      %s5326 = sshll.u32 %s11, 4
      %s5327 = int_to_ptr.hbm [resolvable:$true] %s5326
      %5332 = dma.vmem_to_hbm [thread:$0]  %s5325, 1024, %s5327, [#allocation8], 512, 512, 32
    $region85: #{tpu_custom_call.1} parent=1 // pred_fallthru
      _
    // Predicated region
    $region86: #{tpu_custom_call.1} parent=1 // pred_check
      _
    $region87: #{tpu_custom_call.1} parent=1 // pred_check_branch
      %5334 = sbr.rel (0) target = $region89
    $region88: #{tpu_custom_call.1} parent=1 // pred_region
      %5336 = dma.done [#allocation8], 1024
    $region89: #{tpu_custom_call.1} parent=1 // pred_fallthru
      _
    %5337 = vsyncpa [#allocation7], 1
    %5338 = vsyncpa [#allocation10], 1
    %5339 = vsyncpa [#allocation13], 1
    %5340 = vsyncpa [#allocation16], 1
    %5341 = vsyncpa [#allocation19], 1
    %5342 = vsyncpa [#allocation8], 1

</llo_original>
